<compile_context>
chip_gen: v7x
topology: tpu7x:2x2x1
jax: 0.10.0
libtpu: 0.0.40
codegen_flags: <defaults>
</compile_context>

<pallas_src>
import functools
import math

import jax
import jax.numpy as jnp
from jax import lax
from jax.experimental import pallas as pl
from jax.experimental.pallas import tpu as pltpu


def _mha_kernel(x_ref, wqkv_ref, wo_ref, bqkv_ref, bo_ref, o_ref, *, num_heads):
    """nb batch elements, E-major: fused QKV proj, head-batched SDPA, out proj, residual."""
    nb, E, L = x_ref.shape
    dh = E // num_heads

    wqkv = wqkv_ref[...]      # [3E, E]  (Q rows pre-scaled by 1/sqrt(dh))
    bqkv = bqkv_ref[...]      # [3E, 1]  (Q rows pre-scaled by 1/sqrt(dh))
    wo = wo_ref[...]          # [E, E]
    bo = bo_ref[...]          # [E, 1]

    # Static unroll over the batches mapped to this grid step (nb in {1, B});
    # the batches are independent, so the LLO scheduler is free to interleave
    # their MXU / EUP / VPU work.
    for b in range(nb):
        x = x_ref[b]          # [E, L] f32

        # Fused QKV projection (E-major => y = W @ x + b), lane-dense L output.
        qkv = jnp.dot(wqkv, x, preferred_element_type=jnp.float32) + bqkv   # [3E, L]
        q = qkv[0 * E:1 * E].reshape(num_heads, dh, L)    # [H, dh, L] (already scaled)
        k = qkv[1 * E:2 * E].reshape(num_heads, dh, L)
        v = qkv[2 * E:3 * E].reshape(num_heads, dh, L)

        # Transposed scores: s_t[h, j, i] = sum_d k[h,d,j] * q[h,d,i]  -> [H, Lk, Lq].
        # Only the tiny [dh, L] lhs needs a transpose; no [L, L] transpose anywhere,
        # and the softmax reductions below run along the sublane axis.
        s_t = lax.dot_general(k, q, (((1,), (1,)), ((0,), (0,))),
                              preferred_element_type=jnp.float32)
        m = jnp.max(s_t, axis=1, keepdims=True)           # max over keys (sublane axis)
        p = jnp.exp(s_t - m)                              # unnormalized probabilities
        row_sum = jnp.sum(p, axis=1)                      # [H, Lq]

        # ctx[h, d, i] = sum_j v[h,d,j] * p[h,j,i]  -> [H, dh, Lq].
        # v contracts its last dim, p its second-to-last: canonical MXU form.
        ctx = lax.dot_general(v, p, (((2,), (1,)), ((0,), (0,))),
                              preferred_element_type=jnp.float32)
        # Deferred normalization on the small ctx tensor (EUP reciprocal).
        ctx = ctx * pl.reciprocal(row_sum, approx=True)[:, None, :]

        # Output projection (E-major => Wo @ ctx), then residual; lane-dense store.
        out = jnp.dot(wo, ctx.reshape(E, L),
                      preferred_element_type=jnp.float32) + bo              # [E, L]
        o_ref[b] = (x + out).astype(o_ref.dtype)


def _single_tensorcore_chip():
    """True for known 1-TensorCore-per-chip parts (v5e / v6e)."""
    try:
        kind = jax.devices()[0].device_kind.lower()
    except Exception:
        return False
    return any(t in kind for t in ("v5 lite", "v5e", "v5litepod", "v6 lite", "v6e"))


def multi_head_attention(x, wq, wk, wv, wo, bq, bk, bv, bo, *, num_heads):
    """x: NCHW [B, C, H, W]; weights in PyTorch convention (row-space output dims)."""
    B, C, Hs, Ws = x.shape
    L = Hs * Ws
    x_ecl = x.reshape(B, C, L)                       # E-major [B, E, L], no transpose

    dh = C // num_heads
    scale = 1.0 / math.sqrt(dh)

    # Pre-fuse QKV weights/biases once (matches nn.MultiheadAttention's in_proj
    # layout) and fold the softmax scale into the Q rows (one-time, off the
    # kernel's hot path).
    w_qkv = jnp.concatenate([wq * scale, wk, wv], axis=0)            # [3E, E]
    b_qkv = jnp.concatenate([bq * scale, bk, bv], axis=0).reshape(3 * C, 1)
    bo_2d = bo.reshape(C, 1)

    # Single-TC chips (v5e/v6e): collapse the batch grid into one kernel step
    # (removes ~0.35 us/step fixed overhead on a few-us kernel). Multi-TC chips
    # (v7x): keep grid=(B,) "parallel" so each TensorCore takes one batch.
    nb = B if _single_tensorcore_chip() else 1
    grid = (B // nb,)

    kernel = functools.partial(_mha_kernel, num_heads=num_heads)
    full = lambda b: (0, 0)
    out = pl.pallas_call(
        kernel,
        out_shape=jax.ShapeDtypeStruct((B, C, L), x.dtype),
        grid=grid,
        in_specs=[
            pl.BlockSpec((nb, C, L), lambda b: (b, 0, 0)),   # x (E-major)
            pl.BlockSpec((3 * C, C), full),                  # fused Wqkv (Q pre-scaled)
            pl.BlockSpec((C, C), full),                      # Wo
            pl.BlockSpec((3 * C, 1), full),                  # fused bqkv (Q pre-scaled)
            pl.BlockSpec((C, 1), full),                      # bo
        ],
        out_specs=pl.BlockSpec((nb, C, L), lambda b: (b, 0, 0)),
        compiler_params=pltpu.CompilerParams(
            dimension_semantics=("parallel",)),
    )(x_ecl, w_qkv, wo, b_qkv, bo_2d)

    return out.reshape(B, C, Hs, Ws)


def _reference(x, wq, wk, wv, wo, bq, bk, bv, bo, *, num_heads):
    """Pure-JAX reference of the PyTorch forward (eval mode)."""
    B, C, H, W = x.shape
    L = H * W
    xq = x.reshape(B, C, L).transpose(0, 2, 1)                # [B, L, E]
    q = xq @ wq.T + bq
    k = xq @ wk.T + bk
    v = xq @ wv.T + bv
    dh = C // num_heads
    qh = q.reshape(B, L, num_heads, dh).transpose(0, 2, 1, 3)
    kh = k.reshape(B, L, num_heads, dh).transpose(0, 2, 1, 3)
    vh = v.reshape(B, L, num_heads, dh).transpose(0, 2, 1, 3)
    s = jnp.einsum('bhqd,bhkd->bhqk', qh, kh) / jnp.sqrt(dh).astype(jnp.float32)
    p = jax.nn.softmax(s, axis=-1)
    ctx = jnp.einsum('bhqk,bhkd->bhqd', p, vh)
    ctx = ctx.transpose(0, 2, 1, 3).reshape(B, L, C)
    out = xq + (ctx @ wo.T + bo)
    return out.transpose(0, 2, 1).reshape(B, C, H, W)


if __name__ == "__main__":
    # Module config: embed_dims=32, num_heads=4, dropout=0.0, use_residual=True
    embed_dims, num_heads = 32, 4
    B, H, W = 2, 16, 16

    key = jax.random.PRNGKey(0)
    kx, kw, kb = jax.random.split(key, 3)
    x = jax.random.normal(kx, (B, embed_dims, H, W), dtype=jnp.float32)

    # nn.MultiheadAttention params: in_proj_weight [3E, E], in_proj_bias [3E],
    # out_proj.weight [E, E], out_proj.bias [E] — deterministic synthetic init.
    kq, kk, kv, ko = jax.random.split(kw, 4)
    scale = 1.0 / math.sqrt(embed_dims)
    wq = jax.random.uniform(kq, (embed_dims, embed_dims), jnp.float32, -scale, scale)
    wk = jax.random.uniform(kk, (embed_dims, embed_dims), jnp.float32, -scale, scale)
    wv = jax.random.uniform(kv, (embed_dims, embed_dims), jnp.float32, -scale, scale)
    wo = jax.random.uniform(ko, (embed_dims, embed_dims), jnp.float32, -scale, scale)
    kbq, kbk, kbv, kbo = jax.random.split(kb, 4)
    bq = jax.random.normal(kbq, (embed_dims,), jnp.float32) * 0.02
    bk = jax.random.normal(kbk, (embed_dims,), jnp.float32) * 0.02
    bv = jax.random.normal(kbv, (embed_dims,), jnp.float32) * 0.02
    bo = jax.random.normal(kbo, (embed_dims,), jnp.float32) * 0.02

    out = multi_head_attention(x, wq, wk, wv, wo, bq, bk, bv, bo,
                               num_heads=num_heads)
    out = jax.block_until_ready(out)

    ref = _reference(x, wq, wk, wv, wo, bq, bk, bv, bo, num_heads=num_heads)
    assert out.shape == x.shape and out.dtype == x.dtype
    assert jnp.allclose(out, ref, atol=2e-3, rtol=2e-3), \
        f"max abs err {jnp.max(jnp.abs(out - ref))}"

    print("KERNEL_OK")
</pallas_src>

<mosaic_0001>
module attributes {stable_mosaic.version = 11 : i64} {
  func.func @_mha_kernel(%arg0: i32, %arg1: memref<1x32x256xf32, #tpu.memory_space<vmem>>, %arg2: memref<96x32xf32, #tpu.memory_space<vmem>>, %arg3: memref<32x32xf32, #tpu.memory_space<vmem>>, %arg4: memref<96x1xf32, #tpu.memory_space<vmem>>, %arg5: memref<32x1xf32, #tpu.memory_space<vmem>>, %arg6: memref<1x32x256xf32, #tpu.memory_space<vmem>>) attributes {dimension_semantics = [#tpu.dimension_semantics<parallel>], iteration_bounds = array<i64: 2>, scalar_prefetch = 0 : i64, scratch_operands = 0 : i64, tpu.core_type = #tpu.core_type<tc>, window_params = [{transform_indices = @transform_0, window_bounds = array<i64: 1, 32, 256>}, {pipeline_mode = #tpu.pipeline_mode<synchronous>, transform_indices = @transform_1, window_bounds = array<i64: 96, 32>}, {pipeline_mode = #tpu.pipeline_mode<synchronous>, transform_indices = @transform_2, window_bounds = array<i64: 32, 32>}, {pipeline_mode = #tpu.pipeline_mode<synchronous>, transform_indices = @transform_3, window_bounds = array<i64: 96, 1>}, {pipeline_mode = #tpu.pipeline_mode<synchronous>, transform_indices = @transform_4, window_bounds = array<i64: 32, 1>}, {transform_indices = @transform_5, window_bounds = array<i64: 1, 32, 256>}]} {
    %c0 = arith.constant 0 : index
    %c0_0 = arith.constant 0 : index
    %0 = vector.load %arg2[%c0, %c0_0] : memref<96x32xf32, #tpu.memory_space<vmem>>, vector<96x32xf32>
    %c0_1 = arith.constant 0 : index
    %c0_2 = arith.constant 0 : index
    %1 = vector.load %arg4[%c0_1, %c0_2] : memref<96x1xf32, #tpu.memory_space<vmem>>, vector<96x1xf32>
    %c0_3 = arith.constant 0 : index
    %c0_4 = arith.constant 0 : index
    %2 = vector.load %arg3[%c0_3, %c0_4] : memref<32x32xf32, #tpu.memory_space<vmem>>, vector<32x32xf32>
    %c0_5 = arith.constant 0 : index
    %c0_6 = arith.constant 0 : index
    %3 = vector.load %arg5[%c0_5, %c0_6] : memref<32x1xf32, #tpu.memory_space<vmem>>, vector<32x1xf32>
    %c0_7 = arith.constant 0 : index
    %c0_8 = arith.constant 0 : index
    %c0_9 = arith.constant 0 : index
    %4 = vector.load %arg1[%c0_7, %c0_8, %c0_9] : memref<1x32x256xf32, #tpu.memory_space<vmem>>, vector<1x32x256xf32>
    %5 = vector.shape_cast %4 : vector<1x32x256xf32> to vector<32x256xf32>
    %cst = arith.constant dense<0.000000e+00> : vector<96x256xf32>
    %6 = tpu.matmul %0, %5, %cst {dimension_numbers = #tpu.dot_dimension_numbers<[1], [0], [0], [1], [0, 0, 1, 1], [], []>} : vector<96x32xf32>, vector<32x256xf32>, vector<96x256xf32> -> vector<96x256xf32>
    %7 = vector.broadcast %1 : vector<96x1xf32> to vector<96x256xf32>
    %8 = arith.addf %6, %7 : vector<96x256xf32>
    %9 = vector.extract_strided_slice %8 {offsets = [0, 0], sizes = [32, 256], strides = [1, 1]} : vector<96x256xf32> to vector<32x256xf32>
    %10 = vector.shape_cast %9 : vector<32x256xf32> to vector<4x8x256xf32>
    %11 = vector.extract_strided_slice %8 {offsets = [32, 0], sizes = [32, 256], strides = [1, 1]} : vector<96x256xf32> to vector<32x256xf32>
    %12 = vector.shape_cast %11 : vector<32x256xf32> to vector<4x8x256xf32>
    %13 = vector.extract_strided_slice %8 {offsets = [64, 0], sizes = [32, 256], strides = [1, 1]} : vector<96x256xf32> to vector<32x256xf32>
    %14 = vector.shape_cast %13 : vector<32x256xf32> to vector<4x8x256xf32>
    %cst_10 = arith.constant dense<0.000000e+00> : vector<4x256x256xf32>
    %15 = tpu.matmul %12, %10, %cst_10 {dimension_numbers = #tpu.dot_dimension_numbers<[1], [1], [2], [2], [0, 0, 0, 2, 1, 2], [0], [0]>} : vector<4x8x256xf32>, vector<4x8x256xf32>, vector<4x256x256xf32> -> vector<4x256x256xf32>
    %cst_11 = arith.constant dense<0xFF800000> : vector<4x256xf32>
    %16 = vector.multi_reduction <maximumf>, %15, %cst_11 [1] : vector<4x256x256xf32> to vector<4x256xf32>
    %17 = vector.shape_cast %16 : vector<4x256xf32> to vector<4x1x256xf32>
    %18 = vector.broadcast %17 : vector<4x1x256xf32> to vector<4x256x256xf32>
    %19 = arith.subf %15, %18 : vector<4x256x256xf32>
    %20 = math.exp %19 : vector<4x256x256xf32>
    %cst_12 = arith.constant dense<0.000000e+00> : vector<4x256xf32>
    %21 = vector.multi_reduction <add>, %20, %cst_12 [1] : vector<4x256x256xf32> to vector<4x256xf32>
    %cst_13 = arith.constant dense<0.000000e+00> : vector<4x8x256xf32>
    %22 = tpu.matmul %14, %20, %cst_13 {dimension_numbers = #tpu.dot_dimension_numbers<[2], [1], [1], [2], [0, 0, 0, 1, 1, 2], [0], [0]>} : vector<4x8x256xf32>, vector<4x256x256xf32>, vector<4x8x256xf32> -> vector<4x8x256xf32>
    %23 = tpu.reciprocal %21 {approx = true} : vector<4x256xf32> -> vector<4x256xf32>
    %24 = vector.shape_cast %23 : vector<4x256xf32> to vector<4x1x256xf32>
    %25 = vector.broadcast %24 : vector<4x1x256xf32> to vector<4x8x256xf32>
    %26 = arith.mulf %22, %25 : vector<4x8x256xf32>
    %27 = vector.shape_cast %26 : vector<4x8x256xf32> to vector<32x256xf32>
    %cst_14 = arith.constant dense<0.000000e+00> : vector<32x256xf32>
    %28 = tpu.matmul %2, %27, %cst_14 {dimension_numbers = #tpu.dot_dimension_numbers<[1], [0], [0], [1], [0, 0, 1, 1], [], []>} : vector<32x32xf32>, vector<32x256xf32>, vector<32x256xf32> -> vector<32x256xf32>
    %29 = vector.broadcast %3 : vector<32x1xf32> to vector<32x256xf32>
    %30 = arith.addf %28, %29 : vector<32x256xf32>
    %31 = arith.addf %5, %30 : vector<32x256xf32>
    %c0_15 = arith.constant 0 : index
    %c0_16 = arith.constant 0 : index
    %c0_17 = arith.constant 0 : index
    %32 = vector.load %arg6[%c0_15, %c0_16, %c0_17] : memref<1x32x256xf32, #tpu.memory_space<vmem>>, vector<1x32x256xf32>
    %33 = vector.shape_cast %32 : vector<1x32x256xf32> to vector<32x256xf32>
    %34 = vector.shape_cast %31 : vector<32x256xf32> to vector<1x32x256xf32>
    tpu.vector_store %arg6[%c0_15, %c0_16, %c0_17], %34 {strides = array<i32>} : memref<1x32x256xf32, #tpu.memory_space<vmem>>, vector<1x32x256xf32>,
    return
  }
  func.func @transform_0(%arg0: i32) -> (i32, i32, i32) {
    %c0_i32 = arith.constant 0 : i32
    %c0_i32_0 = arith.constant 0 : i32
    %c0_i32_1 = arith.constant 0 : i32
    return %arg0, %c0_i32, %c0_i32_0 : i32, i32, i32
  }
  func.func @transform_1(%arg0: i32) -> (i32, i32) {
    %c0_i32 = arith.constant 0 : i32
    %c0_i32_0 = arith.constant 0 : i32
    %c0_i32_1 = arith.constant 0 : i32
    return %c0_i32, %c0_i32_0 : i32, i32
  }
  func.func @transform_2(%arg0: i32) -> (i32, i32) {
    %c0_i32 = arith.constant 0 : i32
    %c0_i32_0 = arith.constant 0 : i32
    %c0_i32_1 = arith.constant 0 : i32
    return %c0_i32, %c0_i32_0 : i32, i32
  }
  func.func @transform_3(%arg0: i32) -> (i32, i32) {
    %c0_i32 = arith.constant 0 : i32
    %c0_i32_0 = arith.constant 0 : i32
    %c0_i32_1 = arith.constant 0 : i32
    return %c0_i32, %c0_i32_0 : i32, i32
  }
  func.func @transform_4(%arg0: i32) -> (i32, i32) {
    %c0_i32 = arith.constant 0 : i32
    %c0_i32_0 = arith.constant 0 : i32
    %c0_i32_1 = arith.constant 0 : i32
    return %c0_i32, %c0_i32_0 : i32, i32
  }
  func.func @transform_5(%arg0: i32) -> (i32, i32, i32) {
    %c0_i32 = arith.constant 0 : i32
    %c0_i32_0 = arith.constant 0 : i32
    %c0_i32_1 = arith.constant 0 : i32
    return %arg0, %c0_i32, %c0_i32_0 : i32, i32, i32
  }
}

</mosaic_0001>

<llo_original>
// kernel: tpu_custom_call.1
$region0: #{tpu_custom_call.1}
  #allocation0 [shape = 'u32[]', space=smem, size = 0x4, offset = 0x4, fixed_abs, tag = 'smem constant byte address 0x4 - core index']
  #allocation1 [shape = 'u32[144,128]{1,0:T(1,128)}', space=vmem, size = 0x12000, scoped, tag = 'internal scratch']
  %s0 = inlined_call_operand.vmem [shape: f32[2,32,256], index: 0, kind: input, shape index: {}]
  %s1 = inlined_call_operand.vmem [shape: f32[96,32], index: 1, kind: input, shape index: {}]
  %s2 = inlined_call_operand.vmem [shape: f32[32,32], index: 2, kind: input, shape index: {}]
  %s3 = inlined_call_operand.vmem [shape: f32[96,1], index: 3, kind: input, shape index: {}]
  %s4 = inlined_call_operand.vmem [shape: f32[32,1], index: 4, kind: input, shape index: {}]
  %s5 = inlined_call_operand.hbm [shape: f32[2,32,256], index: 5, kind: output, shape index: {}]
  %s6 = sld [smem:[#allocation0]]
  $region53: #{tpu_custom_call.1} parent=0
    _
  %s8 = ssub.s32 1, %s6
  %s9 = scalar_select 0, %s8, %s6
  $region1: #{tpu_custom_call.1} parent=0
    #allocation2 [shape = 'u8[65536]{0}', space=vmem, size = 0x10000, scoped, tag = 'output window, operand 0']
    #allocation3 [shape = 's32[2]{0}', space=sflag, size = 0x8, scoped, tag = 'scoped memory for tpu_custom_call.1']
    %10 = vsyncpa [#allocation3], 0
    %s11 = scalar_lea.sflag [#allocation3], 1
    %12 = vsyncpa %s11, 0
    loop: start=0, step=1, limit=4
    $region2: #{tpu_custom_call.1} parent=1 // loop_pre_header
      _
    $region3: #{tpu_custom_call.1} parent=1 // loop_header
      %s14 = sphi 0, %s18
      %p15 = scmp.ge.s32.totalorder %s14, 4
      %s24 = sphi 0, %s26
      %s27 = sphi 0, %s24
      %s28 = sphi 0, %s27
      %s44 = sphi 0, %s28
      %s48 = sphi 0, %s48
      %s50 = sphi 0, %s48
      %s51 = sphi 0, %s50
      %s65 = sphi 0, %s51
      %s69 = sphi 0, %s69
      %s71 = sphi 0, %s69
      %s72 = sphi 0, %s71
      %s86 = sphi 0, %s72
      %s90 = sphi 0, %s90
      %s92 = sphi 0, %s90
      %s93 = sphi 0, %s92
      %s107 = sphi 0, %s93
      %s111 = sphi 0, %s111
      %s113 = sphi 0, %s111
      %s114 = sphi 0, %s113
      %s128 = sphi 0, %s114
      %s134 = sphi 0, %s136
      %s137 = sphi 0, %s134
      %s138 = sphi 0, %s137
      %s154 = sphi 0, %s138
    $region4: #{tpu_custom_call.1} parent=1 // loop_header_branch
      %17 = sbr.rel (%p15) target = $region8
    $region5: #{tpu_custom_call.1} parent=1 // loop_body
      %s19 = ssub.s32 %s14, 1
      %s20 = ssub.s32 %s14, 2
      %s21 = sadd.s32 %s14, 1
      %s22 = ssub.s32 %s14, %s21
      %p23 = scmp.eq.s32.totalorder %s22, 0
      %s25 = sadd.s32 %s24, 1
      %s26 = scalar_select %p23, %s24, %s25
      %p29 = pneg %p23
      %p30 = scmp.eq.s32.totalorder %s14, 1
      %p31 = por %p29, %p30
      %p32 = scmp.ne.s32.totalorder %s24, %s27
      %p33 = scmp.eq.s32.totalorder %s14, 0
      %p34 = por %p32, %p33
      %p35 = scmp.ne.s32.totalorder %s24, %s27
      %p36 = scmp.eq.s32.totalorder %s19, 1
      %p37 = por %p35, %p36
      %p38 = scmp.ne.s32.totalorder %s27, %s28
      %p39 = scmp.eq.s32.totalorder %s19, 0
      %p40 = por %p38, %p39
      %p41 = scmp.ne.s32.totalorder %s27, %s28
      %p42 = scmp.eq.s32.totalorder %s20, 1
      %p43 = por %p41, %p42
      %p45 = scmp.ne.s32.totalorder %s28, %s44
      %p46 = scmp.eq.s32.totalorder %s20, 0
      %p47 = por %p45, %p46
      %s49 = sadd.s32 %s48, 1
      %p52 = scmp.eq.s32.totalorder %s14, 1
      %p53 = scmp.ne.s32.totalorder %s48, %s50
      %p54 = scmp.eq.s32.totalorder %s14, 0
      %p55 = por %p53, %p54
      %p56 = scmp.ne.s32.totalorder %s48, %s50
      %p57 = scmp.eq.s32.totalorder %s19, 1
      %p58 = por %p56, %p57
      %p59 = scmp.ne.s32.totalorder %s50, %s51
      %p60 = scmp.eq.s32.totalorder %s19, 0
      %p61 = por %p59, %p60
      %p62 = scmp.ne.s32.totalorder %s50, %s51
      %p63 = scmp.eq.s32.totalorder %s20, 1
      %p64 = por %p62, %p63
      %p66 = scmp.ne.s32.totalorder %s51, %s65
      %p67 = scmp.eq.s32.totalorder %s20, 0
      %p68 = por %p66, %p67
      %s70 = sadd.s32 %s69, 1
      %p73 = scmp.eq.s32.totalorder %s14, 1
      %p74 = scmp.ne.s32.totalorder %s69, %s71
      %p75 = scmp.eq.s32.totalorder %s14, 0
      %p76 = por %p74, %p75
      %p77 = scmp.ne.s32.totalorder %s69, %s71
      %p78 = scmp.eq.s32.totalorder %s19, 1
      %p79 = por %p77, %p78
      %p80 = scmp.ne.s32.totalorder %s71, %s72
      %p81 = scmp.eq.s32.totalorder %s19, 0
      %p82 = por %p80, %p81
      %p83 = scmp.ne.s32.totalorder %s71, %s72
      %p84 = scmp.eq.s32.totalorder %s20, 1
      %p85 = por %p83, %p84
      %p87 = scmp.ne.s32.totalorder %s72, %s86
      %p88 = scmp.eq.s32.totalorder %s20, 0
      %p89 = por %p87, %p88
      %s91 = sadd.s32 %s90, 1
      %p94 = scmp.eq.s32.totalorder %s14, 1
      %p95 = scmp.ne.s32.totalorder %s90, %s92
      %p96 = scmp.eq.s32.totalorder %s14, 0
      %p97 = por %p95, %p96
      %p98 = scmp.ne.s32.totalorder %s90, %s92
      %p99 = scmp.eq.s32.totalorder %s19, 1
      %p100 = por %p98, %p99
      %p101 = scmp.ne.s32.totalorder %s92, %s93
      %p102 = scmp.eq.s32.totalorder %s19, 0
      %p103 = por %p101, %p102
      %p104 = scmp.ne.s32.totalorder %s92, %s93
      %p105 = scmp.eq.s32.totalorder %s20, 1
      %p106 = por %p104, %p105
      %p108 = scmp.ne.s32.totalorder %s93, %s107
      %p109 = scmp.eq.s32.totalorder %s20, 0
      %p110 = por %p108, %p109
      %s112 = sadd.s32 %s111, 1
      %p115 = scmp.eq.s32.totalorder %s14, 1
      %p116 = scmp.ne.s32.totalorder %s111, %s113
      %p117 = scmp.eq.s32.totalorder %s14, 0
      %p118 = por %p116, %p117
      %p119 = scmp.ne.s32.totalorder %s111, %s113
      %p120 = scmp.eq.s32.totalorder %s19, 1
      %p121 = por %p119, %p120
      %p122 = scmp.ne.s32.totalorder %s113, %s114
      %p123 = scmp.eq.s32.totalorder %s19, 0
      %p124 = por %p122, %p123
      %p125 = scmp.ne.s32.totalorder %s113, %s114
      %p126 = scmp.eq.s32.totalorder %s20, 1
      %p127 = por %p125, %p126
      %p129 = scmp.ne.s32.totalorder %s114, %s128
      %p130 = scmp.eq.s32.totalorder %s20, 0
      %p131 = por %p129, %p130
      %s132 = ssub.s32 %s14, %s21
      %p133 = scmp.eq.s32.totalorder %s132, 0
      %s135 = sadd.s32 %s134, 1
      %s136 = scalar_select %p133, %s134, %s135
      %p139 = pneg %p133
      %p140 = scmp.eq.s32.totalorder %s14, 1
      %p141 = por %p139, %p140
      %p142 = scmp.ne.s32.totalorder %s134, %s137
      %p143 = scmp.eq.s32.totalorder %s14, 0
      %p144 = por %p142, %p143
      %p145 = scmp.ne.s32.totalorder %s134, %s137
      %p146 = scmp.eq.s32.totalorder %s19, 1
      %p147 = por %p145, %p146
      %p148 = scmp.ne.s32.totalorder %s137, %s138
      %p149 = scmp.eq.s32.totalorder %s19, 0
      %p150 = por %p148, %p149
      %p151 = scmp.ne.s32.totalorder %s137, %s138
      %p152 = scmp.eq.s32.totalorder %s20, 1
      %p153 = por %p151, %p152
      %p155 = scmp.ne.s32.totalorder %s138, %s154
      %p156 = scmp.eq.s32.totalorder %s20, 0
      %p157 = por %p155, %p156
      %p158 = scmp.le.s32.totalorder 1, %s14
      %p159 = scmp.lt.s32.totalorder %s14, 3
      %p160 = pnand %p158, %p159
      %p161 = pneg %p160
      // Predicated region
      $region9: #{tpu_custom_call.1} parent=5 // pred_check
        _
      $region10: #{tpu_custom_call.1} parent=5 // pred_check_branch
        %163 = sbr.rel (%p160) target = $region12
      $region11: #{tpu_custom_call.1} parent=5 // pred_region
        %s164 = ssub.s32 %s14, 1
        // Predicated region
        $region13: #{tpu_custom_call.1} parent=11 // pred_check
          %p165 = pneg %p61
        $region14: #{tpu_custom_call.1} parent=11 // pred_check_branch
          %167 = sbr.rel (%p165) target = $region16
        $region15: #{tpu_custom_call.1} parent=11 // pred_region
          _
        $region16: #{tpu_custom_call.1} parent=11 // pred_fallthru
          _
        // Predicated region
        $region17: #{tpu_custom_call.1} parent=11 // pred_check
          %p168 = pneg %p82
        $region18: #{tpu_custom_call.1} parent=11 // pred_check_branch
          %170 = sbr.rel (%p168) target = $region20
        $region19: #{tpu_custom_call.1} parent=11 // pred_region
          _
        $region20: #{tpu_custom_call.1} parent=11 // pred_fallthru
          _
        // Predicated region
        $region21: #{tpu_custom_call.1} parent=11 // pred_check
          %p171 = pneg %p103
        $region22: #{tpu_custom_call.1} parent=11 // pred_check_branch
          %173 = sbr.rel (%p171) target = $region24
        $region23: #{tpu_custom_call.1} parent=11 // pred_region
          _
        $region24: #{tpu_custom_call.1} parent=11 // pred_fallthru
          _
        // Predicated region
        $region25: #{tpu_custom_call.1} parent=11 // pred_check
          %p174 = pneg %p124
        $region26: #{tpu_custom_call.1} parent=11 // pred_check_branch
          %176 = sbr.rel (%p174) target = $region28
        $region27: #{tpu_custom_call.1} parent=11 // pred_region
          _
        $region28: #{tpu_custom_call.1} parent=11 // pred_fallthru
          _
      $region12: #{tpu_custom_call.1} parent=5 // pred_fallthru
        _
      %p177 = scmp.lt.s32.totalorder %s14, 2
      // Predicated region
      $region29: #{tpu_custom_call.1} parent=5 // pred_check
        %p178 = pneg %p177
      $region30: #{tpu_custom_call.1} parent=5 // pred_check_branch
        %180 = sbr.rel (%p178) target = $region32
      $region31: #{tpu_custom_call.1} parent=5 // pred_region
        // Predicated region
        $region33: #{tpu_custom_call.1} parent=31 // pred_check
          %p181 = pneg %p34
        $region34: #{tpu_custom_call.1} parent=31 // pred_check_branch
          %183 = sbr.rel (%p181) target = $region36
        $region35: #{tpu_custom_call.1} parent=31 // pred_region
          %p184 = scmp.lt.s32.totalorder %s14, 1
          %s185 = scalar_select %p184, %s14, 1
          %s186 = smul.addr %s185, 8
          %s187 = smul.addr %s186, 8
          %s188 = scalar_lea.vmem %s0, %s187
        $region36: #{tpu_custom_call.1} parent=31 // pred_fallthru
          _
      $region32: #{tpu_custom_call.1} parent=5 // pred_fallthru
        _
      %p189 = scmp.le.s32.totalorder 1, %s14
      %p190 = scmp.lt.s32.totalorder %s14, 3
      %p191 = pnand %p189, %p190
      %p192 = pneg %p191
      // Predicated region
      $region37: #{tpu_custom_call.1} parent=5 // pred_check
        _
      $region38: #{tpu_custom_call.1} parent=5 // pred_check_branch
        %194 = sbr.rel (%p191) target = $region40
      $region39: #{tpu_custom_call.1} parent=5 // pred_region
        %s195 = ssub.s32 %s14, 1
        %p196 = scmp.lt.s32.totalorder %s19, 1
        %s197 = scalar_select %p196, %s19, 1
        %s198 = smul.addr %s197, 8
        %s199 = smul.addr %s198, 8
        %s200 = scalar_lea.vmem %s0, %s199
        %p201 = pneg %p40
        %p202 = pneg %p37
        %p203 = pneg %p61
        %p204 = pneg %p58
        %p205 = pneg %p82
        %p206 = pneg %p79
        %p207 = pneg %p103
        %p208 = pneg %p100
        %p209 = pneg %p124
        %p210 = pneg %p121
        %p211 = pneg %p150
        %p212 = pneg %p147
        %s213 = sand.u32 %s137, 1
        %s214 = scalar_lea.sflag [#allocation3], %s213
        %s215 = sand.u32 %s137, 1
        %s216 = smul.addr %s215, 64
        %s217 = scalar_lea.vmem [#allocation2], %s216
        %p218 = scmp.lt.s32.totalorder %s19, 1
        %s219 = scalar_select %p218, %s19, 1
        %s220 = smul.addr %s219, 8
        %s221 = smul.addr %s220, 8
        %s222 = scalar_lea.vmem %s0, %s221
        %v223 = vld [vmem:[%s1] sm:$0xff]
        %v224 = vld [vmem:[%s1 + $0x8] sm:$0xff]
        %v225 = vld [vmem:[%s1 + $0x10] sm:$0xff]
        %v226 = vld [vmem:[%s1 + $0x18] sm:$0xff]
        %v227 = vld [vmem:[%s1 + $0x20] sm:$0xff]
        %v228 = vld [vmem:[%s1 + $0x28] sm:$0xff]
        %v229 = vld [vmem:[%s1 + $0x30] sm:$0xff]
        %v230 = vld [vmem:[%s1 + $0x38] sm:$0xff]
        %v231 = vld [vmem:[%s1 + $0x40] sm:$0xff]
        %v232 = vld [vmem:[%s1 + $0x48] sm:$0xff]
        %v233 = vld [vmem:[%s1 + $0x50] sm:$0xff]
        %v234 = vld [vmem:[%s1 + $0x58] sm:$0xff]
        %v235 = vld [vmem:[%s3] sm:$0xff]
        %v236 = vld [vmem:[%s3 + $0x8] sm:$0xff]
        %v237 = vld [vmem:[%s3 + $0x10] sm:$0xff]
        %v238 = vld [vmem:[%s3 + $0x18] sm:$0xff]
        %v239 = vld [vmem:[%s3 + $0x20] sm:$0xff]
        %v240 = vld [vmem:[%s3 + $0x28] sm:$0xff]
        %v241 = vld [vmem:[%s3 + $0x30] sm:$0xff]
        %v242 = vld [vmem:[%s3 + $0x38] sm:$0xff]
        %v243 = vld [vmem:[%s3 + $0x40] sm:$0xff]
        %v244 = vld [vmem:[%s3 + $0x48] sm:$0xff]
        %v245 = vld [vmem:[%s3 + $0x50] sm:$0xff]
        %v246 = vld [vmem:[%s3 + $0x58] sm:$0xff]
        %v247 = vld [vmem:[%s2] sm:$0xff]
        %v248 = vld [vmem:[%s2 + $0x8] sm:$0xff]
        %v249 = vld [vmem:[%s2 + $0x10] sm:$0xff]
        %v250 = vld [vmem:[%s2 + $0x18] sm:$0xff]
        %v251 = vld [vmem:[%s4] sm:$0xff]
        %v252 = vld [vmem:[%s4 + $0x8] sm:$0xff]
        %v253 = vld [vmem:[%s4 + $0x10] sm:$0xff]
        %v254 = vld [vmem:[%s4 + $0x18] sm:$0xff]
        %v255 = vld [vmem:[%s222] sm:$0xff]
        %v256 = vld [vmem:[%s222 + $0x8] sm:$0xff]
        %v257 = vld [vmem:[%s222 + $0x10] sm:$0xff]
        %v258 = vld [vmem:[%s222 + $0x18] sm:$0xff]
        %v259 = vld [vmem:[%s222 + $0x20] sm:$0xff]
        %v260 = vld [vmem:[%s222 + $0x28] sm:$0xff]
        %v261 = vld [vmem:[%s222 + $0x30] sm:$0xff]
        %v262 = vld [vmem:[%s222 + $0x38] sm:$0xff]
        %264 = vset.pattern.permute.xlu0 0
        %265 = vperm.xlu0 %264, %v235
        %v266 = vpop.permute.xlu0 %265
        %269 = vset.pattern.permute.xlu0 0
        %270 = vperm.xlu0 %269, %v236
        %v271 = vpop.permute.xlu0 %270
        %274 = vset.pattern.permute.xlu0 0
        %275 = vperm.xlu0 %274, %v237
        %v276 = vpop.permute.xlu0 %275
        %279 = vset.pattern.permute.xlu0 0
        %280 = vperm.xlu0 %279, %v238
        %v281 = vpop.permute.xlu0 %280
        %284 = vset.pattern.permute.xlu0 0
        %285 = vperm.xlu0 %284, %v239
        %v286 = vpop.permute.xlu0 %285
        %289 = vset.pattern.permute.xlu0 0
        %290 = vperm.xlu0 %289, %v240
        %v291 = vpop.permute.xlu0 %290
        %294 = vset.pattern.permute.xlu0 0
        %295 = vperm.xlu0 %294, %v241
        %v296 = vpop.permute.xlu0 %295
        %299 = vset.pattern.permute.xlu0 0
        %300 = vperm.xlu0 %299, %v242
        %v301 = vpop.permute.xlu0 %300
        %304 = vset.pattern.permute.xlu0 0
        %305 = vperm.xlu0 %304, %v243
        %v306 = vpop.permute.xlu0 %305
        %309 = vset.pattern.permute.xlu0 0
        %310 = vperm.xlu0 %309, %v244
        %v311 = vpop.permute.xlu0 %310
        %314 = vset.pattern.permute.xlu0 0
        %315 = vperm.xlu0 %314, %v245
        %v316 = vpop.permute.xlu0 %315
        %319 = vset.pattern.permute.xlu0 0
        %320 = vperm.xlu0 %319, %v246
        %v321 = vpop.permute.xlu0 %320
        %vm323 = vcmask 261120
        %v325 = vsel %vm323, %v223, 0
        %v328 = vsel %vm323, %v224, 0
        %v331 = vsel %vm323, %v225, 0
        %v334 = vsel %vm323, %v226, 0
        %v337 = vsel %vm323, %v227, 0
        %v340 = vsel %vm323, %v228, 0
        %v343 = vsel %vm323, %v229, 0
        %v346 = vsel %vm323, %v230, 0
        %v349 = vsel %vm323, %v231, 0
        %v352 = vsel %vm323, %v232, 0
        %v355 = vsel %vm323, %v233, 0
        %v358 = vsel %vm323, %v234, 0
        %360 = vmatprep.subr.mxu0 %v256
        %361 = vmatpush1.msra.mxu0 %v255
        %362 = vmatprep.subr.mxu0 %v258
        %363 = vmatpush1.msra.mxu0 %v257
        %364 = vmatprep.subr.mxu0 %v260
        %365 = vmatpush1.msra.mxu0 %v259
        %366 = vmatprep.subr.mxu0 %v262
        %367 = vmatpush1.msra.mxu0 %v261
        %368 = vmatprep.subr.mxu0 0.0
        %369 = vmatpush1.msra.mxu0 0.0
        %370 = vmatprep.subr.mxu0 0.0
        %371 = vmatpush1.msra.mxu0 0.0
        %372 = vmatprep.subr.mxu0 0.0
        %373 = vmatpush1.msra.mxu0 0.0
        %374 = vmatprep.subr.mxu0 0.0
        %375 = vmatpush1.msra.mxu0 0.0
        %376 = vmatprep.subr.mxu0 0.0
        %377 = vmatpush1.msra.mxu0 0.0
        %378 = vmatprep.subr.mxu0 0.0
        %379 = vmatpush1.msra.mxu0 0.0
        %380 = vmatprep.subr.mxu0 0.0
        %381 = vmatpush1.msra.mxu0 0.0
        %382 = vmatprep.subr.mxu0 0.0
        %383 = vmatpush1.msra.mxu0 0.0
        %384 = vmatprep.subr.mxu0 0.0
        %385 = vmatpush1.msra.mxu0 0.0
        %386 = vmatprep.subr.mxu0 0.0
        %387 = vmatpush1.msra.mxu0 0.0
        %388 = vmatprep.subr.mxu0 0.0
        %389 = vmatpush1.msra.mxu0 0.0
        %390 = vmatprep.subr.mxu0 0.0
        %391 = vmatpush1.msra.mxu0 0.0
        %392 = vmatprep.subr.mxu0 0.0
        %393 = vmatpush1.msra.mxu0 0.0
        %394 = vmatprep.subr.mxu0 0.0
        %395 = vmatpush1.msra.mxu0 0.0
        %396 = vmatprep.subr.mxu0 0.0
        %397 = vmatpush1.msra.mxu0 0.0
        %398 = vmatprep.subr.mxu0 0.0
        %399 = vmatpush1.msra.mxu0 0.0
        %400 = vmatprep.subr.mxu0 0.0
        %401 = vmatpush1.msra.mxu0 0.0
        %402 = vmatprep.subr.mxu0 0.0
        %403 = vmatpush1.msra.mxu0 0.0
        %404 = vmatprep.subr.mxu0 0.0
        %405 = vmatpush1.msra.mxu0 0.0
        %406 = vmatprep.subr.mxu0 0.0
        %407 = vmatpush1.msra.mxu0 0.0
        %408 = vmatprep.subr.mxu0 0.0
        %409 = vmatpush1.msra.mxu0 0.0
        %410 = vmatprep.subr.mxu0 0.0
        %411 = vmatpush1.msra.mxu0 0.0
        %412 = vmatprep.subr.mxu0 0.0
        %413 = vmatpush1.msra.mxu0 0.0
        %414 = vmatprep.subr.mxu0 0.0
        %415 = vmatpush1.msra.mxu0 0.0
        %416 = vmatprep.subr.mxu0 0.0
        %417 = vmatpush1.msra.mxu0 0.0
        %418 = vmatprep.subr.mxu0 0.0
        %419 = vmatpush1.msra.mxu0 0.0
        %420 = vmatprep.subr.mxu0 0.0
        %421 = vmatpush1.msra.mxu0 0.0
        %422 = vmatprep.subr.mxu0 0.0
        %423 = vmatpush1.msra.mxu0 0.0
        %424 = vmatprep.mubr.f32.mxu0 0.0
        %425 = vmatmul.mubr.f32.gmra.mrb[0].mxu0 %v325
        %v426 = vpop.f32.mrb[0].mxu0
        %v427 = vadd.f32 %v266, %v426
        %v428 = vpop.f32.mrb[0].mxu0
        %v429 = vadd.f32 %v266, %v428
        %430 = vmatprep.mubr.f32.mxu0 0.0
        %431 = vmatmul.mubr.f32.gmra.mrb[0].mxu0 %v328
        %v432 = vpop.f32.mrb[0].mxu0
        %v433 = vadd.f32 %v271, %v432
        %v434 = vpop.f32.mrb[0].mxu0
        %v435 = vadd.f32 %v271, %v434
        %436 = vmatprep.mubr.f32.mxu0 0.0
        %437 = vmatmul.mubr.f32.gmra.mrb[0].mxu0 %v331
        %v438 = vpop.f32.mrb[0].mxu0
        %v439 = vadd.f32 %v276, %v438
        %v440 = vpop.f32.mrb[0].mxu0
        %v441 = vadd.f32 %v276, %v440
        %442 = vmatprep.mubr.f32.mxu0 0.0
        %443 = vmatmul.mubr.f32.gmra.mrb[0].mxu0 %v334
        %v444 = vpop.f32.mrb[0].mxu0
        %v445 = vadd.f32 %v281, %v444
        %v446 = vpop.f32.mrb[0].mxu0
        %v447 = vadd.f32 %v281, %v446
        %448 = vmatprep.mubr.f32.mxu0 0.0
        %449 = vmatmul.mubr.f32.gmra.mrb[0].mxu0 %v337
        %v450 = vpop.f32.mrb[0].mxu0
        %v451 = vadd.f32 %v286, %v450
        %v452 = vpop.f32.mrb[0].mxu0
        %v453 = vadd.f32 %v286, %v452
        %454 = vmatprep.mubr.f32.mxu0 0.0
        %455 = vmatmul.mubr.f32.gmra.mrb[0].mxu0 %v340
        %v456 = vpop.f32.mrb[0].mxu0
        %v457 = vadd.f32 %v291, %v456
        %v458 = vpop.f32.mrb[0].mxu0
        %v459 = vadd.f32 %v291, %v458
        %460 = vmatprep.mubr.f32.mxu0 0.0
        %461 = vmatmul.mubr.f32.gmra.mrb[0].mxu0 %v343
        %v462 = vpop.f32.mrb[0].mxu0
        %v463 = vadd.f32 %v296, %v462
        %v464 = vpop.f32.mrb[0].mxu0
        %v465 = vadd.f32 %v296, %v464
        %466 = vmatprep.mubr.f32.mxu0 0.0
        %467 = vmatmul.mubr.f32.gmra.mrb[0].mxu0 %v346
        %v468 = vpop.f32.mrb[0].mxu0
        %v469 = vadd.f32 %v301, %v468
        %v470 = vpop.f32.mrb[0].mxu0
        %v471 = vadd.f32 %v301, %v470
        %472 = vmatprep.mubr.f32.mxu0 0.0
        %473 = vmatmul.mubr.f32.gmra.mrb[0].mxu0 %v349
        %v474 = vpop.f32.mrb[0].mxu0
        %v475 = vadd.f32 %v306, %v474
        %v476 = vpop.f32.mrb[0].mxu0
        %v477 = vadd.f32 %v306, %v476
        %478 = vmatprep.mubr.f32.mxu0 0.0
        %479 = vmatmul.mubr.f32.gmra.mrb[0].mxu0 %v352
        %v480 = vpop.f32.mrb[0].mxu0
        %v481 = vadd.f32 %v311, %v480
        %v482 = vpop.f32.mrb[0].mxu0
        %v483 = vadd.f32 %v311, %v482
        %484 = vmatprep.mubr.f32.mxu0 0.0
        %485 = vmatmul.mubr.f32.gmra.mrb[0].mxu0 %v355
        %v486 = vpop.f32.mrb[0].mxu0
        %v487 = vadd.f32 %v316, %v486
        %v488 = vpop.f32.mrb[0].mxu0
        %v489 = vadd.f32 %v316, %v488
        %490 = vmatprep.mubr.f32.mxu0 0.0
        %491 = vmatmul.mubr.f32.gmra.mrb[0].mxu0 %v358
        %v492 = vpop.f32.mrb[0].mxu0
        %v493 = vadd.f32 %v321, %v492
        %v494 = vpop.f32.mrb[0].mxu0
        %v495 = vadd.f32 %v321, %v494
        %496 = vdwg.mxu0
        %497 = vxpose.xlu0.b32.start [1/16] %v451, 128
        %498 = vxpose.xlu0.b32.cont [2/16] 0.0, 128
        %499 = vxpose.xlu0.b32.cont [3/16] 0.0, 128
        %500 = vxpose.xlu0.b32.cont [4/16] 0.0, 128
        %501 = vxpose.xlu0.b32.cont [5/16] 0.0, 128
        %502 = vxpose.xlu0.b32.cont [6/16] 0.0, 128
        %503 = vxpose.xlu0.b32.cont [7/16] 0.0, 128
        %504 = vxpose.xlu0.b32.cont [8/16] 0.0, 128
        %505 = vxpose.xlu0.b32.cont [9/16] 0.0, 128
        %506 = vxpose.xlu0.b32.cont [10/16] 0.0, 128
        %507 = vxpose.xlu0.b32.cont [11/16] 0.0, 128
        %508 = vxpose.xlu0.b32.cont [12/16] 0.0, 128
        %509 = vxpose.xlu0.b32.cont [13/16] 0.0, 128
        %510 = vxpose.xlu0.b32.cont [14/16] 0.0, 128
        %511 = vxpose.xlu0.b32.cont [15/16] 0.0, 128
        %512 = vxpose.xlu0.b32.end [16/16] 0.0, 128
        %v513 = vpop.trf.xlu0
        %v514 = vpop.trf.xlu0
        %v515 = vpop.trf.xlu0
        %v516 = vpop.trf.xlu0
        %v517 = vpop.trf.xlu0
        %v518 = vpop.trf.xlu0
        %v519 = vpop.trf.xlu0
        %v520 = vpop.trf.xlu0
        %v521 = vpop.trf.xlu0
        %v522 = vpop.trf.xlu0
        %v523 = vpop.trf.xlu0
        %v524 = vpop.trf.xlu0
        %v525 = vpop.trf.xlu0
        %v526 = vpop.trf.xlu0
        %v527 = vpop.trf.xlu0
        %v528 = vpop.trf.xlu0
        %529 = vxpose.xlu0.b32.start [1/16] %v453, 128
        %530 = vxpose.xlu0.b32.cont [2/16] 0.0, 128
        %531 = vxpose.xlu0.b32.cont [3/16] 0.0, 128
        %532 = vxpose.xlu0.b32.cont [4/16] 0.0, 128
        %533 = vxpose.xlu0.b32.cont [5/16] 0.0, 128
        %534 = vxpose.xlu0.b32.cont [6/16] 0.0, 128
        %535 = vxpose.xlu0.b32.cont [7/16] 0.0, 128
        %536 = vxpose.xlu0.b32.cont [8/16] 0.0, 128
        %537 = vxpose.xlu0.b32.cont [9/16] 0.0, 128
        %538 = vxpose.xlu0.b32.cont [10/16] 0.0, 128
        %539 = vxpose.xlu0.b32.cont [11/16] 0.0, 128
        %540 = vxpose.xlu0.b32.cont [12/16] 0.0, 128
        %541 = vxpose.xlu0.b32.cont [13/16] 0.0, 128
        %542 = vxpose.xlu0.b32.cont [14/16] 0.0, 128
        %543 = vxpose.xlu0.b32.cont [15/16] 0.0, 128
        %544 = vxpose.xlu0.b32.end [16/16] 0.0, 128
        %v545 = vpop.trf.xlu0
        %v546 = vpop.trf.xlu0
        %v547 = vpop.trf.xlu0
        %v548 = vpop.trf.xlu0
        %v549 = vpop.trf.xlu0
        %v550 = vpop.trf.xlu0
        %v551 = vpop.trf.xlu0
        %v552 = vpop.trf.xlu0
        %v553 = vpop.trf.xlu0
        %v554 = vpop.trf.xlu0
        %v555 = vpop.trf.xlu0
        %v556 = vpop.trf.xlu0
        %v557 = vpop.trf.xlu0
        %v558 = vpop.trf.xlu0
        %v559 = vpop.trf.xlu0
        %v560 = vpop.trf.xlu0
        %vm561 = vcmask 64512
        %v563 = vsel %vm561, %v513, 0
        %v566 = vsel %vm561, %v514, 0
        %v569 = vsel %vm561, %v515, 0
        %v572 = vsel %vm561, %v516, 0
        %v575 = vsel %vm561, %v517, 0
        %v578 = vsel %vm561, %v518, 0
        %v581 = vsel %vm561, %v519, 0
        %v584 = vsel %vm561, %v520, 0
        %v587 = vsel %vm561, %v521, 0
        %v590 = vsel %vm561, %v522, 0
        %v593 = vsel %vm561, %v523, 0
        %v596 = vsel %vm561, %v524, 0
        %v599 = vsel %vm561, %v525, 0
        %v602 = vsel %vm561, %v526, 0
        %v605 = vsel %vm561, %v527, 0
        %v608 = vsel %vm561, %v528, 0
        %v611 = vsel %vm561, %v545, 0
        %v614 = vsel %vm561, %v546, 0
        %v617 = vsel %vm561, %v547, 0
        %v620 = vsel %vm561, %v548, 0
        %v623 = vsel %vm561, %v549, 0
        %v626 = vsel %vm561, %v550, 0
        %v629 = vsel %vm561, %v551, 0
        %v632 = vsel %vm561, %v552, 0
        %v635 = vsel %vm561, %v553, 0
        %v638 = vsel %vm561, %v554, 0
        %v641 = vsel %vm561, %v555, 0
        %v644 = vsel %vm561, %v556, 0
        %v647 = vsel %vm561, %v557, 0
        %v650 = vsel %vm561, %v558, 0
        %v653 = vsel %vm561, %v559, 0
        %v656 = vsel %vm561, %v560, 0
        %658 = vmatprep.subr.mxu0 %v429
        %659 = vmatpush1.msra.mxu0 %v427
        %660 = vmatprep.subr.mxu0 0.0
        %661 = vmatpush1.msra.mxu0 0.0
        %662 = vmatprep.subr.mxu0 0.0
        %663 = vmatpush1.msra.mxu0 0.0
        %664 = vmatprep.subr.mxu0 0.0
        %665 = vmatpush1.msra.mxu0 0.0
        %666 = vmatprep.subr.mxu0 0.0
        %667 = vmatpush1.msra.mxu0 0.0
        %668 = vmatprep.subr.mxu0 0.0
        %669 = vmatpush1.msra.mxu0 0.0
        %670 = vmatprep.subr.mxu0 0.0
        %671 = vmatpush1.msra.mxu0 0.0
        %672 = vmatprep.subr.mxu0 0.0
        %673 = vmatpush1.msra.mxu0 0.0
        %674 = vmatprep.subr.mxu0 0.0
        %675 = vmatpush1.msra.mxu0 0.0
        %676 = vmatprep.subr.mxu0 0.0
        %677 = vmatpush1.msra.mxu0 0.0
        %678 = vmatprep.subr.mxu0 0.0
        %679 = vmatpush1.msra.mxu0 0.0
        %680 = vmatprep.subr.mxu0 0.0
        %681 = vmatpush1.msra.mxu0 0.0
        %682 = vmatprep.subr.mxu0 0.0
        %683 = vmatpush1.msra.mxu0 0.0
        %684 = vmatprep.subr.mxu0 0.0
        %685 = vmatpush1.msra.mxu0 0.0
        %686 = vmatprep.subr.mxu0 0.0
        %687 = vmatpush1.msra.mxu0 0.0
        %688 = vmatprep.subr.mxu0 0.0
        %689 = vmatpush1.msra.mxu0 0.0
        %690 = vmatprep.subr.mxu0 0.0
        %691 = vmatpush1.msra.mxu0 0.0
        %692 = vmatprep.subr.mxu0 0.0
        %693 = vmatpush1.msra.mxu0 0.0
        %694 = vmatprep.subr.mxu0 0.0
        %695 = vmatpush1.msra.mxu0 0.0
        %696 = vmatprep.subr.mxu0 0.0
        %697 = vmatpush1.msra.mxu0 0.0
        %698 = vmatprep.subr.mxu0 0.0
        %699 = vmatpush1.msra.mxu0 0.0
        %700 = vmatprep.subr.mxu0 0.0
        %701 = vmatpush1.msra.mxu0 0.0
        %702 = vmatprep.subr.mxu0 0.0
        %703 = vmatpush1.msra.mxu0 0.0
        %704 = vmatprep.subr.mxu0 0.0
        %705 = vmatpush1.msra.mxu0 0.0
        %706 = vmatprep.subr.mxu0 0.0
        %707 = vmatpush1.msra.mxu0 0.0
        %708 = vmatprep.subr.mxu0 0.0
        %709 = vmatpush1.msra.mxu0 0.0
        %710 = vmatprep.subr.mxu0 0.0
        %711 = vmatpush1.msra.mxu0 0.0
        %712 = vmatprep.subr.mxu0 0.0
        %713 = vmatpush1.msra.mxu0 0.0
        %714 = vmatprep.subr.mxu0 0.0
        %715 = vmatpush1.msra.mxu0 0.0
        %716 = vmatprep.subr.mxu0 0.0
        %717 = vmatpush1.msra.mxu0 0.0
        %718 = vmatprep.subr.mxu0 0.0
        %719 = vmatpush1.msra.mxu0 0.0
        %720 = vmatprep.subr.mxu0 0.0
        %721 = vmatpush1.msra.mxu0 0.0
        %722 = vmatprep.mubr.f32.mxu0 0.0
        %723 = vmatmul.mubr.f32.gmra.mrb[0].mxu0 %v563
        %v724 = vpop.f32.mrb[0].mxu0
        %v725 = vadd.f32 0.0, %v724
        %v726 = vpop.f32.mrb[0].mxu0
        %v727 = vadd.f32 0.0, %v726
        %728 = vmatprep.mubr.f32.mxu0 0.0
        %729 = vmatmul.mubr.f32.gmra.mrb[0].mxu0 %v566
        %v730 = vpop.f32.mrb[0].mxu0
        %v731 = vadd.f32 0.0, %v730
        %v732 = vpop.f32.mrb[0].mxu0
        %v733 = vadd.f32 0.0, %v732
        %734 = vmatprep.mubr.f32.mxu0 0.0
        %735 = vmatmul.mubr.f32.gmra.mrb[0].mxu0 %v569
        %v736 = vpop.f32.mrb[0].mxu0
        %v737 = vadd.f32 0.0, %v736
        %v738 = vpop.f32.mrb[0].mxu0
        %v739 = vadd.f32 0.0, %v738
        %740 = vmatprep.mubr.f32.mxu0 0.0
        %741 = vmatmul.mubr.f32.gmra.mrb[0].mxu0 %v572
        %v742 = vpop.f32.mrb[0].mxu0
        %v743 = vadd.f32 0.0, %v742
        %v744 = vpop.f32.mrb[0].mxu0
        %v745 = vadd.f32 0.0, %v744
        %746 = vmatprep.mubr.f32.mxu0 0.0
        %747 = vmatmul.mubr.f32.gmra.mrb[0].mxu0 %v575
        %v748 = vpop.f32.mrb[0].mxu0
        %v749 = vadd.f32 0.0, %v748
        %v750 = vpop.f32.mrb[0].mxu0
        %v751 = vadd.f32 0.0, %v750
        %752 = vmatprep.mubr.f32.mxu0 0.0
        %753 = vmatmul.mubr.f32.gmra.mrb[0].mxu0 %v578
        %v754 = vpop.f32.mrb[0].mxu0
        %v755 = vadd.f32 0.0, %v754
        %v756 = vpop.f32.mrb[0].mxu0
        %v757 = vadd.f32 0.0, %v756
        %758 = vmatprep.mubr.f32.mxu0 0.0
        %759 = vmatmul.mubr.f32.gmra.mrb[0].mxu0 %v581
        %v760 = vpop.f32.mrb[0].mxu0
        %v761 = vadd.f32 0.0, %v760
        %v762 = vpop.f32.mrb[0].mxu0
        %v763 = vadd.f32 0.0, %v762
        %764 = vmatprep.mubr.f32.mxu0 0.0
        %765 = vmatmul.mubr.f32.gmra.mrb[0].mxu0 %v584
        %v766 = vpop.f32.mrb[0].mxu0
        %v767 = vadd.f32 0.0, %v766
        %v768 = vpop.f32.mrb[0].mxu0
        %v769 = vadd.f32 0.0, %v768
        %770 = vmatprep.mubr.f32.mxu0 0.0
        %771 = vmatmul.mubr.f32.gmra.mrb[0].mxu0 %v587
        %v772 = vpop.f32.mrb[0].mxu0
        %v773 = vadd.f32 0.0, %v772
        %v774 = vpop.f32.mrb[0].mxu0
        %v775 = vadd.f32 0.0, %v774
        %776 = vmatprep.mubr.f32.mxu0 0.0
        %777 = vmatmul.mubr.f32.gmra.mrb[0].mxu0 %v590
        %v778 = vpop.f32.mrb[0].mxu0
        %v779 = vadd.f32 0.0, %v778
        %v780 = vpop.f32.mrb[0].mxu0
        %v781 = vadd.f32 0.0, %v780
        %782 = vmatprep.mubr.f32.mxu0 0.0
        %783 = vmatmul.mubr.f32.gmra.mrb[0].mxu0 %v593
        %v784 = vpop.f32.mrb[0].mxu0
        %v785 = vadd.f32 0.0, %v784
        %v786 = vpop.f32.mrb[0].mxu0
        %v787 = vadd.f32 0.0, %v786
        %788 = vmatprep.mubr.f32.mxu0 0.0
        %789 = vmatmul.mubr.f32.gmra.mrb[0].mxu0 %v596
        %v790 = vpop.f32.mrb[0].mxu0
        %v791 = vadd.f32 0.0, %v790
        %v792 = vpop.f32.mrb[0].mxu0
        %v793 = vadd.f32 0.0, %v792
        %794 = vmatprep.mubr.f32.mxu0 0.0
        %795 = vmatmul.mubr.f32.gmra.mrb[0].mxu0 %v599
        %v796 = vpop.f32.mrb[0].mxu0
        %v797 = vadd.f32 0.0, %v796
        %v798 = vpop.f32.mrb[0].mxu0
        %v799 = vadd.f32 0.0, %v798
        %800 = vmatprep.mubr.f32.mxu0 0.0
        %801 = vmatmul.mubr.f32.gmra.mrb[0].mxu0 %v602
        %v802 = vpop.f32.mrb[0].mxu0
        %v803 = vadd.f32 0.0, %v802
        %v804 = vpop.f32.mrb[0].mxu0
        %v805 = vadd.f32 0.0, %v804
        %806 = vmatprep.mubr.f32.mxu0 0.0
        %807 = vmatmul.mubr.f32.gmra.mrb[0].mxu0 %v605
        %v808 = vpop.f32.mrb[0].mxu0
        %v809 = vadd.f32 0.0, %v808
        %v810 = vpop.f32.mrb[0].mxu0
        %v811 = vadd.f32 0.0, %v810
        %812 = vmatprep.mubr.f32.mxu0 0.0
        %813 = vmatmul.mubr.f32.gmra.mrb[0].mxu0 %v608
        %v814 = vpop.f32.mrb[0].mxu0
        %v815 = vadd.f32 0.0, %v814
        %v816 = vpop.f32.mrb[0].mxu0
        %v817 = vadd.f32 0.0, %v816
        %818 = vmatprep.mubr.f32.mxu0 0.0
        %819 = vmatmul.mubr.f32.gmra.mrb[0].mxu0 %v611
        %v820 = vpop.f32.mrb[0].mxu0
        %v821 = vadd.f32 0.0, %v820
        %v822 = vpop.f32.mrb[0].mxu0
        %v823 = vadd.f32 0.0, %v822
        %824 = vmatprep.mubr.f32.mxu0 0.0
        %825 = vmatmul.mubr.f32.gmra.mrb[0].mxu0 %v614
        %v826 = vpop.f32.mrb[0].mxu0
        %v827 = vadd.f32 0.0, %v826
        %v828 = vpop.f32.mrb[0].mxu0
        %v829 = vadd.f32 0.0, %v828
        %830 = vmatprep.mubr.f32.mxu0 0.0
        %831 = vmatmul.mubr.f32.gmra.mrb[0].mxu0 %v617
        %v832 = vpop.f32.mrb[0].mxu0
        %v833 = vadd.f32 0.0, %v832
        %v834 = vpop.f32.mrb[0].mxu0
        %v835 = vadd.f32 0.0, %v834
        %836 = vmatprep.mubr.f32.mxu0 0.0
        %837 = vmatmul.mubr.f32.gmra.mrb[0].mxu0 %v620
        %v838 = vpop.f32.mrb[0].mxu0
        %v839 = vadd.f32 0.0, %v838
        %v840 = vpop.f32.mrb[0].mxu0
        %v841 = vadd.f32 0.0, %v840
        %842 = vmatprep.mubr.f32.mxu0 0.0
        %843 = vmatmul.mubr.f32.gmra.mrb[0].mxu0 %v623
        %v844 = vpop.f32.mrb[0].mxu0
        %v845 = vadd.f32 0.0, %v844
        %v846 = vpop.f32.mrb[0].mxu0
        %v847 = vadd.f32 0.0, %v846
        %848 = vmatprep.mubr.f32.mxu0 0.0
        %849 = vmatmul.mubr.f32.gmra.mrb[0].mxu0 %v626
        %v850 = vpop.f32.mrb[0].mxu0
        %v851 = vadd.f32 0.0, %v850
        %v852 = vpop.f32.mrb[0].mxu0
        %v853 = vadd.f32 0.0, %v852
        %854 = vmatprep.mubr.f32.mxu0 0.0
        %855 = vmatmul.mubr.f32.gmra.mrb[0].mxu0 %v629
        %v856 = vpop.f32.mrb[0].mxu0
        %v857 = vadd.f32 0.0, %v856
        %v858 = vpop.f32.mrb[0].mxu0
        %v859 = vadd.f32 0.0, %v858
        %860 = vmatprep.mubr.f32.mxu0 0.0
        %861 = vmatmul.mubr.f32.gmra.mrb[0].mxu0 %v632
        %v862 = vpop.f32.mrb[0].mxu0
        %v863 = vadd.f32 0.0, %v862
        %v864 = vpop.f32.mrb[0].mxu0
        %v865 = vadd.f32 0.0, %v864
        %866 = vmatprep.mubr.f32.mxu0 0.0
        %867 = vmatmul.mubr.f32.gmra.mrb[0].mxu0 %v635
        %v868 = vpop.f32.mrb[0].mxu0
        %v869 = vadd.f32 0.0, %v868
        %v870 = vpop.f32.mrb[0].mxu0
        %v871 = vadd.f32 0.0, %v870
        %872 = vmatprep.mubr.f32.mxu0 0.0
        %873 = vmatmul.mubr.f32.gmra.mrb[0].mxu0 %v638
        %v874 = vpop.f32.mrb[0].mxu0
        %v875 = vadd.f32 0.0, %v874
        %v876 = vpop.f32.mrb[0].mxu0
        %v877 = vadd.f32 0.0, %v876
        %878 = vmatprep.mubr.f32.mxu0 0.0
        %879 = vmatmul.mubr.f32.gmra.mrb[0].mxu0 %v641
        %v880 = vpop.f32.mrb[0].mxu0
        %v881 = vadd.f32 0.0, %v880
        %v882 = vpop.f32.mrb[0].mxu0
        %v883 = vadd.f32 0.0, %v882
        %884 = vmatprep.mubr.f32.mxu0 0.0
        %885 = vmatmul.mubr.f32.gmra.mrb[0].mxu0 %v644
        %v886 = vpop.f32.mrb[0].mxu0
        %v887 = vadd.f32 0.0, %v886
        %v888 = vpop.f32.mrb[0].mxu0
        %v889 = vadd.f32 0.0, %v888
        %890 = vmatprep.mubr.f32.mxu0 0.0
        %891 = vmatmul.mubr.f32.gmra.mrb[0].mxu0 %v647
        %v892 = vpop.f32.mrb[0].mxu0
        %v893 = vadd.f32 0.0, %v892
        %v894 = vpop.f32.mrb[0].mxu0
        %v895 = vadd.f32 0.0, %v894
        %896 = vmatprep.mubr.f32.mxu0 0.0
        %897 = vmatmul.mubr.f32.gmra.mrb[0].mxu0 %v650
        %v898 = vpop.f32.mrb[0].mxu0
        %v899 = vadd.f32 0.0, %v898
        %v900 = vpop.f32.mrb[0].mxu0
        %v901 = vadd.f32 0.0, %v900
        %902 = vmatprep.mubr.f32.mxu0 0.0
        %903 = vmatmul.mubr.f32.gmra.mrb[0].mxu0 %v653
        %v904 = vpop.f32.mrb[0].mxu0
        %v905 = vadd.f32 0.0, %v904
        %v906 = vpop.f32.mrb[0].mxu0
        %v907 = vadd.f32 0.0, %v906
        %908 = vmatprep.mubr.f32.mxu0 0.0
        %909 = vmatmul.mubr.f32.gmra.mrb[0].mxu0 %v656
        %v910 = vpop.f32.mrb[0].mxu0
        %v911 = vadd.f32 0.0, %v910
        %v912 = vpop.f32.mrb[0].mxu0
        %v913 = vadd.f32 0.0, %v912
        %914 = vdwg.mxu0
        %915 = vxpose.xlu0.b32.start [1/16] %v457, 128
        %916 = vxpose.xlu0.b32.cont [2/16] 0.0, 128
        %917 = vxpose.xlu0.b32.cont [3/16] 0.0, 128
        %918 = vxpose.xlu0.b32.cont [4/16] 0.0, 128
        %919 = vxpose.xlu0.b32.cont [5/16] 0.0, 128
        %920 = vxpose.xlu0.b32.cont [6/16] 0.0, 128
        %921 = vxpose.xlu0.b32.cont [7/16] 0.0, 128
        %922 = vxpose.xlu0.b32.cont [8/16] 0.0, 128
        %923 = vxpose.xlu0.b32.cont [9/16] 0.0, 128
        %924 = vxpose.xlu0.b32.cont [10/16] 0.0, 128
        %925 = vxpose.xlu0.b32.cont [11/16] 0.0, 128
        %926 = vxpose.xlu0.b32.cont [12/16] 0.0, 128
        %927 = vxpose.xlu0.b32.cont [13/16] 0.0, 128
        %928 = vxpose.xlu0.b32.cont [14/16] 0.0, 128
        %929 = vxpose.xlu0.b32.cont [15/16] 0.0, 128
        %930 = vxpose.xlu0.b32.end [16/16] 0.0, 128
        %v931 = vpop.trf.xlu0
        %v932 = vpop.trf.xlu0
        %v933 = vpop.trf.xlu0
        %v934 = vpop.trf.xlu0
        %v935 = vpop.trf.xlu0
        %v936 = vpop.trf.xlu0
        %v937 = vpop.trf.xlu0
        %v938 = vpop.trf.xlu0
        %v939 = vpop.trf.xlu0
        %v940 = vpop.trf.xlu0
        %v941 = vpop.trf.xlu0
        %v942 = vpop.trf.xlu0
        %v943 = vpop.trf.xlu0
        %v944 = vpop.trf.xlu0
        %v945 = vpop.trf.xlu0
        %v946 = vpop.trf.xlu0
        %947 = vxpose.xlu0.b32.start [1/16] %v459, 128
        %948 = vxpose.xlu0.b32.cont [2/16] 0.0, 128
        %949 = vxpose.xlu0.b32.cont [3/16] 0.0, 128
        %950 = vxpose.xlu0.b32.cont [4/16] 0.0, 128
        %951 = vxpose.xlu0.b32.cont [5/16] 0.0, 128
        %952 = vxpose.xlu0.b32.cont [6/16] 0.0, 128
        %953 = vxpose.xlu0.b32.cont [7/16] 0.0, 128
        %954 = vxpose.xlu0.b32.cont [8/16] 0.0, 128
        %955 = vxpose.xlu0.b32.cont [9/16] 0.0, 128
        %956 = vxpose.xlu0.b32.cont [10/16] 0.0, 128
        %957 = vxpose.xlu0.b32.cont [11/16] 0.0, 128
        %958 = vxpose.xlu0.b32.cont [12/16] 0.0, 128
        %959 = vxpose.xlu0.b32.cont [13/16] 0.0, 128
        %960 = vxpose.xlu0.b32.cont [14/16] 0.0, 128
        %961 = vxpose.xlu0.b32.cont [15/16] 0.0, 128
        %962 = vxpose.xlu0.b32.end [16/16] 0.0, 128
        %v963 = vpop.trf.xlu0
        %v964 = vpop.trf.xlu0
        %v965 = vpop.trf.xlu0
        %v966 = vpop.trf.xlu0
        %v967 = vpop.trf.xlu0
        %v968 = vpop.trf.xlu0
        %v969 = vpop.trf.xlu0
        %v970 = vpop.trf.xlu0
        %v971 = vpop.trf.xlu0
        %v972 = vpop.trf.xlu0
        %v973 = vpop.trf.xlu0
        %v974 = vpop.trf.xlu0
        %v975 = vpop.trf.xlu0
        %v976 = vpop.trf.xlu0
        %v977 = vpop.trf.xlu0
        %v978 = vpop.trf.xlu0
        %v980 = vsel %vm561, %v931, 0
        %v983 = vsel %vm561, %v932, 0
        %v986 = vsel %vm561, %v933, 0
        %v989 = vsel %vm561, %v934, 0
        %v992 = vsel %vm561, %v935, 0
        %v995 = vsel %vm561, %v936, 0
        %v998 = vsel %vm561, %v937, 0
        %v1001 = vsel %vm561, %v938, 0
        %v1004 = vsel %vm561, %v939, 0
        %v1007 = vsel %vm561, %v940, 0
        %v1010 = vsel %vm561, %v941, 0
        %v1013 = vsel %vm561, %v942, 0
        %v1016 = vsel %vm561, %v943, 0
        %v1019 = vsel %vm561, %v944, 0
        %v1022 = vsel %vm561, %v945, 0
        %v1025 = vsel %vm561, %v946, 0
        %v1028 = vsel %vm561, %v963, 0
        %v1031 = vsel %vm561, %v964, 0
        %v1034 = vsel %vm561, %v965, 0
        %v1037 = vsel %vm561, %v966, 0
        %v1040 = vsel %vm561, %v967, 0
        %v1043 = vsel %vm561, %v968, 0
        %v1046 = vsel %vm561, %v969, 0
        %v1049 = vsel %vm561, %v970, 0
        %v1052 = vsel %vm561, %v971, 0
        %v1055 = vsel %vm561, %v972, 0
        %v1058 = vsel %vm561, %v973, 0
        %v1061 = vsel %vm561, %v974, 0
        %v1064 = vsel %vm561, %v975, 0
        %v1067 = vsel %vm561, %v976, 0
        %v1070 = vsel %vm561, %v977, 0
        %v1073 = vsel %vm561, %v978, 0
        %1075 = vmatprep.subr.mxu0 %v435
        %1076 = vmatpush1.msra.mxu0 %v433
        %1077 = vmatprep.subr.mxu0 0.0
        %1078 = vmatpush1.msra.mxu0 0.0
        %1079 = vmatprep.subr.mxu0 0.0
        %1080 = vmatpush1.msra.mxu0 0.0
        %1081 = vmatprep.subr.mxu0 0.0
        %1082 = vmatpush1.msra.mxu0 0.0
        %1083 = vmatprep.subr.mxu0 0.0
        %1084 = vmatpush1.msra.mxu0 0.0
        %1085 = vmatprep.subr.mxu0 0.0
        %1086 = vmatpush1.msra.mxu0 0.0
        %1087 = vmatprep.subr.mxu0 0.0
        %1088 = vmatpush1.msra.mxu0 0.0
        %1089 = vmatprep.subr.mxu0 0.0
        %1090 = vmatpush1.msra.mxu0 0.0
        %1091 = vmatprep.subr.mxu0 0.0
        %1092 = vmatpush1.msra.mxu0 0.0
        %1093 = vmatprep.subr.mxu0 0.0
        %1094 = vmatpush1.msra.mxu0 0.0
        %1095 = vmatprep.subr.mxu0 0.0
        %1096 = vmatpush1.msra.mxu0 0.0
        %1097 = vmatprep.subr.mxu0 0.0
        %1098 = vmatpush1.msra.mxu0 0.0
        %1099 = vmatprep.subr.mxu0 0.0
        %1100 = vmatpush1.msra.mxu0 0.0
        %1101 = vmatprep.subr.mxu0 0.0
        %1102 = vmatpush1.msra.mxu0 0.0
        %1103 = vmatprep.subr.mxu0 0.0
        %1104 = vmatpush1.msra.mxu0 0.0
        %1105 = vmatprep.subr.mxu0 0.0
        %1106 = vmatpush1.msra.mxu0 0.0
        %1107 = vmatprep.subr.mxu0 0.0
        %1108 = vmatpush1.msra.mxu0 0.0
        %1109 = vmatprep.subr.mxu0 0.0
        %1110 = vmatpush1.msra.mxu0 0.0
        %1111 = vmatprep.subr.mxu0 0.0
        %1112 = vmatpush1.msra.mxu0 0.0
        %1113 = vmatprep.subr.mxu0 0.0
        %1114 = vmatpush1.msra.mxu0 0.0
        %1115 = vmatprep.subr.mxu0 0.0
        %1116 = vmatpush1.msra.mxu0 0.0
        %1117 = vmatprep.subr.mxu0 0.0
        %1118 = vmatpush1.msra.mxu0 0.0
        %1119 = vmatprep.subr.mxu0 0.0
        %1120 = vmatpush1.msra.mxu0 0.0
        %1121 = vmatprep.subr.mxu0 0.0
        %1122 = vmatpush1.msra.mxu0 0.0
        %1123 = vmatprep.subr.mxu0 0.0
        %1124 = vmatpush1.msra.mxu0 0.0
        %1125 = vmatprep.subr.mxu0 0.0
        %1126 = vmatpush1.msra.mxu0 0.0
        %1127 = vmatprep.subr.mxu0 0.0
        %1128 = vmatpush1.msra.mxu0 0.0
        %1129 = vmatprep.subr.mxu0 0.0
        %1130 = vmatpush1.msra.mxu0 0.0
        %1131 = vmatprep.subr.mxu0 0.0
        %1132 = vmatpush1.msra.mxu0 0.0
        %1133 = vmatprep.subr.mxu0 0.0
        %1134 = vmatpush1.msra.mxu0 0.0
        %1135 = vmatprep.subr.mxu0 0.0
        %1136 = vmatpush1.msra.mxu0 0.0
        %1137 = vmatprep.subr.mxu0 0.0
        %1138 = vmatpush1.msra.mxu0 0.0
        %1139 = vmatprep.mubr.f32.mxu0 0.0
        %1140 = vmatmul.mubr.f32.gmra.mrb[0].mxu0 %v980
        %v1141 = vpop.f32.mrb[0].mxu0
        %v1142 = vadd.f32 0.0, %v1141
        %v1143 = vpop.f32.mrb[0].mxu0
        %v1144 = vadd.f32 0.0, %v1143
        %1145 = vmatprep.mubr.f32.mxu0 0.0
        %1146 = vmatmul.mubr.f32.gmra.mrb[0].mxu0 %v983
        %v1147 = vpop.f32.mrb[0].mxu0
        %v1148 = vadd.f32 0.0, %v1147
        %v1149 = vpop.f32.mrb[0].mxu0
        %v1150 = vadd.f32 0.0, %v1149
        %1151 = vmatprep.mubr.f32.mxu0 0.0
        %1152 = vmatmul.mubr.f32.gmra.mrb[0].mxu0 %v986
        %v1153 = vpop.f32.mrb[0].mxu0
        %v1154 = vadd.f32 0.0, %v1153
        %v1155 = vpop.f32.mrb[0].mxu0
        %v1156 = vadd.f32 0.0, %v1155
        %1157 = vmatprep.mubr.f32.mxu0 0.0
        %1158 = vmatmul.mubr.f32.gmra.mrb[0].mxu0 %v989
        %v1159 = vpop.f32.mrb[0].mxu0
        %v1160 = vadd.f32 0.0, %v1159
        %v1161 = vpop.f32.mrb[0].mxu0
        %v1162 = vadd.f32 0.0, %v1161
        %1163 = vmatprep.mubr.f32.mxu0 0.0
        %1164 = vmatmul.mubr.f32.gmra.mrb[0].mxu0 %v992
        %v1165 = vpop.f32.mrb[0].mxu0
        %v1166 = vadd.f32 0.0, %v1165
        %v1167 = vpop.f32.mrb[0].mxu0
        %v1168 = vadd.f32 0.0, %v1167
        %1169 = vmatprep.mubr.f32.mxu0 0.0
        %1170 = vmatmul.mubr.f32.gmra.mrb[0].mxu0 %v995
        %v1171 = vpop.f32.mrb[0].mxu0
        %v1172 = vadd.f32 0.0, %v1171
        %v1173 = vpop.f32.mrb[0].mxu0
        %v1174 = vadd.f32 0.0, %v1173
        %1175 = vmatprep.mubr.f32.mxu0 0.0
        %1176 = vmatmul.mubr.f32.gmra.mrb[0].mxu0 %v998
        %v1177 = vpop.f32.mrb[0].mxu0
        %v1178 = vadd.f32 0.0, %v1177
        %v1179 = vpop.f32.mrb[0].mxu0
        %v1180 = vadd.f32 0.0, %v1179
        %1181 = vmatprep.mubr.f32.mxu0 0.0
        %1182 = vmatmul.mubr.f32.gmra.mrb[0].mxu0 %v1001
        %v1183 = vpop.f32.mrb[0].mxu0
        %v1184 = vadd.f32 0.0, %v1183
        %v1185 = vpop.f32.mrb[0].mxu0
        %v1186 = vadd.f32 0.0, %v1185
        %1187 = vmatprep.mubr.f32.mxu0 0.0
        %1188 = vmatmul.mubr.f32.gmra.mrb[0].mxu0 %v1004
        %v1189 = vpop.f32.mrb[0].mxu0
        %v1190 = vadd.f32 0.0, %v1189
        %v1191 = vpop.f32.mrb[0].mxu0
        %v1192 = vadd.f32 0.0, %v1191
        %1193 = vmatprep.mubr.f32.mxu0 0.0
        %1194 = vmatmul.mubr.f32.gmra.mrb[0].mxu0 %v1007
        %v1195 = vpop.f32.mrb[0].mxu0
        %v1196 = vadd.f32 0.0, %v1195
        %v1197 = vpop.f32.mrb[0].mxu0
        %v1198 = vadd.f32 0.0, %v1197
        %1199 = vmatprep.mubr.f32.mxu0 0.0
        %1200 = vmatmul.mubr.f32.gmra.mrb[0].mxu0 %v1010
        %v1201 = vpop.f32.mrb[0].mxu0
        %v1202 = vadd.f32 0.0, %v1201
        %v1203 = vpop.f32.mrb[0].mxu0
        %v1204 = vadd.f32 0.0, %v1203
        %1205 = vmatprep.mubr.f32.mxu0 0.0
        %1206 = vmatmul.mubr.f32.gmra.mrb[0].mxu0 %v1013
        %v1207 = vpop.f32.mrb[0].mxu0
        %v1208 = vadd.f32 0.0, %v1207
        %v1209 = vpop.f32.mrb[0].mxu0
        %v1210 = vadd.f32 0.0, %v1209
        %1211 = vmatprep.mubr.f32.mxu0 0.0
        %1212 = vmatmul.mubr.f32.gmra.mrb[0].mxu0 %v1016
        %v1213 = vpop.f32.mrb[0].mxu0
        %v1214 = vadd.f32 0.0, %v1213
        %v1215 = vpop.f32.mrb[0].mxu0
        %v1216 = vadd.f32 0.0, %v1215
        %1217 = vmatprep.mubr.f32.mxu0 0.0
        %1218 = vmatmul.mubr.f32.gmra.mrb[0].mxu0 %v1019
        %v1219 = vpop.f32.mrb[0].mxu0
        %v1220 = vadd.f32 0.0, %v1219
        %v1221 = vpop.f32.mrb[0].mxu0
        %v1222 = vadd.f32 0.0, %v1221
        %1223 = vmatprep.mubr.f32.mxu0 0.0
        %1224 = vmatmul.mubr.f32.gmra.mrb[0].mxu0 %v1022
        %v1225 = vpop.f32.mrb[0].mxu0
        %v1226 = vadd.f32 0.0, %v1225
        %v1227 = vpop.f32.mrb[0].mxu0
        %v1228 = vadd.f32 0.0, %v1227
        %1229 = vmatprep.mubr.f32.mxu0 0.0
        %1230 = vmatmul.mubr.f32.gmra.mrb[0].mxu0 %v1025
        %v1231 = vpop.f32.mrb[0].mxu0
        %v1232 = vadd.f32 0.0, %v1231
        %v1233 = vpop.f32.mrb[0].mxu0
        %v1234 = vadd.f32 0.0, %v1233
        %1235 = vmatprep.mubr.f32.mxu0 0.0
        %1236 = vmatmul.mubr.f32.gmra.mrb[0].mxu0 %v1028
        %v1237 = vpop.f32.mrb[0].mxu0
        %v1238 = vadd.f32 0.0, %v1237
        %v1239 = vpop.f32.mrb[0].mxu0
        %v1240 = vadd.f32 0.0, %v1239
        %1241 = vmatprep.mubr.f32.mxu0 0.0
        %1242 = vmatmul.mubr.f32.gmra.mrb[0].mxu0 %v1031
        %v1243 = vpop.f32.mrb[0].mxu0
        %v1244 = vadd.f32 0.0, %v1243
        %v1245 = vpop.f32.mrb[0].mxu0
        %v1246 = vadd.f32 0.0, %v1245
        %1247 = vmatprep.mubr.f32.mxu0 0.0
        %1248 = vmatmul.mubr.f32.gmra.mrb[0].mxu0 %v1034
        %v1249 = vpop.f32.mrb[0].mxu0
        %v1250 = vadd.f32 0.0, %v1249
        %v1251 = vpop.f32.mrb[0].mxu0
        %v1252 = vadd.f32 0.0, %v1251
        %1253 = vmatprep.mubr.f32.mxu0 0.0
        %1254 = vmatmul.mubr.f32.gmra.mrb[0].mxu0 %v1037
        %v1255 = vpop.f32.mrb[0].mxu0
        %v1256 = vadd.f32 0.0, %v1255
        %v1257 = vpop.f32.mrb[0].mxu0
        %v1258 = vadd.f32 0.0, %v1257
        %1259 = vmatprep.mubr.f32.mxu0 0.0
        %1260 = vmatmul.mubr.f32.gmra.mrb[0].mxu0 %v1040
        %v1261 = vpop.f32.mrb[0].mxu0
        %v1262 = vadd.f32 0.0, %v1261
        %v1263 = vpop.f32.mrb[0].mxu0
        %v1264 = vadd.f32 0.0, %v1263
        %1265 = vmatprep.mubr.f32.mxu0 0.0
        %1266 = vmatmul.mubr.f32.gmra.mrb[0].mxu0 %v1043
        %v1267 = vpop.f32.mrb[0].mxu0
        %v1268 = vadd.f32 0.0, %v1267
        %v1269 = vpop.f32.mrb[0].mxu0
        %v1270 = vadd.f32 0.0, %v1269
        %1271 = vmatprep.mubr.f32.mxu0 0.0
        %1272 = vmatmul.mubr.f32.gmra.mrb[0].mxu0 %v1046
        %v1273 = vpop.f32.mrb[0].mxu0
        %v1274 = vadd.f32 0.0, %v1273
        %v1275 = vpop.f32.mrb[0].mxu0
        %v1276 = vadd.f32 0.0, %v1275
        %1277 = vmatprep.mubr.f32.mxu0 0.0
        %1278 = vmatmul.mubr.f32.gmra.mrb[0].mxu0 %v1049
        %v1279 = vpop.f32.mrb[0].mxu0
        %v1280 = vadd.f32 0.0, %v1279
        %v1281 = vpop.f32.mrb[0].mxu0
        %v1282 = vadd.f32 0.0, %v1281
        %1283 = vmatprep.mubr.f32.mxu0 0.0
        %1284 = vmatmul.mubr.f32.gmra.mrb[0].mxu0 %v1052
        %v1285 = vpop.f32.mrb[0].mxu0
        %v1286 = vadd.f32 0.0, %v1285
        %v1287 = vpop.f32.mrb[0].mxu0
        %v1288 = vadd.f32 0.0, %v1287
        %1289 = vmatprep.mubr.f32.mxu0 0.0
        %1290 = vmatmul.mubr.f32.gmra.mrb[0].mxu0 %v1055
        %v1291 = vpop.f32.mrb[0].mxu0
        %v1292 = vadd.f32 0.0, %v1291
        %v1293 = vpop.f32.mrb[0].mxu0
        %v1294 = vadd.f32 0.0, %v1293
        %1295 = vmatprep.mubr.f32.mxu0 0.0
        %1296 = vmatmul.mubr.f32.gmra.mrb[0].mxu0 %v1058
        %v1297 = vpop.f32.mrb[0].mxu0
        %v1298 = vadd.f32 0.0, %v1297
        %v1299 = vpop.f32.mrb[0].mxu0
        %v1300 = vadd.f32 0.0, %v1299
        %1301 = vmatprep.mubr.f32.mxu0 0.0
        %1302 = vmatmul.mubr.f32.gmra.mrb[0].mxu0 %v1061
        %v1303 = vpop.f32.mrb[0].mxu0
        %v1304 = vadd.f32 0.0, %v1303
        %v1305 = vpop.f32.mrb[0].mxu0
        %v1306 = vadd.f32 0.0, %v1305
        %1307 = vmatprep.mubr.f32.mxu0 0.0
        %1308 = vmatmul.mubr.f32.gmra.mrb[0].mxu0 %v1064
        %v1309 = vpop.f32.mrb[0].mxu0
        %v1310 = vadd.f32 0.0, %v1309
        %v1311 = vpop.f32.mrb[0].mxu0
        %v1312 = vadd.f32 0.0, %v1311
        %1313 = vmatprep.mubr.f32.mxu0 0.0
        %1314 = vmatmul.mubr.f32.gmra.mrb[0].mxu0 %v1067
        %v1315 = vpop.f32.mrb[0].mxu0
        %v1316 = vadd.f32 0.0, %v1315
        %v1317 = vpop.f32.mrb[0].mxu0
        %v1318 = vadd.f32 0.0, %v1317
        %1319 = vmatprep.mubr.f32.mxu0 0.0
        %1320 = vmatmul.mubr.f32.gmra.mrb[0].mxu0 %v1070
        %v1321 = vpop.f32.mrb[0].mxu0
        %v1322 = vadd.f32 0.0, %v1321
        %v1323 = vpop.f32.mrb[0].mxu0
        %v1324 = vadd.f32 0.0, %v1323
        %1325 = vmatprep.mubr.f32.mxu0 0.0
        %1326 = vmatmul.mubr.f32.gmra.mrb[0].mxu0 %v1073
        %v1327 = vpop.f32.mrb[0].mxu0
        %v1328 = vadd.f32 0.0, %v1327
        %v1329 = vpop.f32.mrb[0].mxu0
        %v1330 = vadd.f32 0.0, %v1329
        %1331 = vdwg.mxu0
        %1332 = vxpose.xlu0.b32.start [1/16] %v463, 128
        %1333 = vxpose.xlu0.b32.cont [2/16] 0.0, 128
        %1334 = vxpose.xlu0.b32.cont [3/16] 0.0, 128
        %1335 = vxpose.xlu0.b32.cont [4/16] 0.0, 128
        %1336 = vxpose.xlu0.b32.cont [5/16] 0.0, 128
        %1337 = vxpose.xlu0.b32.cont [6/16] 0.0, 128
        %1338 = vxpose.xlu0.b32.cont [7/16] 0.0, 128
        %1339 = vxpose.xlu0.b32.cont [8/16] 0.0, 128
        %1340 = vxpose.xlu0.b32.cont [9/16] 0.0, 128
        %1341 = vxpose.xlu0.b32.cont [10/16] 0.0, 128
        %1342 = vxpose.xlu0.b32.cont [11/16] 0.0, 128
        %1343 = vxpose.xlu0.b32.cont [12/16] 0.0, 128
        %1344 = vxpose.xlu0.b32.cont [13/16] 0.0, 128
        %1345 = vxpose.xlu0.b32.cont [14/16] 0.0, 128
        %1346 = vxpose.xlu0.b32.cont [15/16] 0.0, 128
        %1347 = vxpose.xlu0.b32.end [16/16] 0.0, 128
        %v1348 = vpop.trf.xlu0
        %v1349 = vpop.trf.xlu0
        %v1350 = vpop.trf.xlu0
        %v1351 = vpop.trf.xlu0
        %v1352 = vpop.trf.xlu0
        %v1353 = vpop.trf.xlu0
        %v1354 = vpop.trf.xlu0
        %v1355 = vpop.trf.xlu0
        %v1356 = vpop.trf.xlu0
        %v1357 = vpop.trf.xlu0
        %v1358 = vpop.trf.xlu0
        %v1359 = vpop.trf.xlu0
        %v1360 = vpop.trf.xlu0
        %v1361 = vpop.trf.xlu0
        %v1362 = vpop.trf.xlu0
        %v1363 = vpop.trf.xlu0
        %1364 = vxpose.xlu0.b32.start [1/16] %v465, 128
        %1365 = vxpose.xlu0.b32.cont [2/16] 0.0, 128
        %1366 = vxpose.xlu0.b32.cont [3/16] 0.0, 128
        %1367 = vxpose.xlu0.b32.cont [4/16] 0.0, 128
        %1368 = vxpose.xlu0.b32.cont [5/16] 0.0, 128
        %1369 = vxpose.xlu0.b32.cont [6/16] 0.0, 128
        %1370 = vxpose.xlu0.b32.cont [7/16] 0.0, 128
        %1371 = vxpose.xlu0.b32.cont [8/16] 0.0, 128
        %1372 = vxpose.xlu0.b32.cont [9/16] 0.0, 128
        %1373 = vxpose.xlu0.b32.cont [10/16] 0.0, 128
        %1374 = vxpose.xlu0.b32.cont [11/16] 0.0, 128
        %1375 = vxpose.xlu0.b32.cont [12/16] 0.0, 128
        %1376 = vxpose.xlu0.b32.cont [13/16] 0.0, 128
        %1377 = vxpose.xlu0.b32.cont [14/16] 0.0, 128
        %1378 = vxpose.xlu0.b32.cont [15/16] 0.0, 128
        %1379 = vxpose.xlu0.b32.end [16/16] 0.0, 128
        %v1380 = vpop.trf.xlu0
        %v1381 = vpop.trf.xlu0
        %v1382 = vpop.trf.xlu0
        %v1383 = vpop.trf.xlu0
        %v1384 = vpop.trf.xlu0
        %v1385 = vpop.trf.xlu0
        %v1386 = vpop.trf.xlu0
        %v1387 = vpop.trf.xlu0
        %v1388 = vpop.trf.xlu0
        %v1389 = vpop.trf.xlu0
        %v1390 = vpop.trf.xlu0
        %v1391 = vpop.trf.xlu0
        %v1392 = vpop.trf.xlu0
        %v1393 = vpop.trf.xlu0
        %v1394 = vpop.trf.xlu0
        %v1395 = vpop.trf.xlu0
        %v1397 = vsel %vm561, %v1348, 0
        %v1400 = vsel %vm561, %v1349, 0
        %v1403 = vsel %vm561, %v1350, 0
        %v1406 = vsel %vm561, %v1351, 0
        %v1409 = vsel %vm561, %v1352, 0
        %v1412 = vsel %vm561, %v1353, 0
        %v1415 = vsel %vm561, %v1354, 0
        %v1418 = vsel %vm561, %v1355, 0
        %v1421 = vsel %vm561, %v1356, 0
        %v1424 = vsel %vm561, %v1357, 0
        %v1427 = vsel %vm561, %v1358, 0
        %v1430 = vsel %vm561, %v1359, 0
        %v1433 = vsel %vm561, %v1360, 0
        %v1436 = vsel %vm561, %v1361, 0
        %v1439 = vsel %vm561, %v1362, 0
        %v1442 = vsel %vm561, %v1363, 0
        %v1445 = vsel %vm561, %v1380, 0
        %v1448 = vsel %vm561, %v1381, 0
        %v1451 = vsel %vm561, %v1382, 0
        %v1454 = vsel %vm561, %v1383, 0
        %v1457 = vsel %vm561, %v1384, 0
        %v1460 = vsel %vm561, %v1385, 0
        %v1463 = vsel %vm561, %v1386, 0
        %v1466 = vsel %vm561, %v1387, 0
        %v1469 = vsel %vm561, %v1388, 0
        %v1472 = vsel %vm561, %v1389, 0
        %v1475 = vsel %vm561, %v1390, 0
        %v1478 = vsel %vm561, %v1391, 0
        %v1481 = vsel %vm561, %v1392, 0
        %v1484 = vsel %vm561, %v1393, 0
        %v1487 = vsel %vm561, %v1394, 0
        %v1490 = vsel %vm561, %v1395, 0
        %1492 = vmatprep.subr.mxu0 %v441
        %1493 = vmatpush1.msra.mxu0 %v439
        %1494 = vmatprep.subr.mxu0 0.0
        %1495 = vmatpush1.msra.mxu0 0.0
        %1496 = vmatprep.subr.mxu0 0.0
        %1497 = vmatpush1.msra.mxu0 0.0
        %1498 = vmatprep.subr.mxu0 0.0
        %1499 = vmatpush1.msra.mxu0 0.0
        %1500 = vmatprep.subr.mxu0 0.0
        %1501 = vmatpush1.msra.mxu0 0.0
        %1502 = vmatprep.subr.mxu0 0.0
        %1503 = vmatpush1.msra.mxu0 0.0
        %1504 = vmatprep.subr.mxu0 0.0
        %1505 = vmatpush1.msra.mxu0 0.0
        %1506 = vmatprep.subr.mxu0 0.0
        %1507 = vmatpush1.msra.mxu0 0.0
        %1508 = vmatprep.subr.mxu0 0.0
        %1509 = vmatpush1.msra.mxu0 0.0
        %1510 = vmatprep.subr.mxu0 0.0
        %1511 = vmatpush1.msra.mxu0 0.0
        %1512 = vmatprep.subr.mxu0 0.0
        %1513 = vmatpush1.msra.mxu0 0.0
        %1514 = vmatprep.subr.mxu0 0.0
        %1515 = vmatpush1.msra.mxu0 0.0
        %1516 = vmatprep.subr.mxu0 0.0
        %1517 = vmatpush1.msra.mxu0 0.0
        %1518 = vmatprep.subr.mxu0 0.0
        %1519 = vmatpush1.msra.mxu0 0.0
        %1520 = vmatprep.subr.mxu0 0.0
        %1521 = vmatpush1.msra.mxu0 0.0
        %1522 = vmatprep.subr.mxu0 0.0
        %1523 = vmatpush1.msra.mxu0 0.0
        %1524 = vmatprep.subr.mxu0 0.0
        %1525 = vmatpush1.msra.mxu0 0.0
        %1526 = vmatprep.subr.mxu0 0.0
        %1527 = vmatpush1.msra.mxu0 0.0
        %1528 = vmatprep.subr.mxu0 0.0
        %1529 = vmatpush1.msra.mxu0 0.0
        %1530 = vmatprep.subr.mxu0 0.0
        %1531 = vmatpush1.msra.mxu0 0.0
        %1532 = vmatprep.subr.mxu0 0.0
        %1533 = vmatpush1.msra.mxu0 0.0
        %1534 = vmatprep.subr.mxu0 0.0
        %1535 = vmatpush1.msra.mxu0 0.0
        %1536 = vmatprep.subr.mxu0 0.0
        %1537 = vmatpush1.msra.mxu0 0.0
        %1538 = vmatprep.subr.mxu0 0.0
        %1539 = vmatpush1.msra.mxu0 0.0
        %1540 = vmatprep.subr.mxu0 0.0
        %1541 = vmatpush1.msra.mxu0 0.0
        %1542 = vmatprep.subr.mxu0 0.0
        %1543 = vmatpush1.msra.mxu0 0.0
        %1544 = vmatprep.subr.mxu0 0.0
        %1545 = vmatpush1.msra.mxu0 0.0
        %1546 = vmatprep.subr.mxu0 0.0
        %1547 = vmatpush1.msra.mxu0 0.0
        %1548 = vmatprep.subr.mxu0 0.0
        %1549 = vmatpush1.msra.mxu0 0.0
        %1550 = vmatprep.subr.mxu0 0.0
        %1551 = vmatpush1.msra.mxu0 0.0
        %1552 = vmatprep.subr.mxu0 0.0
        %1553 = vmatpush1.msra.mxu0 0.0
        %1554 = vmatprep.subr.mxu0 0.0
        %1555 = vmatpush1.msra.mxu0 0.0
        %1556 = vmatprep.mubr.f32.mxu0 0.0
        %1557 = vmatmul.mubr.f32.gmra.mrb[0].mxu0 %v1397
        %v1558 = vpop.f32.mrb[0].mxu0
        %v1559 = vadd.f32 0.0, %v1558
        %v1560 = vpop.f32.mrb[0].mxu0
        %v1561 = vadd.f32 0.0, %v1560
        %1562 = vmatprep.mubr.f32.mxu0 0.0
        %1563 = vmatmul.mubr.f32.gmra.mrb[0].mxu0 %v1400
        %v1564 = vpop.f32.mrb[0].mxu0
        %v1565 = vadd.f32 0.0, %v1564
        %v1566 = vpop.f32.mrb[0].mxu0
        %v1567 = vadd.f32 0.0, %v1566
        %1568 = vmatprep.mubr.f32.mxu0 0.0
        %1569 = vmatmul.mubr.f32.gmra.mrb[0].mxu0 %v1403
        %v1570 = vpop.f32.mrb[0].mxu0
        %v1571 = vadd.f32 0.0, %v1570
        %v1572 = vpop.f32.mrb[0].mxu0
        %v1573 = vadd.f32 0.0, %v1572
        %1574 = vmatprep.mubr.f32.mxu0 0.0
        %1575 = vmatmul.mubr.f32.gmra.mrb[0].mxu0 %v1406
        %v1576 = vpop.f32.mrb[0].mxu0
        %v1577 = vadd.f32 0.0, %v1576
        %v1578 = vpop.f32.mrb[0].mxu0
        %v1579 = vadd.f32 0.0, %v1578
        %1580 = vmatprep.mubr.f32.mxu0 0.0
        %1581 = vmatmul.mubr.f32.gmra.mrb[0].mxu0 %v1409
        %v1582 = vpop.f32.mrb[0].mxu0
        %v1583 = vadd.f32 0.0, %v1582
        %v1584 = vpop.f32.mrb[0].mxu0
        %v1585 = vadd.f32 0.0, %v1584
        %1586 = vmatprep.mubr.f32.mxu0 0.0
        %1587 = vmatmul.mubr.f32.gmra.mrb[0].mxu0 %v1412
        %v1588 = vpop.f32.mrb[0].mxu0
        %v1589 = vadd.f32 0.0, %v1588
        %v1590 = vpop.f32.mrb[0].mxu0
        %v1591 = vadd.f32 0.0, %v1590
        %1592 = vmatprep.mubr.f32.mxu0 0.0
        %1593 = vmatmul.mubr.f32.gmra.mrb[0].mxu0 %v1415
        %v1594 = vpop.f32.mrb[0].mxu0
        %v1595 = vadd.f32 0.0, %v1594
        %v1596 = vpop.f32.mrb[0].mxu0
        %v1597 = vadd.f32 0.0, %v1596
        %1598 = vmatprep.mubr.f32.mxu0 0.0
        %1599 = vmatmul.mubr.f32.gmra.mrb[0].mxu0 %v1418
        %v1600 = vpop.f32.mrb[0].mxu0
        %v1601 = vadd.f32 0.0, %v1600
        %v1602 = vpop.f32.mrb[0].mxu0
        %v1603 = vadd.f32 0.0, %v1602
        %1604 = vmatprep.mubr.f32.mxu0 0.0
        %1605 = vmatmul.mubr.f32.gmra.mrb[0].mxu0 %v1421
        %v1606 = vpop.f32.mrb[0].mxu0
        %v1607 = vadd.f32 0.0, %v1606
        %v1608 = vpop.f32.mrb[0].mxu0
        %v1609 = vadd.f32 0.0, %v1608
        %1610 = vmatprep.mubr.f32.mxu0 0.0
        %1611 = vmatmul.mubr.f32.gmra.mrb[0].mxu0 %v1424
        %v1612 = vpop.f32.mrb[0].mxu0
        %v1613 = vadd.f32 0.0, %v1612
        %v1614 = vpop.f32.mrb[0].mxu0
        %v1615 = vadd.f32 0.0, %v1614
        %1616 = vmatprep.mubr.f32.mxu0 0.0
        %1617 = vmatmul.mubr.f32.gmra.mrb[0].mxu0 %v1427
        %v1618 = vpop.f32.mrb[0].mxu0
        %v1619 = vadd.f32 0.0, %v1618
        %v1620 = vpop.f32.mrb[0].mxu0
        %v1621 = vadd.f32 0.0, %v1620
        %1622 = vmatprep.mubr.f32.mxu0 0.0
        %1623 = vmatmul.mubr.f32.gmra.mrb[0].mxu0 %v1430
        %v1624 = vpop.f32.mrb[0].mxu0
        %v1625 = vadd.f32 0.0, %v1624
        %v1626 = vpop.f32.mrb[0].mxu0
        %v1627 = vadd.f32 0.0, %v1626
        %1628 = vmatprep.mubr.f32.mxu0 0.0
        %1629 = vmatmul.mubr.f32.gmra.mrb[0].mxu0 %v1433
        %v1630 = vpop.f32.mrb[0].mxu0
        %v1631 = vadd.f32 0.0, %v1630
        %v1632 = vpop.f32.mrb[0].mxu0
        %v1633 = vadd.f32 0.0, %v1632
        %1634 = vmatprep.mubr.f32.mxu0 0.0
        %1635 = vmatmul.mubr.f32.gmra.mrb[0].mxu0 %v1436
        %v1636 = vpop.f32.mrb[0].mxu0
        %v1637 = vadd.f32 0.0, %v1636
        %v1638 = vpop.f32.mrb[0].mxu0
        %v1639 = vadd.f32 0.0, %v1638
        %1640 = vmatprep.mubr.f32.mxu0 0.0
        %1641 = vmatmul.mubr.f32.gmra.mrb[0].mxu0 %v1439
        %v1642 = vpop.f32.mrb[0].mxu0
        %v1643 = vadd.f32 0.0, %v1642
        %v1644 = vpop.f32.mrb[0].mxu0
        %v1645 = vadd.f32 0.0, %v1644
        %1646 = vmatprep.mubr.f32.mxu0 0.0
        %1647 = vmatmul.mubr.f32.gmra.mrb[0].mxu0 %v1442
        %v1648 = vpop.f32.mrb[0].mxu0
        %v1649 = vadd.f32 0.0, %v1648
        %v1650 = vpop.f32.mrb[0].mxu0
        %v1651 = vadd.f32 0.0, %v1650
        %1652 = vmatprep.mubr.f32.mxu0 0.0
        %1653 = vmatmul.mubr.f32.gmra.mrb[0].mxu0 %v1445
        %v1654 = vpop.f32.mrb[0].mxu0
        %v1655 = vadd.f32 0.0, %v1654
        %v1656 = vpop.f32.mrb[0].mxu0
        %v1657 = vadd.f32 0.0, %v1656
        %1658 = vmatprep.mubr.f32.mxu0 0.0
        %1659 = vmatmul.mubr.f32.gmra.mrb[0].mxu0 %v1448
        %v1660 = vpop.f32.mrb[0].mxu0
        %v1661 = vadd.f32 0.0, %v1660
        %v1662 = vpop.f32.mrb[0].mxu0
        %v1663 = vadd.f32 0.0, %v1662
        %1664 = vmatprep.mubr.f32.mxu0 0.0
        %1665 = vmatmul.mubr.f32.gmra.mrb[0].mxu0 %v1451
        %v1666 = vpop.f32.mrb[0].mxu0
        %v1667 = vadd.f32 0.0, %v1666
        %v1668 = vpop.f32.mrb[0].mxu0
        %v1669 = vadd.f32 0.0, %v1668
        %1670 = vmatprep.mubr.f32.mxu0 0.0
        %1671 = vmatmul.mubr.f32.gmra.mrb[0].mxu0 %v1454
        %v1672 = vpop.f32.mrb[0].mxu0
        %v1673 = vadd.f32 0.0, %v1672
        %v1674 = vpop.f32.mrb[0].mxu0
        %v1675 = vadd.f32 0.0, %v1674
        %1676 = vmatprep.mubr.f32.mxu0 0.0
        %1677 = vmatmul.mubr.f32.gmra.mrb[0].mxu0 %v1457
        %v1678 = vpop.f32.mrb[0].mxu0
        %v1679 = vadd.f32 0.0, %v1678
        %v1680 = vpop.f32.mrb[0].mxu0
        %v1681 = vadd.f32 0.0, %v1680
        %1682 = vmatprep.mubr.f32.mxu0 0.0
        %1683 = vmatmul.mubr.f32.gmra.mrb[0].mxu0 %v1460
        %v1684 = vpop.f32.mrb[0].mxu0
        %v1685 = vadd.f32 0.0, %v1684
        %v1686 = vpop.f32.mrb[0].mxu0
        %v1687 = vadd.f32 0.0, %v1686
        %1688 = vmatprep.mubr.f32.mxu0 0.0
        %1689 = vmatmul.mubr.f32.gmra.mrb[0].mxu0 %v1463
        %v1690 = vpop.f32.mrb[0].mxu0
        %v1691 = vadd.f32 0.0, %v1690
        %v1692 = vpop.f32.mrb[0].mxu0
        %v1693 = vadd.f32 0.0, %v1692
        %1694 = vmatprep.mubr.f32.mxu0 0.0
        %1695 = vmatmul.mubr.f32.gmra.mrb[0].mxu0 %v1466
        %v1696 = vpop.f32.mrb[0].mxu0
        %v1697 = vadd.f32 0.0, %v1696
        %v1698 = vpop.f32.mrb[0].mxu0
        %v1699 = vadd.f32 0.0, %v1698
        %1700 = vmatprep.mubr.f32.mxu0 0.0
        %1701 = vmatmul.mubr.f32.gmra.mrb[0].mxu0 %v1469
        %v1702 = vpop.f32.mrb[0].mxu0
        %v1703 = vadd.f32 0.0, %v1702
        %v1704 = vpop.f32.mrb[0].mxu0
        %v1705 = vadd.f32 0.0, %v1704
        %1706 = vmatprep.mubr.f32.mxu0 0.0
        %1707 = vmatmul.mubr.f32.gmra.mrb[0].mxu0 %v1472
        %v1708 = vpop.f32.mrb[0].mxu0
        %v1709 = vadd.f32 0.0, %v1708
        %v1710 = vpop.f32.mrb[0].mxu0
        %v1711 = vadd.f32 0.0, %v1710
        %1712 = vmatprep.mubr.f32.mxu0 0.0
        %1713 = vmatmul.mubr.f32.gmra.mrb[0].mxu0 %v1475
        %v1714 = vpop.f32.mrb[0].mxu0
        %v1715 = vadd.f32 0.0, %v1714
        %v1716 = vpop.f32.mrb[0].mxu0
        %v1717 = vadd.f32 0.0, %v1716
        %1718 = vmatprep.mubr.f32.mxu0 0.0
        %1719 = vmatmul.mubr.f32.gmra.mrb[0].mxu0 %v1478
        %v1720 = vpop.f32.mrb[0].mxu0
        %v1721 = vadd.f32 0.0, %v1720
        %v1722 = vpop.f32.mrb[0].mxu0
        %v1723 = vadd.f32 0.0, %v1722
        %1724 = vmatprep.mubr.f32.mxu0 0.0
        %1725 = vmatmul.mubr.f32.gmra.mrb[0].mxu0 %v1481
        %v1726 = vpop.f32.mrb[0].mxu0
        %v1727 = vadd.f32 0.0, %v1726
        %v1728 = vpop.f32.mrb[0].mxu0
        %v1729 = vadd.f32 0.0, %v1728
        %1730 = vmatprep.mubr.f32.mxu0 0.0
        %1731 = vmatmul.mubr.f32.gmra.mrb[0].mxu0 %v1484
        %v1732 = vpop.f32.mrb[0].mxu0
        %v1733 = vadd.f32 0.0, %v1732
        %v1734 = vpop.f32.mrb[0].mxu0
        %v1735 = vadd.f32 0.0, %v1734
        %1736 = vmatprep.mubr.f32.mxu0 0.0
        %1737 = vmatmul.mubr.f32.gmra.mrb[0].mxu0 %v1487
        %v1738 = vpop.f32.mrb[0].mxu0
        %v1739 = vadd.f32 0.0, %v1738
        %v1740 = vpop.f32.mrb[0].mxu0
        %v1741 = vadd.f32 0.0, %v1740
        %1742 = vmatprep.mubr.f32.mxu0 0.0
        %1743 = vmatmul.mubr.f32.gmra.mrb[0].mxu0 %v1490
        %v1744 = vpop.f32.mrb[0].mxu0
        %v1745 = vadd.f32 0.0, %v1744
        %v1746 = vpop.f32.mrb[0].mxu0
        %v1747 = vadd.f32 0.0, %v1746
        %1748 = vdwg.mxu0
        %1749 = vxpose.xlu0.b32.start [1/16] %v469, 128
        %1750 = vxpose.xlu0.b32.cont [2/16] 0.0, 128
        %1751 = vxpose.xlu0.b32.cont [3/16] 0.0, 128
        %1752 = vxpose.xlu0.b32.cont [4/16] 0.0, 128
        %1753 = vxpose.xlu0.b32.cont [5/16] 0.0, 128
        %1754 = vxpose.xlu0.b32.cont [6/16] 0.0, 128
        %1755 = vxpose.xlu0.b32.cont [7/16] 0.0, 128
        %1756 = vxpose.xlu0.b32.cont [8/16] 0.0, 128
        %1757 = vxpose.xlu0.b32.cont [9/16] 0.0, 128
        %1758 = vxpose.xlu0.b32.cont [10/16] 0.0, 128
        %1759 = vxpose.xlu0.b32.cont [11/16] 0.0, 128
        %1760 = vxpose.xlu0.b32.cont [12/16] 0.0, 128
        %1761 = vxpose.xlu0.b32.cont [13/16] 0.0, 128
        %1762 = vxpose.xlu0.b32.cont [14/16] 0.0, 128
        %1763 = vxpose.xlu0.b32.cont [15/16] 0.0, 128
        %1764 = vxpose.xlu0.b32.end [16/16] 0.0, 128
        %v1765 = vpop.trf.xlu0
        %v1766 = vpop.trf.xlu0
        %v1767 = vpop.trf.xlu0
        %v1768 = vpop.trf.xlu0
        %v1769 = vpop.trf.xlu0
        %v1770 = vpop.trf.xlu0
        %v1771 = vpop.trf.xlu0
        %v1772 = vpop.trf.xlu0
        %v1773 = vpop.trf.xlu0
        %v1774 = vpop.trf.xlu0
        %v1775 = vpop.trf.xlu0
        %v1776 = vpop.trf.xlu0
        %v1777 = vpop.trf.xlu0
        %v1778 = vpop.trf.xlu0
        %v1779 = vpop.trf.xlu0
        %v1780 = vpop.trf.xlu0
        %1781 = vxpose.xlu0.b32.start [1/16] %v471, 128
        %1782 = vxpose.xlu0.b32.cont [2/16] 0.0, 128
        %1783 = vxpose.xlu0.b32.cont [3/16] 0.0, 128
        %1784 = vxpose.xlu0.b32.cont [4/16] 0.0, 128
        %1785 = vxpose.xlu0.b32.cont [5/16] 0.0, 128
        %1786 = vxpose.xlu0.b32.cont [6/16] 0.0, 128
        %1787 = vxpose.xlu0.b32.cont [7/16] 0.0, 128
        %1788 = vxpose.xlu0.b32.cont [8/16] 0.0, 128
        %1789 = vxpose.xlu0.b32.cont [9/16] 0.0, 128
        %1790 = vxpose.xlu0.b32.cont [10/16] 0.0, 128
        %1791 = vxpose.xlu0.b32.cont [11/16] 0.0, 128
        %1792 = vxpose.xlu0.b32.cont [12/16] 0.0, 128
        %1793 = vxpose.xlu0.b32.cont [13/16] 0.0, 128
        %1794 = vxpose.xlu0.b32.cont [14/16] 0.0, 128
        %1795 = vxpose.xlu0.b32.cont [15/16] 0.0, 128
        %1796 = vxpose.xlu0.b32.end [16/16] 0.0, 128
        %v1797 = vpop.trf.xlu0
        %v1798 = vpop.trf.xlu0
        %v1799 = vpop.trf.xlu0
        %v1800 = vpop.trf.xlu0
        %v1801 = vpop.trf.xlu0
        %v1802 = vpop.trf.xlu0
        %v1803 = vpop.trf.xlu0
        %v1804 = vpop.trf.xlu0
        %v1805 = vpop.trf.xlu0
        %v1806 = vpop.trf.xlu0
        %v1807 = vpop.trf.xlu0
        %v1808 = vpop.trf.xlu0
        %v1809 = vpop.trf.xlu0
        %v1810 = vpop.trf.xlu0
        %v1811 = vpop.trf.xlu0
        %v1812 = vpop.trf.xlu0
        %v1814 = vsel %vm561, %v1765, 0
        %v1817 = vsel %vm561, %v1766, 0
        %v1820 = vsel %vm561, %v1767, 0
        %v1823 = vsel %vm561, %v1768, 0
        %v1826 = vsel %vm561, %v1769, 0
        %v1829 = vsel %vm561, %v1770, 0
        %v1832 = vsel %vm561, %v1771, 0
        %v1835 = vsel %vm561, %v1772, 0
        %v1838 = vsel %vm561, %v1773, 0
        %v1841 = vsel %vm561, %v1774, 0
        %v1844 = vsel %vm561, %v1775, 0
        %v1847 = vsel %vm561, %v1776, 0
        %v1850 = vsel %vm561, %v1777, 0
        %v1853 = vsel %vm561, %v1778, 0
        %v1856 = vsel %vm561, %v1779, 0
        %v1859 = vsel %vm561, %v1780, 0
        %v1862 = vsel %vm561, %v1797, 0
        %v1865 = vsel %vm561, %v1798, 0
        %v1868 = vsel %vm561, %v1799, 0
        %v1871 = vsel %vm561, %v1800, 0
        %v1874 = vsel %vm561, %v1801, 0
        %v1877 = vsel %vm561, %v1802, 0
        %v1880 = vsel %vm561, %v1803, 0
        %v1883 = vsel %vm561, %v1804, 0
        %v1886 = vsel %vm561, %v1805, 0
        %v1889 = vsel %vm561, %v1806, 0
        %v1892 = vsel %vm561, %v1807, 0
        %v1895 = vsel %vm561, %v1808, 0
        %v1898 = vsel %vm561, %v1809, 0
        %v1901 = vsel %vm561, %v1810, 0
        %v1904 = vsel %vm561, %v1811, 0
        %v1907 = vsel %vm561, %v1812, 0
        %1909 = vmatprep.subr.mxu0 %v447
        %1910 = vmatpush1.msra.mxu0 %v445
        %1911 = vmatprep.subr.mxu0 0.0
        %1912 = vmatpush1.msra.mxu0 0.0
        %1913 = vmatprep.subr.mxu0 0.0
        %1914 = vmatpush1.msra.mxu0 0.0
        %1915 = vmatprep.subr.mxu0 0.0
        %1916 = vmatpush1.msra.mxu0 0.0
        %1917 = vmatprep.subr.mxu0 0.0
        %1918 = vmatpush1.msra.mxu0 0.0
        %1919 = vmatprep.subr.mxu0 0.0
        %1920 = vmatpush1.msra.mxu0 0.0
        %1921 = vmatprep.subr.mxu0 0.0
        %1922 = vmatpush1.msra.mxu0 0.0
        %1923 = vmatprep.subr.mxu0 0.0
        %1924 = vmatpush1.msra.mxu0 0.0
        %1925 = vmatprep.subr.mxu0 0.0
        %1926 = vmatpush1.msra.mxu0 0.0
        %1927 = vmatprep.subr.mxu0 0.0
        %1928 = vmatpush1.msra.mxu0 0.0
        %1929 = vmatprep.subr.mxu0 0.0
        %1930 = vmatpush1.msra.mxu0 0.0
        %1931 = vmatprep.subr.mxu0 0.0
        %1932 = vmatpush1.msra.mxu0 0.0
        %1933 = vmatprep.subr.mxu0 0.0
        %1934 = vmatpush1.msra.mxu0 0.0
        %1935 = vmatprep.subr.mxu0 0.0
        %1936 = vmatpush1.msra.mxu0 0.0
        %1937 = vmatprep.subr.mxu0 0.0
        %1938 = vmatpush1.msra.mxu0 0.0
        %1939 = vmatprep.subr.mxu0 0.0
        %1940 = vmatpush1.msra.mxu0 0.0
        %1941 = vmatprep.subr.mxu0 0.0
        %1942 = vmatpush1.msra.mxu0 0.0
        %1943 = vmatprep.subr.mxu0 0.0
        %1944 = vmatpush1.msra.mxu0 0.0
        %1945 = vmatprep.subr.mxu0 0.0
        %1946 = vmatpush1.msra.mxu0 0.0
        %1947 = vmatprep.subr.mxu0 0.0
        %1948 = vmatpush1.msra.mxu0 0.0
        %1949 = vmatprep.subr.mxu0 0.0
        %1950 = vmatpush1.msra.mxu0 0.0
        %1951 = vmatprep.subr.mxu0 0.0
        %1952 = vmatpush1.msra.mxu0 0.0
        %1953 = vmatprep.subr.mxu0 0.0
        %1954 = vmatpush1.msra.mxu0 0.0
        %1955 = vmatprep.subr.mxu0 0.0
        %1956 = vmatpush1.msra.mxu0 0.0
        %1957 = vmatprep.subr.mxu0 0.0
        %1958 = vmatpush1.msra.mxu0 0.0
        %1959 = vmatprep.subr.mxu0 0.0
        %1960 = vmatpush1.msra.mxu0 0.0
        %1961 = vmatprep.subr.mxu0 0.0
        %1962 = vmatpush1.msra.mxu0 0.0
        %1963 = vmatprep.subr.mxu0 0.0
        %1964 = vmatpush1.msra.mxu0 0.0
        %1965 = vmatprep.subr.mxu0 0.0
        %1966 = vmatpush1.msra.mxu0 0.0
        %1967 = vmatprep.subr.mxu0 0.0
        %1968 = vmatpush1.msra.mxu0 0.0
        %1969 = vmatprep.subr.mxu0 0.0
        %1970 = vmatpush1.msra.mxu0 0.0
        %1971 = vmatprep.subr.mxu0 0.0
        %1972 = vmatpush1.msra.mxu0 0.0
        %1973 = vmatprep.mubr.f32.mxu0 0.0
        %1974 = vmatmul.mubr.f32.gmra.mrb[0].mxu0 %v1814
        %v1975 = vpop.f32.mrb[0].mxu0
        %v1976 = vadd.f32 0.0, %v1975
        %v1977 = vpop.f32.mrb[0].mxu0
        %v1978 = vadd.f32 0.0, %v1977
        %1979 = vmatprep.mubr.f32.mxu0 0.0
        %1980 = vmatmul.mubr.f32.gmra.mrb[0].mxu0 %v1817
        %v1981 = vpop.f32.mrb[0].mxu0
        %v1982 = vadd.f32 0.0, %v1981
        %v1983 = vpop.f32.mrb[0].mxu0
        %v1984 = vadd.f32 0.0, %v1983
        %1985 = vmatprep.mubr.f32.mxu0 0.0
        %1986 = vmatmul.mubr.f32.gmra.mrb[0].mxu0 %v1820
        %v1987 = vpop.f32.mrb[0].mxu0
        %v1988 = vadd.f32 0.0, %v1987
        %v1989 = vpop.f32.mrb[0].mxu0
        %v1990 = vadd.f32 0.0, %v1989
        %1991 = vmatprep.mubr.f32.mxu0 0.0
        %1992 = vmatmul.mubr.f32.gmra.mrb[0].mxu0 %v1823
        %v1993 = vpop.f32.mrb[0].mxu0
        %v1994 = vadd.f32 0.0, %v1993
        %v1995 = vpop.f32.mrb[0].mxu0
        %v1996 = vadd.f32 0.0, %v1995
        %1997 = vmatprep.mubr.f32.mxu0 0.0
        %1998 = vmatmul.mubr.f32.gmra.mrb[0].mxu0 %v1826
        %v1999 = vpop.f32.mrb[0].mxu0
        %v2000 = vadd.f32 0.0, %v1999
        %v2001 = vpop.f32.mrb[0].mxu0
        %v2002 = vadd.f32 0.0, %v2001
        %2003 = vmatprep.mubr.f32.mxu0 0.0
        %2004 = vmatmul.mubr.f32.gmra.mrb[0].mxu0 %v1829
        %v2005 = vpop.f32.mrb[0].mxu0
        %v2006 = vadd.f32 0.0, %v2005
        %v2007 = vpop.f32.mrb[0].mxu0
        %v2008 = vadd.f32 0.0, %v2007
        %2009 = vmatprep.mubr.f32.mxu0 0.0
        %2010 = vmatmul.mubr.f32.gmra.mrb[0].mxu0 %v1832
        %v2011 = vpop.f32.mrb[0].mxu0
        %v2012 = vadd.f32 0.0, %v2011
        %v2013 = vpop.f32.mrb[0].mxu0
        %v2014 = vadd.f32 0.0, %v2013
        %2015 = vmatprep.mubr.f32.mxu0 0.0
        %2016 = vmatmul.mubr.f32.gmra.mrb[0].mxu0 %v1835
        %v2017 = vpop.f32.mrb[0].mxu0
        %v2018 = vadd.f32 0.0, %v2017
        %v2019 = vpop.f32.mrb[0].mxu0
        %v2020 = vadd.f32 0.0, %v2019
        %2021 = vmatprep.mubr.f32.mxu0 0.0
        %2022 = vmatmul.mubr.f32.gmra.mrb[0].mxu0 %v1838
        %v2023 = vpop.f32.mrb[0].mxu0
        %v2024 = vadd.f32 0.0, %v2023
        %v2025 = vpop.f32.mrb[0].mxu0
        %v2026 = vadd.f32 0.0, %v2025
        %2027 = vmatprep.mubr.f32.mxu0 0.0
        %2028 = vmatmul.mubr.f32.gmra.mrb[0].mxu0 %v1841
        %v2029 = vpop.f32.mrb[0].mxu0
        %v2030 = vadd.f32 0.0, %v2029
        %v2031 = vpop.f32.mrb[0].mxu0
        %v2032 = vadd.f32 0.0, %v2031
        %2033 = vmatprep.mubr.f32.mxu0 0.0
        %2034 = vmatmul.mubr.f32.gmra.mrb[0].mxu0 %v1844
        %v2035 = vpop.f32.mrb[0].mxu0
        %v2036 = vadd.f32 0.0, %v2035
        %v2037 = vpop.f32.mrb[0].mxu0
        %v2038 = vadd.f32 0.0, %v2037
        %2039 = vmatprep.mubr.f32.mxu0 0.0
        %2040 = vmatmul.mubr.f32.gmra.mrb[0].mxu0 %v1847
        %v2041 = vpop.f32.mrb[0].mxu0
        %v2042 = vadd.f32 0.0, %v2041
        %v2043 = vpop.f32.mrb[0].mxu0
        %v2044 = vadd.f32 0.0, %v2043
        %2045 = vmatprep.mubr.f32.mxu0 0.0
        %2046 = vmatmul.mubr.f32.gmra.mrb[0].mxu0 %v1850
        %v2047 = vpop.f32.mrb[0].mxu0
        %v2048 = vadd.f32 0.0, %v2047
        %v2049 = vpop.f32.mrb[0].mxu0
        %v2050 = vadd.f32 0.0, %v2049
        %2051 = vmatprep.mubr.f32.mxu0 0.0
        %2052 = vmatmul.mubr.f32.gmra.mrb[0].mxu0 %v1853
        %v2053 = vpop.f32.mrb[0].mxu0
        %v2054 = vadd.f32 0.0, %v2053
        %v2055 = vpop.f32.mrb[0].mxu0
        %v2056 = vadd.f32 0.0, %v2055
        %2057 = vmatprep.mubr.f32.mxu0 0.0
        %2058 = vmatmul.mubr.f32.gmra.mrb[0].mxu0 %v1856
        %v2059 = vpop.f32.mrb[0].mxu0
        %v2060 = vadd.f32 0.0, %v2059
        %v2061 = vpop.f32.mrb[0].mxu0
        %v2062 = vadd.f32 0.0, %v2061
        %2063 = vmatprep.mubr.f32.mxu0 0.0
        %2064 = vmatmul.mubr.f32.gmra.mrb[0].mxu0 %v1859
        %v2065 = vpop.f32.mrb[0].mxu0
        %v2066 = vadd.f32 0.0, %v2065
        %v2067 = vpop.f32.mrb[0].mxu0
        %v2068 = vadd.f32 0.0, %v2067
        %2069 = vmatprep.mubr.f32.mxu0 0.0
        %2070 = vmatmul.mubr.f32.gmra.mrb[0].mxu0 %v1862
        %v2071 = vpop.f32.mrb[0].mxu0
        %v2072 = vadd.f32 0.0, %v2071
        %v2073 = vpop.f32.mrb[0].mxu0
        %v2074 = vadd.f32 0.0, %v2073
        %2075 = vmatprep.mubr.f32.mxu0 0.0
        %2076 = vmatmul.mubr.f32.gmra.mrb[0].mxu0 %v1865
        %v2077 = vpop.f32.mrb[0].mxu0
        %v2078 = vadd.f32 0.0, %v2077
        %v2079 = vpop.f32.mrb[0].mxu0
        %v2080 = vadd.f32 0.0, %v2079
        %2081 = vmatprep.mubr.f32.mxu0 0.0
        %2082 = vmatmul.mubr.f32.gmra.mrb[0].mxu0 %v1868
        %v2083 = vpop.f32.mrb[0].mxu0
        %v2084 = vadd.f32 0.0, %v2083
        %v2085 = vpop.f32.mrb[0].mxu0
        %v2086 = vadd.f32 0.0, %v2085
        %2087 = vmatprep.mubr.f32.mxu0 0.0
        %2088 = vmatmul.mubr.f32.gmra.mrb[0].mxu0 %v1871
        %v2089 = vpop.f32.mrb[0].mxu0
        %v2090 = vadd.f32 0.0, %v2089
        %v2091 = vpop.f32.mrb[0].mxu0
        %v2092 = vadd.f32 0.0, %v2091
        %2093 = vmatprep.mubr.f32.mxu0 0.0
        %2094 = vmatmul.mubr.f32.gmra.mrb[0].mxu0 %v1874
        %v2095 = vpop.f32.mrb[0].mxu0
        %v2096 = vadd.f32 0.0, %v2095
        %v2097 = vpop.f32.mrb[0].mxu0
        %v2098 = vadd.f32 0.0, %v2097
        %2099 = vmatprep.mubr.f32.mxu0 0.0
        %2100 = vmatmul.mubr.f32.gmra.mrb[0].mxu0 %v1877
        %v2101 = vpop.f32.mrb[0].mxu0
        %v2102 = vadd.f32 0.0, %v2101
        %v2103 = vpop.f32.mrb[0].mxu0
        %v2104 = vadd.f32 0.0, %v2103
        %2105 = vmatprep.mubr.f32.mxu0 0.0
        %2106 = vmatmul.mubr.f32.gmra.mrb[0].mxu0 %v1880
        %v2107 = vpop.f32.mrb[0].mxu0
        %v2108 = vadd.f32 0.0, %v2107
        %v2109 = vpop.f32.mrb[0].mxu0
        %v2110 = vadd.f32 0.0, %v2109
        %2111 = vmatprep.mubr.f32.mxu0 0.0
        %2112 = vmatmul.mubr.f32.gmra.mrb[0].mxu0 %v1883
        %v2113 = vpop.f32.mrb[0].mxu0
        %v2114 = vadd.f32 0.0, %v2113
        %v2115 = vpop.f32.mrb[0].mxu0
        %v2116 = vadd.f32 0.0, %v2115
        %2117 = vmatprep.mubr.f32.mxu0 0.0
        %2118 = vmatmul.mubr.f32.gmra.mrb[0].mxu0 %v1886
        %v2119 = vpop.f32.mrb[0].mxu0
        %v2120 = vadd.f32 0.0, %v2119
        %v2121 = vpop.f32.mrb[0].mxu0
        %v2122 = vadd.f32 0.0, %v2121
        %2123 = vmatprep.mubr.f32.mxu0 0.0
        %2124 = vmatmul.mubr.f32.gmra.mrb[0].mxu0 %v1889
        %v2125 = vpop.f32.mrb[0].mxu0
        %v2126 = vadd.f32 0.0, %v2125
        %v2127 = vpop.f32.mrb[0].mxu0
        %v2128 = vadd.f32 0.0, %v2127
        %2129 = vmatprep.mubr.f32.mxu0 0.0
        %2130 = vmatmul.mubr.f32.gmra.mrb[0].mxu0 %v1892
        %v2131 = vpop.f32.mrb[0].mxu0
        %v2132 = vadd.f32 0.0, %v2131
        %v2133 = vpop.f32.mrb[0].mxu0
        %v2134 = vadd.f32 0.0, %v2133
        %2135 = vmatprep.mubr.f32.mxu0 0.0
        %2136 = vmatmul.mubr.f32.gmra.mrb[0].mxu0 %v1895
        %v2137 = vpop.f32.mrb[0].mxu0
        %v2138 = vadd.f32 0.0, %v2137
        %v2139 = vpop.f32.mrb[0].mxu0
        %v2140 = vadd.f32 0.0, %v2139
        %2141 = vmatprep.mubr.f32.mxu0 0.0
        %2142 = vmatmul.mubr.f32.gmra.mrb[0].mxu0 %v1898
        %v2143 = vpop.f32.mrb[0].mxu0
        %v2144 = vadd.f32 0.0, %v2143
        %v2145 = vpop.f32.mrb[0].mxu0
        %v2146 = vadd.f32 0.0, %v2145
        %2147 = vmatprep.mubr.f32.mxu0 0.0
        %2148 = vmatmul.mubr.f32.gmra.mrb[0].mxu0 %v1901
        %v2149 = vpop.f32.mrb[0].mxu0
        %v2150 = vadd.f32 0.0, %v2149
        %v2151 = vpop.f32.mrb[0].mxu0
        %v2152 = vadd.f32 0.0, %v2151
        %2153 = vmatprep.mubr.f32.mxu0 0.0
        %2154 = vmatmul.mubr.f32.gmra.mrb[0].mxu0 %v1904
        %v2155 = vpop.f32.mrb[0].mxu0
        %v2156 = vadd.f32 0.0, %v2155
        %v2157 = vpop.f32.mrb[0].mxu0
        %v2158 = vadd.f32 0.0, %v2157
        %2159 = vmatprep.mubr.f32.mxu0 0.0
        %2160 = vmatmul.mubr.f32.gmra.mrb[0].mxu0 %v1907
        %v2161 = vpop.f32.mrb[0].mxu0
        %v2162 = vadd.f32 0.0, %v2161
        %v2163 = vpop.f32.mrb[0].mxu0
        %v2164 = vadd.f32 0.0, %v2163
        %2165 = vdwg.mxu0
        %v2166 = vmax.f32 %v725, %v731
        %v2167 = vmax.f32 %v2166, %v737
        %v2168 = vmax.f32 %v2167, %v743
        %v2169 = vmax.f32 %v2168, %v749
        %v2170 = vmax.f32 %v2169, %v755
        %v2171 = vmax.f32 %v2170, %v761
        %v2172 = vmax.f32 %v2171, %v767
        %v2173 = vmax.f32 %v2172, %v773
        %v2174 = vmax.f32 %v2173, %v779
        %v2175 = vmax.f32 %v2174, %v785
        %v2176 = vmax.f32 %v2175, %v791
        %v2177 = vmax.f32 %v2176, %v797
        %v2178 = vmax.f32 %v2177, %v803
        %v2179 = vmax.f32 %v2178, %v809
        %v2180 = vmax.f32 %v2179, %v815
        %v2181 = vmax.f32 %v2180, %v821
        %v2182 = vmax.f32 %v2181, %v827
        %v2183 = vmax.f32 %v2182, %v833
        %v2184 = vmax.f32 %v2183, %v839
        %v2185 = vmax.f32 %v2184, %v845
        %v2186 = vmax.f32 %v2185, %v851
        %v2187 = vmax.f32 %v2186, %v857
        %v2188 = vmax.f32 %v2187, %v863
        %v2189 = vmax.f32 %v2188, %v869
        %v2190 = vmax.f32 %v2189, %v875
        %v2191 = vmax.f32 %v2190, %v881
        %v2192 = vmax.f32 %v2191, %v887
        %v2193 = vmax.f32 %v2192, %v893
        %v2194 = vmax.f32 %v2193, %v899
        %v2195 = vmax.f32 %v2194, %v905
        %v2196 = vmax.f32 %v2195, %v911
        %v2197 = vrot.slane %v2196, 4
        %v2198 = vmax.f32 %v2196, %v2197
        %v2199 = vrot.slane %v2198, 2
        %v2200 = vmax.f32 %v2198, %v2199
        %v2201 = vrot.slane %v2200, 1
        %v2202 = vmax.f32 %v2200, %v2201
        %v2203 = vmax.f32 %v727, %v733
        %v2204 = vmax.f32 %v2203, %v739
        %v2205 = vmax.f32 %v2204, %v745
        %v2206 = vmax.f32 %v2205, %v751
        %v2207 = vmax.f32 %v2206, %v757
        %v2208 = vmax.f32 %v2207, %v763
        %v2209 = vmax.f32 %v2208, %v769
        %v2210 = vmax.f32 %v2209, %v775
        %v2211 = vmax.f32 %v2210, %v781
        %v2212 = vmax.f32 %v2211, %v787
        %v2213 = vmax.f32 %v2212, %v793
        %v2214 = vmax.f32 %v2213, %v799
        %v2215 = vmax.f32 %v2214, %v805
        %v2216 = vmax.f32 %v2215, %v811
        %v2217 = vmax.f32 %v2216, %v817
        %v2218 = vmax.f32 %v2217, %v823
        %v2219 = vmax.f32 %v2218, %v829
        %v2220 = vmax.f32 %v2219, %v835
        %v2221 = vmax.f32 %v2220, %v841
        %v2222 = vmax.f32 %v2221, %v847
        %v2223 = vmax.f32 %v2222, %v853
        %v2224 = vmax.f32 %v2223, %v859
        %v2225 = vmax.f32 %v2224, %v865
        %v2226 = vmax.f32 %v2225, %v871
        %v2227 = vmax.f32 %v2226, %v877
        %v2228 = vmax.f32 %v2227, %v883
        %v2229 = vmax.f32 %v2228, %v889
        %v2230 = vmax.f32 %v2229, %v895
        %v2231 = vmax.f32 %v2230, %v901
        %v2232 = vmax.f32 %v2231, %v907
        %v2233 = vmax.f32 %v2232, %v913
        %v2234 = vrot.slane %v2233, 4
        %v2235 = vmax.f32 %v2233, %v2234
        %v2236 = vrot.slane %v2235, 2
        %v2237 = vmax.f32 %v2235, %v2236
        %v2238 = vrot.slane %v2237, 1
        %v2239 = vmax.f32 %v2237, %v2238
        %v2240 = vmax.f32 %v1142, %v1148
        %v2241 = vmax.f32 %v2240, %v1154
        %v2242 = vmax.f32 %v2241, %v1160
        %v2243 = vmax.f32 %v2242, %v1166
        %v2244 = vmax.f32 %v2243, %v1172
        %v2245 = vmax.f32 %v2244, %v1178
        %v2246 = vmax.f32 %v2245, %v1184
        %v2247 = vmax.f32 %v2246, %v1190
        %v2248 = vmax.f32 %v2247, %v1196
        %v2249 = vmax.f32 %v2248, %v1202
        %v2250 = vmax.f32 %v2249, %v1208
        %v2251 = vmax.f32 %v2250, %v1214
        %v2252 = vmax.f32 %v2251, %v1220
        %v2253 = vmax.f32 %v2252, %v1226
        %v2254 = vmax.f32 %v2253, %v1232
        %v2255 = vmax.f32 %v2254, %v1238
        %v2256 = vmax.f32 %v2255, %v1244
        %v2257 = vmax.f32 %v2256, %v1250
        %v2258 = vmax.f32 %v2257, %v1256
        %v2259 = vmax.f32 %v2258, %v1262
        %v2260 = vmax.f32 %v2259, %v1268
        %v2261 = vmax.f32 %v2260, %v1274
        %v2262 = vmax.f32 %v2261, %v1280
        %v2263 = vmax.f32 %v2262, %v1286
        %v2264 = vmax.f32 %v2263, %v1292
        %v2265 = vmax.f32 %v2264, %v1298
        %v2266 = vmax.f32 %v2265, %v1304
        %v2267 = vmax.f32 %v2266, %v1310
        %v2268 = vmax.f32 %v2267, %v1316
        %v2269 = vmax.f32 %v2268, %v1322
        %v2270 = vmax.f32 %v2269, %v1328
        %v2271 = vrot.slane %v2270, 4
        %v2272 = vmax.f32 %v2270, %v2271
        %v2273 = vrot.slane %v2272, 2
        %v2274 = vmax.f32 %v2272, %v2273
        %v2275 = vrot.slane %v2274, 1
        %v2276 = vmax.f32 %v2274, %v2275
        %v2277 = vmax.f32 %v1144, %v1150
        %v2278 = vmax.f32 %v2277, %v1156
        %v2279 = vmax.f32 %v2278, %v1162
        %v2280 = vmax.f32 %v2279, %v1168
        %v2281 = vmax.f32 %v2280, %v1174
        %v2282 = vmax.f32 %v2281, %v1180
        %v2283 = vmax.f32 %v2282, %v1186
        %v2284 = vmax.f32 %v2283, %v1192
        %v2285 = vmax.f32 %v2284, %v1198
        %v2286 = vmax.f32 %v2285, %v1204
        %v2287 = vmax.f32 %v2286, %v1210
        %v2288 = vmax.f32 %v2287, %v1216
        %v2289 = vmax.f32 %v2288, %v1222
        %v2290 = vmax.f32 %v2289, %v1228
        %v2291 = vmax.f32 %v2290, %v1234
        %v2292 = vmax.f32 %v2291, %v1240
        %v2293 = vmax.f32 %v2292, %v1246
        %v2294 = vmax.f32 %v2293, %v1252
        %v2295 = vmax.f32 %v2294, %v1258
        %v2296 = vmax.f32 %v2295, %v1264
        %v2297 = vmax.f32 %v2296, %v1270
        %v2298 = vmax.f32 %v2297, %v1276
        %v2299 = vmax.f32 %v2298, %v1282
        %v2300 = vmax.f32 %v2299, %v1288
        %v2301 = vmax.f32 %v2300, %v1294
        %v2302 = vmax.f32 %v2301, %v1300
        %v2303 = vmax.f32 %v2302, %v1306
        %v2304 = vmax.f32 %v2303, %v1312
        %v2305 = vmax.f32 %v2304, %v1318
        %v2306 = vmax.f32 %v2305, %v1324
        %v2307 = vmax.f32 %v2306, %v1330
        %v2308 = vrot.slane %v2307, 4
        %v2309 = vmax.f32 %v2307, %v2308
        %v2310 = vrot.slane %v2309, 2
        %v2311 = vmax.f32 %v2309, %v2310
        %v2312 = vrot.slane %v2311, 1
        %v2313 = vmax.f32 %v2311, %v2312
        %v2314 = vmax.f32 %v1559, %v1565
        %v2315 = vmax.f32 %v2314, %v1571
        %v2316 = vmax.f32 %v2315, %v1577
        %v2317 = vmax.f32 %v2316, %v1583
        %v2318 = vmax.f32 %v2317, %v1589
        %v2319 = vmax.f32 %v2318, %v1595
        %v2320 = vmax.f32 %v2319, %v1601
        %v2321 = vmax.f32 %v2320, %v1607
        %v2322 = vmax.f32 %v2321, %v1613
        %v2323 = vmax.f32 %v2322, %v1619
        %v2324 = vmax.f32 %v2323, %v1625
        %v2325 = vmax.f32 %v2324, %v1631
        %v2326 = vmax.f32 %v2325, %v1637
        %v2327 = vmax.f32 %v2326, %v1643
        %v2328 = vmax.f32 %v2327, %v1649
        %v2329 = vmax.f32 %v2328, %v1655
        %v2330 = vmax.f32 %v2329, %v1661
        %v2331 = vmax.f32 %v2330, %v1667
        %v2332 = vmax.f32 %v2331, %v1673
        %v2333 = vmax.f32 %v2332, %v1679
        %v2334 = vmax.f32 %v2333, %v1685
        %v2335 = vmax.f32 %v2334, %v1691
        %v2336 = vmax.f32 %v2335, %v1697
        %v2337 = vmax.f32 %v2336, %v1703
        %v2338 = vmax.f32 %v2337, %v1709
        %v2339 = vmax.f32 %v2338, %v1715
        %v2340 = vmax.f32 %v2339, %v1721
        %v2341 = vmax.f32 %v2340, %v1727
        %v2342 = vmax.f32 %v2341, %v1733
        %v2343 = vmax.f32 %v2342, %v1739
        %v2344 = vmax.f32 %v2343, %v1745
        %v2345 = vrot.slane %v2344, 4
        %v2346 = vmax.f32 %v2344, %v2345
        %v2347 = vrot.slane %v2346, 2
        %v2348 = vmax.f32 %v2346, %v2347
        %v2349 = vrot.slane %v2348, 1
        %v2350 = vmax.f32 %v2348, %v2349
        %v2351 = vmax.f32 %v1561, %v1567
        %v2352 = vmax.f32 %v2351, %v1573
        %v2353 = vmax.f32 %v2352, %v1579
        %v2354 = vmax.f32 %v2353, %v1585
        %v2355 = vmax.f32 %v2354, %v1591
        %v2356 = vmax.f32 %v2355, %v1597
        %v2357 = vmax.f32 %v2356, %v1603
        %v2358 = vmax.f32 %v2357, %v1609
        %v2359 = vmax.f32 %v2358, %v1615
        %v2360 = vmax.f32 %v2359, %v1621
        %v2361 = vmax.f32 %v2360, %v1627
        %v2362 = vmax.f32 %v2361, %v1633
        %v2363 = vmax.f32 %v2362, %v1639
        %v2364 = vmax.f32 %v2363, %v1645
        %v2365 = vmax.f32 %v2364, %v1651
        %v2366 = vmax.f32 %v2365, %v1657
        %v2367 = vmax.f32 %v2366, %v1663
        %v2368 = vmax.f32 %v2367, %v1669
        %v2369 = vmax.f32 %v2368, %v1675
        %v2370 = vmax.f32 %v2369, %v1681
        %v2371 = vmax.f32 %v2370, %v1687
        %v2372 = vmax.f32 %v2371, %v1693
        %v2373 = vmax.f32 %v2372, %v1699
        %v2374 = vmax.f32 %v2373, %v1705
        %v2375 = vmax.f32 %v2374, %v1711
        %v2376 = vmax.f32 %v2375, %v1717
        %v2377 = vmax.f32 %v2376, %v1723
        %v2378 = vmax.f32 %v2377, %v1729
        %v2379 = vmax.f32 %v2378, %v1735
        %v2380 = vmax.f32 %v2379, %v1741
        %v2381 = vmax.f32 %v2380, %v1747
        %v2382 = vrot.slane %v2381, 4
        %v2383 = vmax.f32 %v2381, %v2382
        %v2384 = vrot.slane %v2383, 2
        %v2385 = vmax.f32 %v2383, %v2384
        %v2386 = vrot.slane %v2385, 1
        %v2387 = vmax.f32 %v2385, %v2386
        %v2388 = vmax.f32 %v1976, %v1982
        %v2389 = vmax.f32 %v2388, %v1988
        %v2390 = vmax.f32 %v2389, %v1994
        %v2391 = vmax.f32 %v2390, %v2000
        %v2392 = vmax.f32 %v2391, %v2006
        %v2393 = vmax.f32 %v2392, %v2012
        %v2394 = vmax.f32 %v2393, %v2018
        %v2395 = vmax.f32 %v2394, %v2024
        %v2396 = vmax.f32 %v2395, %v2030
        %v2397 = vmax.f32 %v2396, %v2036
        %v2398 = vmax.f32 %v2397, %v2042
        %v2399 = vmax.f32 %v2398, %v2048
        %v2400 = vmax.f32 %v2399, %v2054
        %v2401 = vmax.f32 %v2400, %v2060
        %v2402 = vmax.f32 %v2401, %v2066
        %v2403 = vmax.f32 %v2402, %v2072
        %v2404 = vmax.f32 %v2403, %v2078
        %v2405 = vmax.f32 %v2404, %v2084
        %v2406 = vmax.f32 %v2405, %v2090
        %v2407 = vmax.f32 %v2406, %v2096
        %v2408 = vmax.f32 %v2407, %v2102
        %v2409 = vmax.f32 %v2408, %v2108
        %v2410 = vmax.f32 %v2409, %v2114
        %v2411 = vmax.f32 %v2410, %v2120
        %v2412 = vmax.f32 %v2411, %v2126
        %v2413 = vmax.f32 %v2412, %v2132
        %v2414 = vmax.f32 %v2413, %v2138
        %v2415 = vmax.f32 %v2414, %v2144
        %v2416 = vmax.f32 %v2415, %v2150
        %v2417 = vmax.f32 %v2416, %v2156
        %v2418 = vmax.f32 %v2417, %v2162
        %v2419 = vrot.slane %v2418, 4
        %v2420 = vmax.f32 %v2418, %v2419
        %v2421 = vrot.slane %v2420, 2
        %v2422 = vmax.f32 %v2420, %v2421
        %v2423 = vrot.slane %v2422, 1
        %v2424 = vmax.f32 %v2422, %v2423
        %v2425 = vmax.f32 %v1978, %v1984
        %v2426 = vmax.f32 %v2425, %v1990
        %v2427 = vmax.f32 %v2426, %v1996
        %v2428 = vmax.f32 %v2427, %v2002
        %v2429 = vmax.f32 %v2428, %v2008
        %v2430 = vmax.f32 %v2429, %v2014
        %v2431 = vmax.f32 %v2430, %v2020
        %v2432 = vmax.f32 %v2431, %v2026
        %v2433 = vmax.f32 %v2432, %v2032
        %v2434 = vmax.f32 %v2433, %v2038
        %v2435 = vmax.f32 %v2434, %v2044
        %v2436 = vmax.f32 %v2435, %v2050
        %v2437 = vmax.f32 %v2436, %v2056
        %v2438 = vmax.f32 %v2437, %v2062
        %v2439 = vmax.f32 %v2438, %v2068
        %v2440 = vmax.f32 %v2439, %v2074
        %v2441 = vmax.f32 %v2440, %v2080
        %v2442 = vmax.f32 %v2441, %v2086
        %v2443 = vmax.f32 %v2442, %v2092
        %v2444 = vmax.f32 %v2443, %v2098
        %v2445 = vmax.f32 %v2444, %v2104
        %v2446 = vmax.f32 %v2445, %v2110
        %v2447 = vmax.f32 %v2446, %v2116
        %v2448 = vmax.f32 %v2447, %v2122
        %v2449 = vmax.f32 %v2448, %v2128
        %v2450 = vmax.f32 %v2449, %v2134
        %v2451 = vmax.f32 %v2450, %v2140
        %v2452 = vmax.f32 %v2451, %v2146
        %v2453 = vmax.f32 %v2452, %v2152
        %v2454 = vmax.f32 %v2453, %v2158
        %v2455 = vmax.f32 %v2454, %v2164
        %v2456 = vrot.slane %v2455, 4
        %v2457 = vmax.f32 %v2455, %v2456
        %v2458 = vrot.slane %v2457, 2
        %v2459 = vmax.f32 %v2457, %v2458
        %v2460 = vrot.slane %v2459, 1
        %v2461 = vmax.f32 %v2459, %v2460
        %v2462 = vsub.f32 %v725, %v2202
        %v2463 = vsub.f32 %v727, %v2239
        %v2464 = vsub.f32 %v731, %v2202
        %v2465 = vsub.f32 %v733, %v2239
        %v2466 = vsub.f32 %v737, %v2202
        %v2467 = vsub.f32 %v739, %v2239
        %v2468 = vsub.f32 %v743, %v2202
        %v2469 = vsub.f32 %v745, %v2239
        %v2470 = vsub.f32 %v749, %v2202
        %v2471 = vsub.f32 %v751, %v2239
        %v2472 = vsub.f32 %v755, %v2202
        %v2473 = vsub.f32 %v757, %v2239
        %v2474 = vsub.f32 %v761, %v2202
        %v2475 = vsub.f32 %v763, %v2239
        %v2476 = vsub.f32 %v767, %v2202
        %v2477 = vsub.f32 %v769, %v2239
        %v2478 = vsub.f32 %v773, %v2202
        %v2479 = vsub.f32 %v775, %v2239
        %v2480 = vsub.f32 %v779, %v2202
        %v2481 = vsub.f32 %v781, %v2239
        %v2482 = vsub.f32 %v785, %v2202
        %v2483 = vsub.f32 %v787, %v2239
        %v2484 = vsub.f32 %v791, %v2202
        %v2485 = vsub.f32 %v793, %v2239
        %v2486 = vsub.f32 %v797, %v2202
        %v2487 = vsub.f32 %v799, %v2239
        %v2488 = vsub.f32 %v803, %v2202
        %v2489 = vsub.f32 %v805, %v2239
        %v2490 = vsub.f32 %v809, %v2202
        %v2491 = vsub.f32 %v811, %v2239
        %v2492 = vsub.f32 %v815, %v2202
        %v2493 = vsub.f32 %v817, %v2239
        %v2494 = vsub.f32 %v821, %v2202
        %v2495 = vsub.f32 %v823, %v2239
        %v2496 = vsub.f32 %v827, %v2202
        %v2497 = vsub.f32 %v829, %v2239
        %v2498 = vsub.f32 %v833, %v2202
        %v2499 = vsub.f32 %v835, %v2239
        %v2500 = vsub.f32 %v839, %v2202
        %v2501 = vsub.f32 %v841, %v2239
        %v2502 = vsub.f32 %v845, %v2202
        %v2503 = vsub.f32 %v847, %v2239
        %v2504 = vsub.f32 %v851, %v2202
        %v2505 = vsub.f32 %v853, %v2239
        %v2506 = vsub.f32 %v857, %v2202
        %v2507 = vsub.f32 %v859, %v2239
        %v2508 = vsub.f32 %v863, %v2202
        %v2509 = vsub.f32 %v865, %v2239
        %v2510 = vsub.f32 %v869, %v2202
        %v2511 = vsub.f32 %v871, %v2239
        %v2512 = vsub.f32 %v875, %v2202
        %v2513 = vsub.f32 %v877, %v2239
        %v2514 = vsub.f32 %v881, %v2202
        %v2515 = vsub.f32 %v883, %v2239
        %v2516 = vsub.f32 %v887, %v2202
        %v2517 = vsub.f32 %v889, %v2239
        %v2518 = vsub.f32 %v893, %v2202
        %v2519 = vsub.f32 %v895, %v2239
        %v2520 = vsub.f32 %v899, %v2202
        %v2521 = vsub.f32 %v901, %v2239
        %v2522 = vsub.f32 %v905, %v2202
        %v2523 = vsub.f32 %v907, %v2239
        %v2524 = vsub.f32 %v911, %v2202
        %v2525 = vsub.f32 %v913, %v2239
        %v2526 = vsub.f32 %v1142, %v2276
        %v2527 = vsub.f32 %v1144, %v2313
        %v2528 = vsub.f32 %v1148, %v2276
        %v2529 = vsub.f32 %v1150, %v2313
        %v2530 = vsub.f32 %v1154, %v2276
        %v2531 = vsub.f32 %v1156, %v2313
        %v2532 = vsub.f32 %v1160, %v2276
        %v2533 = vsub.f32 %v1162, %v2313
        %v2534 = vsub.f32 %v1166, %v2276
        %v2535 = vsub.f32 %v1168, %v2313
        %v2536 = vsub.f32 %v1172, %v2276
        %v2537 = vsub.f32 %v1174, %v2313
        %v2538 = vsub.f32 %v1178, %v2276
        %v2539 = vsub.f32 %v1180, %v2313
        %v2540 = vsub.f32 %v1184, %v2276
        %v2541 = vsub.f32 %v1186, %v2313
        %v2542 = vsub.f32 %v1190, %v2276
        %v2543 = vsub.f32 %v1192, %v2313
        %v2544 = vsub.f32 %v1196, %v2276
        %v2545 = vsub.f32 %v1198, %v2313
        %v2546 = vsub.f32 %v1202, %v2276
        %v2547 = vsub.f32 %v1204, %v2313
        %v2548 = vsub.f32 %v1208, %v2276
        %v2549 = vsub.f32 %v1210, %v2313
        %v2550 = vsub.f32 %v1214, %v2276
        %v2551 = vsub.f32 %v1216, %v2313
        %v2552 = vsub.f32 %v1220, %v2276
        %v2553 = vsub.f32 %v1222, %v2313
        %v2554 = vsub.f32 %v1226, %v2276
        %v2555 = vsub.f32 %v1228, %v2313
        %v2556 = vsub.f32 %v1232, %v2276
        %v2557 = vsub.f32 %v1234, %v2313
        %v2558 = vsub.f32 %v1238, %v2276
        %v2559 = vsub.f32 %v1240, %v2313
        %v2560 = vsub.f32 %v1244, %v2276
        %v2561 = vsub.f32 %v1246, %v2313
        %v2562 = vsub.f32 %v1250, %v2276
        %v2563 = vsub.f32 %v1252, %v2313
        %v2564 = vsub.f32 %v1256, %v2276
        %v2565 = vsub.f32 %v1258, %v2313
        %v2566 = vsub.f32 %v1262, %v2276
        %v2567 = vsub.f32 %v1264, %v2313
        %v2568 = vsub.f32 %v1268, %v2276
        %v2569 = vsub.f32 %v1270, %v2313
        %v2570 = vsub.f32 %v1274, %v2276
        %v2571 = vsub.f32 %v1276, %v2313
        %v2572 = vsub.f32 %v1280, %v2276
        %v2573 = vsub.f32 %v1282, %v2313
        %v2574 = vsub.f32 %v1286, %v2276
        %v2575 = vsub.f32 %v1288, %v2313
        %v2576 = vsub.f32 %v1292, %v2276
        %v2577 = vsub.f32 %v1294, %v2313
        %v2578 = vsub.f32 %v1298, %v2276
        %v2579 = vsub.f32 %v1300, %v2313
        %v2580 = vsub.f32 %v1304, %v2276
        %v2581 = vsub.f32 %v1306, %v2313
        %v2582 = vsub.f32 %v1310, %v2276
        %v2583 = vsub.f32 %v1312, %v2313
        %v2584 = vsub.f32 %v1316, %v2276
        %v2585 = vsub.f32 %v1318, %v2313
        %v2586 = vsub.f32 %v1322, %v2276
        %v2587 = vsub.f32 %v1324, %v2313
        %v2588 = vsub.f32 %v1328, %v2276
        %v2589 = vsub.f32 %v1330, %v2313
        %v2590 = vsub.f32 %v1559, %v2350
        %v2591 = vsub.f32 %v1561, %v2387
        %v2592 = vsub.f32 %v1565, %v2350
        %v2593 = vsub.f32 %v1567, %v2387
        %v2594 = vsub.f32 %v1571, %v2350
        %v2595 = vsub.f32 %v1573, %v2387
        %v2596 = vsub.f32 %v1577, %v2350
        %v2597 = vsub.f32 %v1579, %v2387
        %v2598 = vsub.f32 %v1583, %v2350
        %v2599 = vsub.f32 %v1585, %v2387
        %v2600 = vsub.f32 %v1589, %v2350
        %v2601 = vsub.f32 %v1591, %v2387
        %v2602 = vsub.f32 %v1595, %v2350
        %v2603 = vsub.f32 %v1597, %v2387
        %v2604 = vsub.f32 %v1601, %v2350
        %v2605 = vsub.f32 %v1603, %v2387
        %v2606 = vsub.f32 %v1607, %v2350
        %v2607 = vsub.f32 %v1609, %v2387
        %v2608 = vsub.f32 %v1613, %v2350
        %v2609 = vsub.f32 %v1615, %v2387
        %v2610 = vsub.f32 %v1619, %v2350
        %v2611 = vsub.f32 %v1621, %v2387
        %v2612 = vsub.f32 %v1625, %v2350
        %v2613 = vsub.f32 %v1627, %v2387
        %v2614 = vsub.f32 %v1631, %v2350
        %v2615 = vsub.f32 %v1633, %v2387
        %v2616 = vsub.f32 %v1637, %v2350
        %v2617 = vsub.f32 %v1639, %v2387
        %v2618 = vsub.f32 %v1643, %v2350
        %v2619 = vsub.f32 %v1645, %v2387
        %v2620 = vsub.f32 %v1649, %v2350
        %v2621 = vsub.f32 %v1651, %v2387
        %v2622 = vsub.f32 %v1655, %v2350
        %v2623 = vsub.f32 %v1657, %v2387
        %v2624 = vsub.f32 %v1661, %v2350
        %v2625 = vsub.f32 %v1663, %v2387
        %v2626 = vsub.f32 %v1667, %v2350
        %v2627 = vsub.f32 %v1669, %v2387
        %v2628 = vsub.f32 %v1673, %v2350
        %v2629 = vsub.f32 %v1675, %v2387
        %v2630 = vsub.f32 %v1679, %v2350
        %v2631 = vsub.f32 %v1681, %v2387
        %v2632 = vsub.f32 %v1685, %v2350
        %v2633 = vsub.f32 %v1687, %v2387
        %v2634 = vsub.f32 %v1691, %v2350
        %v2635 = vsub.f32 %v1693, %v2387
        %v2636 = vsub.f32 %v1697, %v2350
        %v2637 = vsub.f32 %v1699, %v2387
        %v2638 = vsub.f32 %v1703, %v2350
        %v2639 = vsub.f32 %v1705, %v2387
        %v2640 = vsub.f32 %v1709, %v2350
        %v2641 = vsub.f32 %v1711, %v2387
        %v2642 = vsub.f32 %v1715, %v2350
        %v2643 = vsub.f32 %v1717, %v2387
        %v2644 = vsub.f32 %v1721, %v2350
        %v2645 = vsub.f32 %v1723, %v2387
        %v2646 = vsub.f32 %v1727, %v2350
        %v2647 = vsub.f32 %v1729, %v2387
        %v2648 = vsub.f32 %v1733, %v2350
        %v2649 = vsub.f32 %v1735, %v2387
        %v2650 = vsub.f32 %v1739, %v2350
        %v2651 = vsub.f32 %v1741, %v2387
        %v2652 = vsub.f32 %v1745, %v2350
        %v2653 = vsub.f32 %v1747, %v2387
        %v2654 = vsub.f32 %v1976, %v2424
        %v2655 = vsub.f32 %v1978, %v2461
        %v2656 = vsub.f32 %v1982, %v2424
        %v2657 = vsub.f32 %v1984, %v2461
        %v2658 = vsub.f32 %v1988, %v2424
        %v2659 = vsub.f32 %v1990, %v2461
        %v2660 = vsub.f32 %v1994, %v2424
        %v2661 = vsub.f32 %v1996, %v2461
        %v2662 = vsub.f32 %v2000, %v2424
        %v2663 = vsub.f32 %v2002, %v2461
        %v2664 = vsub.f32 %v2006, %v2424
        %v2665 = vsub.f32 %v2008, %v2461
        %v2666 = vsub.f32 %v2012, %v2424
        %v2667 = vsub.f32 %v2014, %v2461
        %v2668 = vsub.f32 %v2018, %v2424
        %v2669 = vsub.f32 %v2020, %v2461
        %v2670 = vsub.f32 %v2024, %v2424
        %v2671 = vsub.f32 %v2026, %v2461
        %v2672 = vsub.f32 %v2030, %v2424
        %v2673 = vsub.f32 %v2032, %v2461
        %v2674 = vsub.f32 %v2036, %v2424
        %v2675 = vsub.f32 %v2038, %v2461
        %v2676 = vsub.f32 %v2042, %v2424
        %v2677 = vsub.f32 %v2044, %v2461
        %v2678 = vsub.f32 %v2048, %v2424
        %v2679 = vsub.f32 %v2050, %v2461
        %v2680 = vsub.f32 %v2054, %v2424
        %v2681 = vsub.f32 %v2056, %v2461
        %v2682 = vsub.f32 %v2060, %v2424
        %v2683 = vsub.f32 %v2062, %v2461
        %v2684 = vsub.f32 %v2066, %v2424
        %v2685 = vsub.f32 %v2068, %v2461
        %v2686 = vsub.f32 %v2072, %v2424
        %v2687 = vsub.f32 %v2074, %v2461
        %v2688 = vsub.f32 %v2078, %v2424
        %v2689 = vsub.f32 %v2080, %v2461
        %v2690 = vsub.f32 %v2084, %v2424
        %v2691 = vsub.f32 %v2086, %v2461
        %v2692 = vsub.f32 %v2090, %v2424
        %v2693 = vsub.f32 %v2092, %v2461
        %v2694 = vsub.f32 %v2096, %v2424
        %v2695 = vsub.f32 %v2098, %v2461
        %v2696 = vsub.f32 %v2102, %v2424
        %v2697 = vsub.f32 %v2104, %v2461
        %v2698 = vsub.f32 %v2108, %v2424
        %v2699 = vsub.f32 %v2110, %v2461
        %v2700 = vsub.f32 %v2114, %v2424
        %v2701 = vsub.f32 %v2116, %v2461
        %v2702 = vsub.f32 %v2120, %v2424
        %v2703 = vsub.f32 %v2122, %v2461
        %v2704 = vsub.f32 %v2126, %v2424
        %v2705 = vsub.f32 %v2128, %v2461
        %v2706 = vsub.f32 %v2132, %v2424
        %v2707 = vsub.f32 %v2134, %v2461
        %v2708 = vsub.f32 %v2138, %v2424
        %v2709 = vsub.f32 %v2140, %v2461
        %v2710 = vsub.f32 %v2144, %v2424
        %v2711 = vsub.f32 %v2146, %v2461
        %v2712 = vsub.f32 %v2150, %v2424
        %v2713 = vsub.f32 %v2152, %v2461
        %v2714 = vsub.f32 %v2156, %v2424
        %v2715 = vsub.f32 %v2158, %v2461
        %v2716 = vsub.f32 %v2162, %v2424
        %v2717 = vsub.f32 %v2164, %v2461
        %v2718 = vmul.f32 %v2462, 1.442695
        %v2719 = vpow.pop %v2718
        %v2720 = vmul.f32 %v2463, 1.442695
        %v2721 = vpow.pop %v2720
        %v2722 = vmul.f32 %v2464, 1.442695
        %v2723 = vpow.pop %v2722
        %v2724 = vmul.f32 %v2465, 1.442695
        %v2725 = vpow.pop %v2724
        %v2726 = vmul.f32 %v2466, 1.442695
        %v2727 = vpow.pop %v2726
        %v2728 = vmul.f32 %v2467, 1.442695
        %v2729 = vpow.pop %v2728
        %v2730 = vmul.f32 %v2468, 1.442695
        %v2731 = vpow.pop %v2730
        %v2732 = vmul.f32 %v2469, 1.442695
        %v2733 = vpow.pop %v2732
        %v2734 = vmul.f32 %v2470, 1.442695
        %v2735 = vpow.pop %v2734
        %v2736 = vmul.f32 %v2471, 1.442695
        %v2737 = vpow.pop %v2736
        %v2738 = vmul.f32 %v2472, 1.442695
        %v2739 = vpow.pop %v2738
        %v2740 = vmul.f32 %v2473, 1.442695
        %v2741 = vpow.pop %v2740
        %v2742 = vmul.f32 %v2474, 1.442695
        %v2743 = vpow.pop %v2742
        %v2744 = vmul.f32 %v2475, 1.442695
        %v2745 = vpow.pop %v2744
        %v2746 = vmul.f32 %v2476, 1.442695
        %v2747 = vpow.pop %v2746
        %v2748 = vmul.f32 %v2477, 1.442695
        %v2749 = vpow.pop %v2748
        %v2750 = vmul.f32 %v2478, 1.442695
        %v2751 = vpow.pop %v2750
        %v2752 = vmul.f32 %v2479, 1.442695
        %v2753 = vpow.pop %v2752
        %v2754 = vmul.f32 %v2480, 1.442695
        %v2755 = vpow.pop %v2754
        %v2756 = vmul.f32 %v2481, 1.442695
        %v2757 = vpow.pop %v2756
        %v2758 = vmul.f32 %v2482, 1.442695
        %v2759 = vpow.pop %v2758
        %v2760 = vmul.f32 %v2483, 1.442695
        %v2761 = vpow.pop %v2760
        %v2762 = vmul.f32 %v2484, 1.442695
        %v2763 = vpow.pop %v2762
        %v2764 = vmul.f32 %v2485, 1.442695
        %v2765 = vpow.pop %v2764
        %v2766 = vmul.f32 %v2486, 1.442695
        %v2767 = vpow.pop %v2766
        %v2768 = vmul.f32 %v2487, 1.442695
        %v2769 = vpow.pop %v2768
        %v2770 = vmul.f32 %v2488, 1.442695
        %v2771 = vpow.pop %v2770
        %v2772 = vmul.f32 %v2489, 1.442695
        %v2773 = vpow.pop %v2772
        %v2774 = vmul.f32 %v2490, 1.442695
        %v2775 = vpow.pop %v2774
        %v2776 = vmul.f32 %v2491, 1.442695
        %v2777 = vpow.pop %v2776
        %v2778 = vmul.f32 %v2492, 1.442695
        %v2779 = vpow.pop %v2778
        %v2780 = vmul.f32 %v2493, 1.442695
        %v2781 = vpow.pop %v2780
        %v2782 = vmul.f32 %v2494, 1.442695
        %v2783 = vpow.pop %v2782
        %v2784 = vmul.f32 %v2495, 1.442695
        %v2785 = vpow.pop %v2784
        %v2786 = vmul.f32 %v2496, 1.442695
        %v2787 = vpow.pop %v2786
        %v2788 = vmul.f32 %v2497, 1.442695
        %v2789 = vpow.pop %v2788
        %v2790 = vmul.f32 %v2498, 1.442695
        %v2791 = vpow.pop %v2790
        %v2792 = vmul.f32 %v2499, 1.442695
        %v2793 = vpow.pop %v2792
        %v2794 = vmul.f32 %v2500, 1.442695
        %v2795 = vpow.pop %v2794
        %v2796 = vmul.f32 %v2501, 1.442695
        %v2797 = vpow.pop %v2796
        %v2798 = vmul.f32 %v2502, 1.442695
        %v2799 = vpow.pop %v2798
        %v2800 = vmul.f32 %v2503, 1.442695
        %v2801 = vpow.pop %v2800
        %v2802 = vmul.f32 %v2504, 1.442695
        %v2803 = vpow.pop %v2802
        %v2804 = vmul.f32 %v2505, 1.442695
        %v2805 = vpow.pop %v2804
        %v2806 = vmul.f32 %v2506, 1.442695
        %v2807 = vpow.pop %v2806
        %v2808 = vmul.f32 %v2507, 1.442695
        %v2809 = vpow.pop %v2808
        %v2810 = vmul.f32 %v2508, 1.442695
        %v2811 = vpow.pop %v2810
        %v2812 = vmul.f32 %v2509, 1.442695
        %v2813 = vpow.pop %v2812
        %v2814 = vmul.f32 %v2510, 1.442695
        %v2815 = vpow.pop %v2814
        %v2816 = vmul.f32 %v2511, 1.442695
        %v2817 = vpow.pop %v2816
        %v2818 = vmul.f32 %v2512, 1.442695
        %v2819 = vpow.pop %v2818
        %v2820 = vmul.f32 %v2513, 1.442695
        %v2821 = vpow.pop %v2820
        %v2822 = vmul.f32 %v2514, 1.442695
        %v2823 = vpow.pop %v2822
        %v2824 = vmul.f32 %v2515, 1.442695
        %v2825 = vpow.pop %v2824
        %v2826 = vmul.f32 %v2516, 1.442695
        %v2827 = vpow.pop %v2826
        %v2828 = vmul.f32 %v2517, 1.442695
        %v2829 = vpow.pop %v2828
        %v2830 = vmul.f32 %v2518, 1.442695
        %v2831 = vpow.pop %v2830
        %v2832 = vmul.f32 %v2519, 1.442695
        %v2833 = vpow.pop %v2832
        %v2834 = vmul.f32 %v2520, 1.442695
        %v2835 = vpow.pop %v2834
        %v2836 = vmul.f32 %v2521, 1.442695
        %v2837 = vpow.pop %v2836
        %v2838 = vmul.f32 %v2522, 1.442695
        %v2839 = vpow.pop %v2838
        %v2840 = vmul.f32 %v2523, 1.442695
        %v2841 = vpow.pop %v2840
        %v2842 = vmul.f32 %v2524, 1.442695
        %v2843 = vpow.pop %v2842
        %v2844 = vmul.f32 %v2525, 1.442695
        %v2845 = vpow.pop %v2844
        %v2846 = vmul.f32 %v2526, 1.442695
        %v2847 = vpow.pop %v2846
        %v2848 = vmul.f32 %v2527, 1.442695
        %v2849 = vpow.pop %v2848
        %v2850 = vmul.f32 %v2528, 1.442695
        %v2851 = vpow.pop %v2850
        %v2852 = vmul.f32 %v2529, 1.442695
        %v2853 = vpow.pop %v2852
        %v2854 = vmul.f32 %v2530, 1.442695
        %v2855 = vpow.pop %v2854
        %v2856 = vmul.f32 %v2531, 1.442695
        %v2857 = vpow.pop %v2856
        %v2858 = vmul.f32 %v2532, 1.442695
        %v2859 = vpow.pop %v2858
        %v2860 = vmul.f32 %v2533, 1.442695
        %v2861 = vpow.pop %v2860
        %v2862 = vmul.f32 %v2534, 1.442695
        %v2863 = vpow.pop %v2862
        %v2864 = vmul.f32 %v2535, 1.442695
        %v2865 = vpow.pop %v2864
        %v2866 = vmul.f32 %v2536, 1.442695
        %v2867 = vpow.pop %v2866
        %v2868 = vmul.f32 %v2537, 1.442695
        %v2869 = vpow.pop %v2868
        %v2870 = vmul.f32 %v2538, 1.442695
        %v2871 = vpow.pop %v2870
        %v2872 = vmul.f32 %v2539, 1.442695
        %v2873 = vpow.pop %v2872
        %v2874 = vmul.f32 %v2540, 1.442695
        %v2875 = vpow.pop %v2874
        %v2876 = vmul.f32 %v2541, 1.442695
        %v2877 = vpow.pop %v2876
        %v2878 = vmul.f32 %v2542, 1.442695
        %v2879 = vpow.pop %v2878
        %v2880 = vmul.f32 %v2543, 1.442695
        %v2881 = vpow.pop %v2880
        %v2882 = vmul.f32 %v2544, 1.442695
        %v2883 = vpow.pop %v2882
        %v2884 = vmul.f32 %v2545, 1.442695
        %v2885 = vpow.pop %v2884
        %v2886 = vmul.f32 %v2546, 1.442695
        %v2887 = vpow.pop %v2886
        %v2888 = vmul.f32 %v2547, 1.442695
        %v2889 = vpow.pop %v2888
        %v2890 = vmul.f32 %v2548, 1.442695
        %v2891 = vpow.pop %v2890
        %v2892 = vmul.f32 %v2549, 1.442695
        %v2893 = vpow.pop %v2892
        %v2894 = vmul.f32 %v2550, 1.442695
        %v2895 = vpow.pop %v2894
        %v2896 = vmul.f32 %v2551, 1.442695
        %v2897 = vpow.pop %v2896
        %v2898 = vmul.f32 %v2552, 1.442695
        %v2899 = vpow.pop %v2898
        %v2900 = vmul.f32 %v2553, 1.442695
        %v2901 = vpow.pop %v2900
        %v2902 = vmul.f32 %v2554, 1.442695
        %v2903 = vpow.pop %v2902
        %v2904 = vmul.f32 %v2555, 1.442695
        %v2905 = vpow.pop %v2904
        %v2906 = vmul.f32 %v2556, 1.442695
        %v2907 = vpow.pop %v2906
        %v2908 = vmul.f32 %v2557, 1.442695
        %v2909 = vpow.pop %v2908
        %v2910 = vmul.f32 %v2558, 1.442695
        %v2911 = vpow.pop %v2910
        %v2912 = vmul.f32 %v2559, 1.442695
        %v2913 = vpow.pop %v2912
        %v2914 = vmul.f32 %v2560, 1.442695
        %v2915 = vpow.pop %v2914
        %v2916 = vmul.f32 %v2561, 1.442695
        %v2917 = vpow.pop %v2916
        %v2918 = vmul.f32 %v2562, 1.442695
        %v2919 = vpow.pop %v2918
        %v2920 = vmul.f32 %v2563, 1.442695
        %v2921 = vpow.pop %v2920
        %v2922 = vmul.f32 %v2564, 1.442695
        %v2923 = vpow.pop %v2922
        %v2924 = vmul.f32 %v2565, 1.442695
        %v2925 = vpow.pop %v2924
        %v2926 = vmul.f32 %v2566, 1.442695
        %v2927 = vpow.pop %v2926
        %v2928 = vmul.f32 %v2567, 1.442695
        %v2929 = vpow.pop %v2928
        %v2930 = vmul.f32 %v2568, 1.442695
        %v2931 = vpow.pop %v2930
        %v2932 = vmul.f32 %v2569, 1.442695
        %v2933 = vpow.pop %v2932
        %v2934 = vmul.f32 %v2570, 1.442695
        %v2935 = vpow.pop %v2934
        %v2936 = vmul.f32 %v2571, 1.442695
        %v2937 = vpow.pop %v2936
        %v2938 = vmul.f32 %v2572, 1.442695
        %v2939 = vpow.pop %v2938
        %v2940 = vmul.f32 %v2573, 1.442695
        %v2941 = vpow.pop %v2940
        %v2942 = vmul.f32 %v2574, 1.442695
        %v2943 = vpow.pop %v2942
        %v2944 = vmul.f32 %v2575, 1.442695
        %v2945 = vpow.pop %v2944
        %v2946 = vmul.f32 %v2576, 1.442695
        %v2947 = vpow.pop %v2946
        %v2948 = vmul.f32 %v2577, 1.442695
        %v2949 = vpow.pop %v2948
        %v2950 = vmul.f32 %v2578, 1.442695
        %v2951 = vpow.pop %v2950
        %v2952 = vmul.f32 %v2579, 1.442695
        %v2953 = vpow.pop %v2952
        %v2954 = vmul.f32 %v2580, 1.442695
        %v2955 = vpow.pop %v2954
        %v2956 = vmul.f32 %v2581, 1.442695
        %v2957 = vpow.pop %v2956
        %v2958 = vmul.f32 %v2582, 1.442695
        %v2959 = vpow.pop %v2958
        %v2960 = vmul.f32 %v2583, 1.442695
        %v2961 = vpow.pop %v2960
        %v2962 = vmul.f32 %v2584, 1.442695
        %v2963 = vpow.pop %v2962
        %v2964 = vmul.f32 %v2585, 1.442695
        %v2965 = vpow.pop %v2964
        %v2966 = vmul.f32 %v2586, 1.442695
        %v2967 = vpow.pop %v2966
        %v2968 = vmul.f32 %v2587, 1.442695
        %v2969 = vpow.pop %v2968
        %v2970 = vmul.f32 %v2588, 1.442695
        %v2971 = vpow.pop %v2970
        %v2972 = vmul.f32 %v2589, 1.442695
        %v2973 = vpow.pop %v2972
        %v2974 = vmul.f32 %v2590, 1.442695
        %v2975 = vpow.pop %v2974
        %v2976 = vmul.f32 %v2591, 1.442695
        %v2977 = vpow.pop %v2976
        %v2978 = vmul.f32 %v2592, 1.442695
        %v2979 = vpow.pop %v2978
        %v2980 = vmul.f32 %v2593, 1.442695
        %v2981 = vpow.pop %v2980
        %v2982 = vmul.f32 %v2594, 1.442695
        %v2983 = vpow.pop %v2982
        %v2984 = vmul.f32 %v2595, 1.442695
        %v2985 = vpow.pop %v2984
        %v2986 = vmul.f32 %v2596, 1.442695
        %v2987 = vpow.pop %v2986
        %v2988 = vmul.f32 %v2597, 1.442695
        %v2989 = vpow.pop %v2988
        %v2990 = vmul.f32 %v2598, 1.442695
        %v2991 = vpow.pop %v2990
        %v2992 = vmul.f32 %v2599, 1.442695
        %v2993 = vpow.pop %v2992
        %v2994 = vmul.f32 %v2600, 1.442695
        %v2995 = vpow.pop %v2994
        %v2996 = vmul.f32 %v2601, 1.442695
        %v2997 = vpow.pop %v2996
        %v2998 = vmul.f32 %v2602, 1.442695
        %v2999 = vpow.pop %v2998
        %v3000 = vmul.f32 %v2603, 1.442695
        %v3001 = vpow.pop %v3000
        %v3002 = vmul.f32 %v2604, 1.442695
        %v3003 = vpow.pop %v3002
        %v3004 = vmul.f32 %v2605, 1.442695
        %v3005 = vpow.pop %v3004
        %v3006 = vmul.f32 %v2606, 1.442695
        %v3007 = vpow.pop %v3006
        %v3008 = vmul.f32 %v2607, 1.442695
        %v3009 = vpow.pop %v3008
        %v3010 = vmul.f32 %v2608, 1.442695
        %v3011 = vpow.pop %v3010
        %v3012 = vmul.f32 %v2609, 1.442695
        %v3013 = vpow.pop %v3012
        %v3014 = vmul.f32 %v2610, 1.442695
        %v3015 = vpow.pop %v3014
        %v3016 = vmul.f32 %v2611, 1.442695
        %v3017 = vpow.pop %v3016
        %v3018 = vmul.f32 %v2612, 1.442695
        %v3019 = vpow.pop %v3018
        %v3020 = vmul.f32 %v2613, 1.442695
        %v3021 = vpow.pop %v3020
        %v3022 = vmul.f32 %v2614, 1.442695
        %v3023 = vpow.pop %v3022
        %v3024 = vmul.f32 %v2615, 1.442695
        %v3025 = vpow.pop %v3024
        %v3026 = vmul.f32 %v2616, 1.442695
        %v3027 = vpow.pop %v3026
        %v3028 = vmul.f32 %v2617, 1.442695
        %v3029 = vpow.pop %v3028
        %v3030 = vmul.f32 %v2618, 1.442695
        %v3031 = vpow.pop %v3030
        %v3032 = vmul.f32 %v2619, 1.442695
        %v3033 = vpow.pop %v3032
        %v3034 = vmul.f32 %v2620, 1.442695
        %v3035 = vpow.pop %v3034
        %v3036 = vmul.f32 %v2621, 1.442695
        %v3037 = vpow.pop %v3036
        %v3038 = vmul.f32 %v2622, 1.442695
        %v3039 = vpow.pop %v3038
        %v3040 = vmul.f32 %v2623, 1.442695
        %v3041 = vpow.pop %v3040
        %v3042 = vmul.f32 %v2624, 1.442695
        %v3043 = vpow.pop %v3042
        %v3044 = vmul.f32 %v2625, 1.442695
        %v3045 = vpow.pop %v3044
        %v3046 = vmul.f32 %v2626, 1.442695
        %v3047 = vpow.pop %v3046
        %v3048 = vmul.f32 %v2627, 1.442695
        %v3049 = vpow.pop %v3048
        %v3050 = vmul.f32 %v2628, 1.442695
        %v3051 = vpow.pop %v3050
        %v3052 = vmul.f32 %v2629, 1.442695
        %v3053 = vpow.pop %v3052
        %v3054 = vmul.f32 %v2630, 1.442695
        %v3055 = vpow.pop %v3054
        %v3056 = vmul.f32 %v2631, 1.442695
        %v3057 = vpow.pop %v3056
        %v3058 = vmul.f32 %v2632, 1.442695
        %v3059 = vpow.pop %v3058
        %v3060 = vmul.f32 %v2633, 1.442695
        %v3061 = vpow.pop %v3060
        %v3062 = vmul.f32 %v2634, 1.442695
        %v3063 = vpow.pop %v3062
        %v3064 = vmul.f32 %v2635, 1.442695
        %v3065 = vpow.pop %v3064
        %v3066 = vmul.f32 %v2636, 1.442695
        %v3067 = vpow.pop %v3066
        %v3068 = vmul.f32 %v2637, 1.442695
        %v3069 = vpow.pop %v3068
        %v3070 = vmul.f32 %v2638, 1.442695
        %v3071 = vpow.pop %v3070
        %v3072 = vmul.f32 %v2639, 1.442695
        %v3073 = vpow.pop %v3072
        %v3074 = vmul.f32 %v2640, 1.442695
        %v3075 = vpow.pop %v3074
        %v3076 = vmul.f32 %v2641, 1.442695
        %v3077 = vpow.pop %v3076
        %v3078 = vmul.f32 %v2642, 1.442695
        %v3079 = vpow.pop %v3078
        %v3080 = vmul.f32 %v2643, 1.442695
        %v3081 = vpow.pop %v3080
        %v3082 = vmul.f32 %v2644, 1.442695
        %v3083 = vpow.pop %v3082
        %v3084 = vmul.f32 %v2645, 1.442695
        %v3085 = vpow.pop %v3084
        %v3086 = vmul.f32 %v2646, 1.442695
        %v3087 = vpow.pop %v3086
        %v3088 = vmul.f32 %v2647, 1.442695
        %v3089 = vpow.pop %v3088
        %v3090 = vmul.f32 %v2648, 1.442695
        %v3091 = vpow.pop %v3090
        %v3092 = vmul.f32 %v2649, 1.442695
        %v3093 = vpow.pop %v3092
        %v3094 = vmul.f32 %v2650, 1.442695
        %v3095 = vpow.pop %v3094
        %v3096 = vmul.f32 %v2651, 1.442695
        %v3097 = vpow.pop %v3096
        %v3098 = vmul.f32 %v2652, 1.442695
        %v3099 = vpow.pop %v3098
        %v3100 = vmul.f32 %v2653, 1.442695
        %v3101 = vpow.pop %v3100
        %v3102 = vmul.f32 %v2654, 1.442695
        %v3103 = vpow.pop %v3102
        %v3104 = vmul.f32 %v2655, 1.442695
        %v3105 = vpow.pop %v3104
        %v3106 = vmul.f32 %v2656, 1.442695
        %v3107 = vpow.pop %v3106
        %v3108 = vmul.f32 %v2657, 1.442695
        %v3109 = vpow.pop %v3108
        %v3110 = vmul.f32 %v2658, 1.442695
        %v3111 = vpow.pop %v3110
        %v3112 = vmul.f32 %v2659, 1.442695
        %v3113 = vpow.pop %v3112
        %v3114 = vmul.f32 %v2660, 1.442695
        %v3115 = vpow.pop %v3114
        %v3116 = vmul.f32 %v2661, 1.442695
        %v3117 = vpow.pop %v3116
        %v3118 = vmul.f32 %v2662, 1.442695
        %v3119 = vpow.pop %v3118
        %v3120 = vmul.f32 %v2663, 1.442695
        %v3121 = vpow.pop %v3120
        %v3122 = vmul.f32 %v2664, 1.442695
        %v3123 = vpow.pop %v3122
        %v3124 = vmul.f32 %v2665, 1.442695
        %v3125 = vpow.pop %v3124
        %v3126 = vmul.f32 %v2666, 1.442695
        %v3127 = vpow.pop %v3126
        %v3128 = vmul.f32 %v2667, 1.442695
        %v3129 = vpow.pop %v3128
        %v3130 = vmul.f32 %v2668, 1.442695
        %v3131 = vpow.pop %v3130
        %v3132 = vmul.f32 %v2669, 1.442695
        %v3133 = vpow.pop %v3132
        %v3134 = vmul.f32 %v2670, 1.442695
        %v3135 = vpow.pop %v3134
        %v3136 = vmul.f32 %v2671, 1.442695
        %v3137 = vpow.pop %v3136
        %v3138 = vmul.f32 %v2672, 1.442695
        %v3139 = vpow.pop %v3138
        %v3140 = vmul.f32 %v2673, 1.442695
        %v3141 = vpow.pop %v3140
        %v3142 = vmul.f32 %v2674, 1.442695
        %v3143 = vpow.pop %v3142
        %v3144 = vmul.f32 %v2675, 1.442695
        %v3145 = vpow.pop %v3144
        %v3146 = vmul.f32 %v2676, 1.442695
        %v3147 = vpow.pop %v3146
        %v3148 = vmul.f32 %v2677, 1.442695
        %v3149 = vpow.pop %v3148
        %v3150 = vmul.f32 %v2678, 1.442695
        %v3151 = vpow.pop %v3150
        %v3152 = vmul.f32 %v2679, 1.442695
        %v3153 = vpow.pop %v3152
        %v3154 = vmul.f32 %v2680, 1.442695
        %v3155 = vpow.pop %v3154
        %v3156 = vmul.f32 %v2681, 1.442695
        %v3157 = vpow.pop %v3156
        %v3158 = vmul.f32 %v2682, 1.442695
        %v3159 = vpow.pop %v3158
        %v3160 = vmul.f32 %v2683, 1.442695
        %v3161 = vpow.pop %v3160
        %v3162 = vmul.f32 %v2684, 1.442695
        %v3163 = vpow.pop %v3162
        %v3164 = vmul.f32 %v2685, 1.442695
        %v3165 = vpow.pop %v3164
        %v3166 = vmul.f32 %v2686, 1.442695
        %v3167 = vpow.pop %v3166
        %v3168 = vmul.f32 %v2687, 1.442695
        %v3169 = vpow.pop %v3168
        %v3170 = vmul.f32 %v2688, 1.442695
        %v3171 = vpow.pop %v3170
        %v3172 = vmul.f32 %v2689, 1.442695
        %v3173 = vpow.pop %v3172
        %v3174 = vmul.f32 %v2690, 1.442695
        %v3175 = vpow.pop %v3174
        %v3176 = vmul.f32 %v2691, 1.442695
        %v3177 = vpow.pop %v3176
        %v3178 = vmul.f32 %v2692, 1.442695
        %v3179 = vpow.pop %v3178
        %v3180 = vmul.f32 %v2693, 1.442695
        %v3181 = vpow.pop %v3180
        %v3182 = vmul.f32 %v2694, 1.442695
        %v3183 = vpow.pop %v3182
        %v3184 = vmul.f32 %v2695, 1.442695
        %v3185 = vpow.pop %v3184
        %v3186 = vmul.f32 %v2696, 1.442695
        %v3187 = vpow.pop %v3186
        %v3188 = vmul.f32 %v2697, 1.442695
        %v3189 = vpow.pop %v3188
        %v3190 = vmul.f32 %v2698, 1.442695
        %v3191 = vpow.pop %v3190
        %v3192 = vmul.f32 %v2699, 1.442695
        %v3193 = vpow.pop %v3192
        %v3194 = vmul.f32 %v2700, 1.442695
        %v3195 = vpow.pop %v3194
        %v3196 = vmul.f32 %v2701, 1.442695
        %v3197 = vpow.pop %v3196
        %v3198 = vmul.f32 %v2702, 1.442695
        %v3199 = vpow.pop %v3198
        %v3200 = vmul.f32 %v2703, 1.442695
        %v3201 = vpow.pop %v3200
        %v3202 = vmul.f32 %v2704, 1.442695
        %v3203 = vpow.pop %v3202
        %v3204 = vmul.f32 %v2705, 1.442695
        %v3205 = vpow.pop %v3204
        %v3206 = vmul.f32 %v2706, 1.442695
        %v3207 = vpow.pop %v3206
        %v3208 = vmul.f32 %v2707, 1.442695
        %v3209 = vpow.pop %v3208
        %v3210 = vmul.f32 %v2708, 1.442695
        %v3211 = vpow.pop %v3210
        %v3212 = vmul.f32 %v2709, 1.442695
        %v3213 = vpow.pop %v3212
        %v3214 = vmul.f32 %v2710, 1.442695
        %v3215 = vpow.pop %v3214
        %v3216 = vmul.f32 %v2711, 1.442695
        %v3217 = vpow.pop %v3216
        %v3218 = vmul.f32 %v2712, 1.442695
        %v3219 = vpow.pop %v3218
        %v3220 = vmul.f32 %v2713, 1.442695
        %v3221 = vpow.pop %v3220
        %v3222 = vmul.f32 %v2714, 1.442695
        %v3223 = vpow.pop %v3222
        %v3224 = vmul.f32 %v2715, 1.442695
        %v3225 = vpow.pop %v3224
        %v3226 = vmul.f32 %v2716, 1.442695
        %v3227 = vpow.pop %v3226
        %v3228 = vmul.f32 %v2717, 1.442695
        %v3229 = vpow.pop %v3228
        %v3230 = vadd.f32 %v2719, %v2723
        %v3231 = vadd.f32 %v3230, %v2727
        %v3232 = vadd.f32 %v3231, %v2731
        %v3233 = vadd.f32 %v3232, %v2735
        %v3234 = vadd.f32 %v3233, %v2739
        %v3235 = vadd.f32 %v3234, %v2743
        %v3236 = vadd.f32 %v3235, %v2747
        %v3237 = vadd.f32 %v3236, %v2751
        %v3238 = vadd.f32 %v3237, %v2755
        %v3239 = vadd.f32 %v3238, %v2759
        %v3240 = vadd.f32 %v3239, %v2763
        %v3241 = vadd.f32 %v3240, %v2767
        %v3242 = vadd.f32 %v3241, %v2771
        %v3243 = vadd.f32 %v3242, %v2775
        %v3244 = vadd.f32 %v3243, %v2779
        %v3245 = vadd.f32 %v3244, %v2783
        %v3246 = vadd.f32 %v3245, %v2787
        %v3247 = vadd.f32 %v3246, %v2791
        %v3248 = vadd.f32 %v3247, %v2795
        %v3249 = vadd.f32 %v3248, %v2799
        %v3250 = vadd.f32 %v3249, %v2803
        %v3251 = vadd.f32 %v3250, %v2807
        %v3252 = vadd.f32 %v3251, %v2811
        %v3253 = vadd.f32 %v3252, %v2815
        %v3254 = vadd.f32 %v3253, %v2819
        %v3255 = vadd.f32 %v3254, %v2823
        %v3256 = vadd.f32 %v3255, %v2827
        %v3257 = vadd.f32 %v3256, %v2831
        %v3258 = vadd.f32 %v3257, %v2835
        %v3259 = vadd.f32 %v3258, %v2839
        %v3260 = vadd.f32 %v3259, %v2843
        %v3261 = vrot.slane %v3260, 4
        %v3262 = vadd.f32 %v3260, %v3261
        %v3263 = vrot.slane %v3262, 2
        %v3264 = vadd.f32 %v3262, %v3263
        %v3265 = vrot.slane %v3264, 1
        %v3266 = vadd.f32 %v3264, %v3265
        %v3267 = vadd.f32 %v2721, %v2725
        %v3268 = vadd.f32 %v3267, %v2729
        %v3269 = vadd.f32 %v3268, %v2733
        %v3270 = vadd.f32 %v3269, %v2737
        %v3271 = vadd.f32 %v3270, %v2741
        %v3272 = vadd.f32 %v3271, %v2745
        %v3273 = vadd.f32 %v3272, %v2749
        %v3274 = vadd.f32 %v3273, %v2753
        %v3275 = vadd.f32 %v3274, %v2757
        %v3276 = vadd.f32 %v3275, %v2761
        %v3277 = vadd.f32 %v3276, %v2765
        %v3278 = vadd.f32 %v3277, %v2769
        %v3279 = vadd.f32 %v3278, %v2773
        %v3280 = vadd.f32 %v3279, %v2777
        %v3281 = vadd.f32 %v3280, %v2781
        %v3282 = vadd.f32 %v3281, %v2785
        %v3283 = vadd.f32 %v3282, %v2789
        %v3284 = vadd.f32 %v3283, %v2793
        %v3285 = vadd.f32 %v3284, %v2797
        %v3286 = vadd.f32 %v3285, %v2801
        %v3287 = vadd.f32 %v3286, %v2805
        %v3288 = vadd.f32 %v3287, %v2809
        %v3289 = vadd.f32 %v3288, %v2813
        %v3290 = vadd.f32 %v3289, %v2817
        %v3291 = vadd.f32 %v3290, %v2821
        %v3292 = vadd.f32 %v3291, %v2825
        %v3293 = vadd.f32 %v3292, %v2829
        %v3294 = vadd.f32 %v3293, %v2833
        %v3295 = vadd.f32 %v3294, %v2837
        %v3296 = vadd.f32 %v3295, %v2841
        %v3297 = vadd.f32 %v3296, %v2845
        %v3298 = vrot.slane %v3297, 4
        %v3299 = vadd.f32 %v3297, %v3298
        %v3300 = vrot.slane %v3299, 2
        %v3301 = vadd.f32 %v3299, %v3300
        %v3302 = vrot.slane %v3301, 1
        %v3303 = vadd.f32 %v3301, %v3302
        %v3304 = vadd.f32 %v2847, %v2851
        %v3305 = vadd.f32 %v3304, %v2855
        %v3306 = vadd.f32 %v3305, %v2859
        %v3307 = vadd.f32 %v3306, %v2863
        %v3308 = vadd.f32 %v3307, %v2867
        %v3309 = vadd.f32 %v3308, %v2871
        %v3310 = vadd.f32 %v3309, %v2875
        %v3311 = vadd.f32 %v3310, %v2879
        %v3312 = vadd.f32 %v3311, %v2883
        %v3313 = vadd.f32 %v3312, %v2887
        %v3314 = vadd.f32 %v3313, %v2891
        %v3315 = vadd.f32 %v3314, %v2895
        %v3316 = vadd.f32 %v3315, %v2899
        %v3317 = vadd.f32 %v3316, %v2903
        %v3318 = vadd.f32 %v3317, %v2907
        %v3319 = vadd.f32 %v3318, %v2911
        %v3320 = vadd.f32 %v3319, %v2915
        %v3321 = vadd.f32 %v3320, %v2919
        %v3322 = vadd.f32 %v3321, %v2923
        %v3323 = vadd.f32 %v3322, %v2927
        %v3324 = vadd.f32 %v3323, %v2931
        %v3325 = vadd.f32 %v3324, %v2935
        %v3326 = vadd.f32 %v3325, %v2939
        %v3327 = vadd.f32 %v3326, %v2943
        %v3328 = vadd.f32 %v3327, %v2947
        %v3329 = vadd.f32 %v3328, %v2951
        %v3330 = vadd.f32 %v3329, %v2955
        %v3331 = vadd.f32 %v3330, %v2959
        %v3332 = vadd.f32 %v3331, %v2963
        %v3333 = vadd.f32 %v3332, %v2967
        %v3334 = vadd.f32 %v3333, %v2971
        %v3335 = vrot.slane %v3334, 4
        %v3336 = vadd.f32 %v3334, %v3335
        %v3337 = vrot.slane %v3336, 2
        %v3338 = vadd.f32 %v3336, %v3337
        %v3339 = vrot.slane %v3338, 1
        %v3340 = vadd.f32 %v3338, %v3339
        %v3341 = vadd.f32 %v2849, %v2853
        %v3342 = vadd.f32 %v3341, %v2857
        %v3343 = vadd.f32 %v3342, %v2861
        %v3344 = vadd.f32 %v3343, %v2865
        %v3345 = vadd.f32 %v3344, %v2869
        %v3346 = vadd.f32 %v3345, %v2873
        %v3347 = vadd.f32 %v3346, %v2877
        %v3348 = vadd.f32 %v3347, %v2881
        %v3349 = vadd.f32 %v3348, %v2885
        %v3350 = vadd.f32 %v3349, %v2889
        %v3351 = vadd.f32 %v3350, %v2893
        %v3352 = vadd.f32 %v3351, %v2897
        %v3353 = vadd.f32 %v3352, %v2901
        %v3354 = vadd.f32 %v3353, %v2905
        %v3355 = vadd.f32 %v3354, %v2909
        %v3356 = vadd.f32 %v3355, %v2913
        %v3357 = vadd.f32 %v3356, %v2917
        %v3358 = vadd.f32 %v3357, %v2921
        %v3359 = vadd.f32 %v3358, %v2925
        %v3360 = vadd.f32 %v3359, %v2929
        %v3361 = vadd.f32 %v3360, %v2933
        %v3362 = vadd.f32 %v3361, %v2937
        %v3363 = vadd.f32 %v3362, %v2941
        %v3364 = vadd.f32 %v3363, %v2945
        %v3365 = vadd.f32 %v3364, %v2949
        %v3366 = vadd.f32 %v3365, %v2953
        %v3367 = vadd.f32 %v3366, %v2957
        %v3368 = vadd.f32 %v3367, %v2961
        %v3369 = vadd.f32 %v3368, %v2965
        %v3370 = vadd.f32 %v3369, %v2969
        %v3371 = vadd.f32 %v3370, %v2973
        %v3372 = vrot.slane %v3371, 4
        %v3373 = vadd.f32 %v3371, %v3372
        %v3374 = vrot.slane %v3373, 2
        %v3375 = vadd.f32 %v3373, %v3374
        %v3376 = vrot.slane %v3375, 1
        %v3377 = vadd.f32 %v3375, %v3376
        %v3378 = vadd.f32 %v2975, %v2979
        %v3379 = vadd.f32 %v3378, %v2983
        %v3380 = vadd.f32 %v3379, %v2987
        %v3381 = vadd.f32 %v3380, %v2991
        %v3382 = vadd.f32 %v3381, %v2995
        %v3383 = vadd.f32 %v3382, %v2999
        %v3384 = vadd.f32 %v3383, %v3003
        %v3385 = vadd.f32 %v3384, %v3007
        %v3386 = vadd.f32 %v3385, %v3011
        %v3387 = vadd.f32 %v3386, %v3015
        %v3388 = vadd.f32 %v3387, %v3019
        %v3389 = vadd.f32 %v3388, %v3023
        %v3390 = vadd.f32 %v3389, %v3027
        %v3391 = vadd.f32 %v3390, %v3031
        %v3392 = vadd.f32 %v3391, %v3035
        %v3393 = vadd.f32 %v3392, %v3039
        %v3394 = vadd.f32 %v3393, %v3043
        %v3395 = vadd.f32 %v3394, %v3047
        %v3396 = vadd.f32 %v3395, %v3051
        %v3397 = vadd.f32 %v3396, %v3055
        %v3398 = vadd.f32 %v3397, %v3059
        %v3399 = vadd.f32 %v3398, %v3063
        %v3400 = vadd.f32 %v3399, %v3067
        %v3401 = vadd.f32 %v3400, %v3071
        %v3402 = vadd.f32 %v3401, %v3075
        %v3403 = vadd.f32 %v3402, %v3079
        %v3404 = vadd.f32 %v3403, %v3083
        %v3405 = vadd.f32 %v3404, %v3087
        %v3406 = vadd.f32 %v3405, %v3091
        %v3407 = vadd.f32 %v3406, %v3095
        %v3408 = vadd.f32 %v3407, %v3099
        %v3409 = vrot.slane %v3408, 4
        %v3410 = vadd.f32 %v3408, %v3409
        %v3411 = vrot.slane %v3410, 2
        %v3412 = vadd.f32 %v3410, %v3411
        %v3413 = vrot.slane %v3412, 1
        %v3414 = vadd.f32 %v3412, %v3413
        %v3415 = vadd.f32 %v2977, %v2981
        %v3416 = vadd.f32 %v3415, %v2985
        %v3417 = vadd.f32 %v3416, %v2989
        %v3418 = vadd.f32 %v3417, %v2993
        %v3419 = vadd.f32 %v3418, %v2997
        %v3420 = vadd.f32 %v3419, %v3001
        %v3421 = vadd.f32 %v3420, %v3005
        %v3422 = vadd.f32 %v3421, %v3009
        %v3423 = vadd.f32 %v3422, %v3013
        %v3424 = vadd.f32 %v3423, %v3017
        %v3425 = vadd.f32 %v3424, %v3021
        %v3426 = vadd.f32 %v3425, %v3025
        %v3427 = vadd.f32 %v3426, %v3029
        %v3428 = vadd.f32 %v3427, %v3033
        %v3429 = vadd.f32 %v3428, %v3037
        %v3430 = vadd.f32 %v3429, %v3041
        %v3431 = vadd.f32 %v3430, %v3045
        %v3432 = vadd.f32 %v3431, %v3049
        %v3433 = vadd.f32 %v3432, %v3053
        %v3434 = vadd.f32 %v3433, %v3057
        %v3435 = vadd.f32 %v3434, %v3061
        %v3436 = vadd.f32 %v3435, %v3065
        %v3437 = vadd.f32 %v3436, %v3069
        %v3438 = vadd.f32 %v3437, %v3073
        %v3439 = vadd.f32 %v3438, %v3077
        %v3440 = vadd.f32 %v3439, %v3081
        %v3441 = vadd.f32 %v3440, %v3085
        %v3442 = vadd.f32 %v3441, %v3089
        %v3443 = vadd.f32 %v3442, %v3093
        %v3444 = vadd.f32 %v3443, %v3097
        %v3445 = vadd.f32 %v3444, %v3101
        %v3446 = vrot.slane %v3445, 4
        %v3447 = vadd.f32 %v3445, %v3446
        %v3448 = vrot.slane %v3447, 2
        %v3449 = vadd.f32 %v3447, %v3448
        %v3450 = vrot.slane %v3449, 1
        %v3451 = vadd.f32 %v3449, %v3450
        %v3452 = vadd.f32 %v3103, %v3107
        %v3453 = vadd.f32 %v3452, %v3111
        %v3454 = vadd.f32 %v3453, %v3115
        %v3455 = vadd.f32 %v3454, %v3119
        %v3456 = vadd.f32 %v3455, %v3123
        %v3457 = vadd.f32 %v3456, %v3127
        %v3458 = vadd.f32 %v3457, %v3131
        %v3459 = vadd.f32 %v3458, %v3135
        %v3460 = vadd.f32 %v3459, %v3139
        %v3461 = vadd.f32 %v3460, %v3143
        %v3462 = vadd.f32 %v3461, %v3147
        %v3463 = vadd.f32 %v3462, %v3151
        %v3464 = vadd.f32 %v3463, %v3155
        %v3465 = vadd.f32 %v3464, %v3159
        %v3466 = vadd.f32 %v3465, %v3163
        %v3467 = vadd.f32 %v3466, %v3167
        %v3468 = vadd.f32 %v3467, %v3171
        %v3469 = vadd.f32 %v3468, %v3175
        %v3470 = vadd.f32 %v3469, %v3179
        %v3471 = vadd.f32 %v3470, %v3183
        %v3472 = vadd.f32 %v3471, %v3187
        %v3473 = vadd.f32 %v3472, %v3191
        %v3474 = vadd.f32 %v3473, %v3195
        %v3475 = vadd.f32 %v3474, %v3199
        %v3476 = vadd.f32 %v3475, %v3203
        %v3477 = vadd.f32 %v3476, %v3207
        %v3478 = vadd.f32 %v3477, %v3211
        %v3479 = vadd.f32 %v3478, %v3215
        %v3480 = vadd.f32 %v3479, %v3219
        %v3481 = vadd.f32 %v3480, %v3223
        %v3482 = vadd.f32 %v3481, %v3227
        %v3483 = vrot.slane %v3482, 4
        %v3484 = vadd.f32 %v3482, %v3483
        %v3485 = vrot.slane %v3484, 2
        %v3486 = vadd.f32 %v3484, %v3485
        %v3487 = vrot.slane %v3486, 1
        %v3488 = vadd.f32 %v3486, %v3487
        %v3489 = vadd.f32 %v3105, %v3109
        %v3490 = vadd.f32 %v3489, %v3113
        %v3491 = vadd.f32 %v3490, %v3117
        %v3492 = vadd.f32 %v3491, %v3121
        %v3493 = vadd.f32 %v3492, %v3125
        %v3494 = vadd.f32 %v3493, %v3129
        %v3495 = vadd.f32 %v3494, %v3133
        %v3496 = vadd.f32 %v3495, %v3137
        %v3497 = vadd.f32 %v3496, %v3141
        %v3498 = vadd.f32 %v3497, %v3145
        %v3499 = vadd.f32 %v3498, %v3149
        %v3500 = vadd.f32 %v3499, %v3153
        %v3501 = vadd.f32 %v3500, %v3157
        %v3502 = vadd.f32 %v3501, %v3161
        %v3503 = vadd.f32 %v3502, %v3165
        %v3504 = vadd.f32 %v3503, %v3169
        %v3505 = vadd.f32 %v3504, %v3173
        %v3506 = vadd.f32 %v3505, %v3177
        %v3507 = vadd.f32 %v3506, %v3181
        %v3508 = vadd.f32 %v3507, %v3185
        %v3509 = vadd.f32 %v3508, %v3189
        %v3510 = vadd.f32 %v3509, %v3193
        %v3511 = vadd.f32 %v3510, %v3197
        %v3512 = vadd.f32 %v3511, %v3201
        %v3513 = vadd.f32 %v3512, %v3205
        %v3514 = vadd.f32 %v3513, %v3209
        %v3515 = vadd.f32 %v3514, %v3213
        %v3516 = vadd.f32 %v3515, %v3217
        %v3517 = vadd.f32 %v3516, %v3221
        %v3518 = vadd.f32 %v3517, %v3225
        %v3519 = vadd.f32 %v3518, %v3229
        %v3520 = vrot.slane %v3519, 4
        %v3521 = vadd.f32 %v3519, %v3520
        %v3522 = vrot.slane %v3521, 2
        %v3523 = vadd.f32 %v3521, %v3522
        %v3524 = vrot.slane %v3523, 1
        %v3525 = vadd.f32 %v3523, %v3524
        %3526 = vmatprep.subr.mxu0 %v2721
        %3527 = vmatpush1.msra.mxu0 %v2719
        %3528 = vmatprep.subr.mxu0 %v2725
        %3529 = vmatpush1.msra.mxu0 %v2723
        %3530 = vmatprep.subr.mxu0 %v2729
        %3531 = vmatpush1.msra.mxu0 %v2727
        %3532 = vmatprep.subr.mxu0 %v2733
        %3533 = vmatpush1.msra.mxu0 %v2731
        %3534 = vmatprep.subr.mxu0 %v2737
        %3535 = vmatpush1.msra.mxu0 %v2735
        %3536 = vmatprep.subr.mxu0 %v2741
        %3537 = vmatpush1.msra.mxu0 %v2739
        %3538 = vmatprep.subr.mxu0 %v2745
        %3539 = vmatpush1.msra.mxu0 %v2743
        %3540 = vmatprep.subr.mxu0 %v2749
        %3541 = vmatpush1.msra.mxu0 %v2747
        %3542 = vmatprep.subr.mxu0 %v2753
        %3543 = vmatpush1.msra.mxu0 %v2751
        %3544 = vmatprep.subr.mxu0 %v2757
        %3545 = vmatpush1.msra.mxu0 %v2755
        %3546 = vmatprep.subr.mxu0 %v2761
        %3547 = vmatpush1.msra.mxu0 %v2759
        %3548 = vmatprep.subr.mxu0 %v2765
        %3549 = vmatpush1.msra.mxu0 %v2763
        %3550 = vmatprep.subr.mxu0 %v2769
        %3551 = vmatpush1.msra.mxu0 %v2767
        %3552 = vmatprep.subr.mxu0 %v2773
        %3553 = vmatpush1.msra.mxu0 %v2771
        %3554 = vmatprep.subr.mxu0 %v2777
        %3555 = vmatpush1.msra.mxu0 %v2775
        %3556 = vmatprep.subr.mxu0 %v2781
        %3557 = vmatpush1.msra.mxu0 %v2779
        %3558 = vmatprep.subr.mxu0 %v2785
        %3559 = vmatpush1.msra.mxu0 %v2783
        %3560 = vmatprep.subr.mxu0 %v2789
        %3561 = vmatpush1.msra.mxu0 %v2787
        %3562 = vmatprep.subr.mxu0 %v2793
        %3563 = vmatpush1.msra.mxu0 %v2791
        %3564 = vmatprep.subr.mxu0 %v2797
        %3565 = vmatpush1.msra.mxu0 %v2795
        %3566 = vmatprep.subr.mxu0 %v2801
        %3567 = vmatpush1.msra.mxu0 %v2799
        %3568 = vmatprep.subr.mxu0 %v2805
        %3569 = vmatpush1.msra.mxu0 %v2803
        %3570 = vmatprep.subr.mxu0 %v2809
        %3571 = vmatpush1.msra.mxu0 %v2807
        %3572 = vmatprep.subr.mxu0 %v2813
        %3573 = vmatpush1.msra.mxu0 %v2811
        %3574 = vmatprep.subr.mxu0 %v2817
        %3575 = vmatpush1.msra.mxu0 %v2815
        %3576 = vmatprep.subr.mxu0 %v2821
        %3577 = vmatpush1.msra.mxu0 %v2819
        %3578 = vmatprep.subr.mxu0 %v2825
        %3579 = vmatpush1.msra.mxu0 %v2823
        %3580 = vmatprep.subr.mxu0 %v2829
        %3581 = vmatpush1.msra.mxu0 %v2827
        %3582 = vmatprep.subr.mxu0 %v2833
        %3583 = vmatpush1.msra.mxu0 %v2831
        %3584 = vmatprep.subr.mxu0 %v2837
        %3585 = vmatpush1.msra.mxu0 %v2835
        %3586 = vmatprep.subr.mxu0 %v2841
        %3587 = vmatpush1.msra.mxu0 %v2839
        %3588 = vmatprep.subr.mxu0 %v2845
        %3589 = vmatpush1.msra.mxu0 %v2843
        %3590 = vmatprep.mubr.f32.mxu0 %v477
        %3591 = vmatmul.mubr.f32.gmra.mrb[0].mxu0 %v475
        %v3592 = vpop.f32.mrb[0].mxu0
        %v3593 = vadd.f32 0.0, %v3592
        %v3594 = vpop.f32.mrb[0].mxu0
        %v3595 = vadd.f32 0.0, %v3594
        %3596 = vdwg.mxu0
        %3597 = vmatprep.subr.mxu0 %v2849
        %3598 = vmatpush1.msra.mxu0 %v2847
        %3599 = vmatprep.subr.mxu0 %v2853
        %3600 = vmatpush1.msra.mxu0 %v2851
        %3601 = vmatprep.subr.mxu0 %v2857
        %3602 = vmatpush1.msra.mxu0 %v2855
        %3603 = vmatprep.subr.mxu0 %v2861
        %3604 = vmatpush1.msra.mxu0 %v2859
        %3605 = vmatprep.subr.mxu0 %v2865
        %3606 = vmatpush1.msra.mxu0 %v2863
        %3607 = vmatprep.subr.mxu0 %v2869
        %3608 = vmatpush1.msra.mxu0 %v2867
        %3609 = vmatprep.subr.mxu0 %v2873
        %3610 = vmatpush1.msra.mxu0 %v2871
        %3611 = vmatprep.subr.mxu0 %v2877
        %3612 = vmatpush1.msra.mxu0 %v2875
        %3613 = vmatprep.subr.mxu0 %v2881
        %3614 = vmatpush1.msra.mxu0 %v2879
        %3615 = vmatprep.subr.mxu0 %v2885
        %3616 = vmatpush1.msra.mxu0 %v2883
        %3617 = vmatprep.subr.mxu0 %v2889
        %3618 = vmatpush1.msra.mxu0 %v2887
        %3619 = vmatprep.subr.mxu0 %v2893
        %3620 = vmatpush1.msra.mxu0 %v2891
        %3621 = vmatprep.subr.mxu0 %v2897
        %3622 = vmatpush1.msra.mxu0 %v2895
        %3623 = vmatprep.subr.mxu0 %v2901
        %3624 = vmatpush1.msra.mxu0 %v2899
        %3625 = vmatprep.subr.mxu0 %v2905
        %3626 = vmatpush1.msra.mxu0 %v2903
        %3627 = vmatprep.subr.mxu0 %v2909
        %3628 = vmatpush1.msra.mxu0 %v2907
        %3629 = vmatprep.subr.mxu0 %v2913
        %3630 = vmatpush1.msra.mxu0 %v2911
        %3631 = vmatprep.subr.mxu0 %v2917
        %3632 = vmatpush1.msra.mxu0 %v2915
        %3633 = vmatprep.subr.mxu0 %v2921
        %3634 = vmatpush1.msra.mxu0 %v2919
        %3635 = vmatprep.subr.mxu0 %v2925
        %3636 = vmatpush1.msra.mxu0 %v2923
        %3637 = vmatprep.subr.mxu0 %v2929
        %3638 = vmatpush1.msra.mxu0 %v2927
        %3639 = vmatprep.subr.mxu0 %v2933
        %3640 = vmatpush1.msra.mxu0 %v2931
        %3641 = vmatprep.subr.mxu0 %v2937
        %3642 = vmatpush1.msra.mxu0 %v2935
        %3643 = vmatprep.subr.mxu0 %v2941
        %3644 = vmatpush1.msra.mxu0 %v2939
        %3645 = vmatprep.subr.mxu0 %v2945
        %3646 = vmatpush1.msra.mxu0 %v2943
        %3647 = vmatprep.subr.mxu0 %v2949
        %3648 = vmatpush1.msra.mxu0 %v2947
        %3649 = vmatprep.subr.mxu0 %v2953
        %3650 = vmatpush1.msra.mxu0 %v2951
        %3651 = vmatprep.subr.mxu0 %v2957
        %3652 = vmatpush1.msra.mxu0 %v2955
        %3653 = vmatprep.subr.mxu0 %v2961
        %3654 = vmatpush1.msra.mxu0 %v2959
        %3655 = vmatprep.subr.mxu0 %v2965
        %3656 = vmatpush1.msra.mxu0 %v2963
        %3657 = vmatprep.subr.mxu0 %v2969
        %3658 = vmatpush1.msra.mxu0 %v2967
        %3659 = vmatprep.subr.mxu0 %v2973
        %3660 = vmatpush1.msra.mxu0 %v2971
        %3661 = vmatprep.mubr.f32.mxu0 %v483
        %3662 = vmatmul.mubr.f32.gmra.mrb[0].mxu0 %v481
        %v3663 = vpop.f32.mrb[0].mxu0
        %v3664 = vadd.f32 0.0, %v3663
        %v3665 = vpop.f32.mrb[0].mxu0
        %v3666 = vadd.f32 0.0, %v3665
        %3667 = vdwg.mxu0
        %3668 = vmatprep.subr.mxu0 %v2977
        %3669 = vmatpush1.msra.mxu0 %v2975
        %3670 = vmatprep.subr.mxu0 %v2981
        %3671 = vmatpush1.msra.mxu0 %v2979
        %3672 = vmatprep.subr.mxu0 %v2985
        %3673 = vmatpush1.msra.mxu0 %v2983
        %3674 = vmatprep.subr.mxu0 %v2989
        %3675 = vmatpush1.msra.mxu0 %v2987
        %3676 = vmatprep.subr.mxu0 %v2993
        %3677 = vmatpush1.msra.mxu0 %v2991
        %3678 = vmatprep.subr.mxu0 %v2997
        %3679 = vmatpush1.msra.mxu0 %v2995
        %3680 = vmatprep.subr.mxu0 %v3001
        %3681 = vmatpush1.msra.mxu0 %v2999
        %3682 = vmatprep.subr.mxu0 %v3005
        %3683 = vmatpush1.msra.mxu0 %v3003
        %3684 = vmatprep.subr.mxu0 %v3009
        %3685 = vmatpush1.msra.mxu0 %v3007
        %3686 = vmatprep.subr.mxu0 %v3013
        %3687 = vmatpush1.msra.mxu0 %v3011
        %3688 = vmatprep.subr.mxu0 %v3017
        %3689 = vmatpush1.msra.mxu0 %v3015
        %3690 = vmatprep.subr.mxu0 %v3021
        %3691 = vmatpush1.msra.mxu0 %v3019
        %3692 = vmatprep.subr.mxu0 %v3025
        %3693 = vmatpush1.msra.mxu0 %v3023
        %3694 = vmatprep.subr.mxu0 %v3029
        %3695 = vmatpush1.msra.mxu0 %v3027
        %3696 = vmatprep.subr.mxu0 %v3033
        %3697 = vmatpush1.msra.mxu0 %v3031
        %3698 = vmatprep.subr.mxu0 %v3037
        %3699 = vmatpush1.msra.mxu0 %v3035
        %3700 = vmatprep.subr.mxu0 %v3041
        %3701 = vmatpush1.msra.mxu0 %v3039
        %3702 = vmatprep.subr.mxu0 %v3045
        %3703 = vmatpush1.msra.mxu0 %v3043
        %3704 = vmatprep.subr.mxu0 %v3049
        %3705 = vmatpush1.msra.mxu0 %v3047
        %3706 = vmatprep.subr.mxu0 %v3053
        %3707 = vmatpush1.msra.mxu0 %v3051
        %3708 = vmatprep.subr.mxu0 %v3057
        %3709 = vmatpush1.msra.mxu0 %v3055
        %3710 = vmatprep.subr.mxu0 %v3061
        %3711 = vmatpush1.msra.mxu0 %v3059
        %3712 = vmatprep.subr.mxu0 %v3065
        %3713 = vmatpush1.msra.mxu0 %v3063
        %3714 = vmatprep.subr.mxu0 %v3069
        %3715 = vmatpush1.msra.mxu0 %v3067
        %3716 = vmatprep.subr.mxu0 %v3073
        %3717 = vmatpush1.msra.mxu0 %v3071
        %3718 = vmatprep.subr.mxu0 %v3077
        %3719 = vmatpush1.msra.mxu0 %v3075
        %3720 = vmatprep.subr.mxu0 %v3081
        %3721 = vmatpush1.msra.mxu0 %v3079
        %3722 = vmatprep.subr.mxu0 %v3085
        %3723 = vmatpush1.msra.mxu0 %v3083
        %3724 = vmatprep.subr.mxu0 %v3089
        %3725 = vmatpush1.msra.mxu0 %v3087
        %3726 = vmatprep.subr.mxu0 %v3093
        %3727 = vmatpush1.msra.mxu0 %v3091
        %3728 = vmatprep.subr.mxu0 %v3097
        %3729 = vmatpush1.msra.mxu0 %v3095
        %3730 = vmatprep.subr.mxu0 %v3101
        %3731 = vmatpush1.msra.mxu0 %v3099
        %3732 = vmatprep.mubr.f32.mxu0 %v489
        %3733 = vmatmul.mubr.f32.gmra.mrb[0].mxu0 %v487
        %v3734 = vpop.f32.mrb[0].mxu0
        %v3735 = vadd.f32 0.0, %v3734
        %v3736 = vpop.f32.mrb[0].mxu0
        %v3737 = vadd.f32 0.0, %v3736
        %3738 = vdwg.mxu0
        %3739 = vmatprep.subr.mxu0 %v3105
        %3740 = vmatpush1.msra.mxu0 %v3103
        %3741 = vmatprep.subr.mxu0 %v3109
        %3742 = vmatpush1.msra.mxu0 %v3107
        %3743 = vmatprep.subr.mxu0 %v3113
        %3744 = vmatpush1.msra.mxu0 %v3111
        %3745 = vmatprep.subr.mxu0 %v3117
        %3746 = vmatpush1.msra.mxu0 %v3115
        %3747 = vmatprep.subr.mxu0 %v3121
        %3748 = vmatpush1.msra.mxu0 %v3119
        %3749 = vmatprep.subr.mxu0 %v3125
        %3750 = vmatpush1.msra.mxu0 %v3123
        %3751 = vmatprep.subr.mxu0 %v3129
        %3752 = vmatpush1.msra.mxu0 %v3127
        %3753 = vmatprep.subr.mxu0 %v3133
        %3754 = vmatpush1.msra.mxu0 %v3131
        %3755 = vmatprep.subr.mxu0 %v3137
        %3756 = vmatpush1.msra.mxu0 %v3135
        %3757 = vmatprep.subr.mxu0 %v3141
        %3758 = vmatpush1.msra.mxu0 %v3139
        %3759 = vmatprep.subr.mxu0 %v3145
        %3760 = vmatpush1.msra.mxu0 %v3143
        %3761 = vmatprep.subr.mxu0 %v3149
        %3762 = vmatpush1.msra.mxu0 %v3147
        %3763 = vmatprep.subr.mxu0 %v3153
        %3764 = vmatpush1.msra.mxu0 %v3151
        %3765 = vmatprep.subr.mxu0 %v3157
        %3766 = vmatpush1.msra.mxu0 %v3155
        %3767 = vmatprep.subr.mxu0 %v3161
        %3768 = vmatpush1.msra.mxu0 %v3159
        %3769 = vmatprep.subr.mxu0 %v3165
        %3770 = vmatpush1.msra.mxu0 %v3163
        %3771 = vmatprep.subr.mxu0 %v3169
        %3772 = vmatpush1.msra.mxu0 %v3167
        %3773 = vmatprep.subr.mxu0 %v3173
        %3774 = vmatpush1.msra.mxu0 %v3171
        %3775 = vmatprep.subr.mxu0 %v3177
        %3776 = vmatpush1.msra.mxu0 %v3175
        %3777 = vmatprep.subr.mxu0 %v3181
        %3778 = vmatpush1.msra.mxu0 %v3179
        %3779 = vmatprep.subr.mxu0 %v3185
        %3780 = vmatpush1.msra.mxu0 %v3183
        %3781 = vmatprep.subr.mxu0 %v3189
        %3782 = vmatpush1.msra.mxu0 %v3187
        %3783 = vmatprep.subr.mxu0 %v3193
        %3784 = vmatpush1.msra.mxu0 %v3191
        %3785 = vmatprep.subr.mxu0 %v3197
        %3786 = vmatpush1.msra.mxu0 %v3195
        %3787 = vmatprep.subr.mxu0 %v3201
        %3788 = vmatpush1.msra.mxu0 %v3199
        %3789 = vmatprep.subr.mxu0 %v3205
        %3790 = vmatpush1.msra.mxu0 %v3203
        %3791 = vmatprep.subr.mxu0 %v3209
        %3792 = vmatpush1.msra.mxu0 %v3207
        %3793 = vmatprep.subr.mxu0 %v3213
        %3794 = vmatpush1.msra.mxu0 %v3211
        %3795 = vmatprep.subr.mxu0 %v3217
        %3796 = vmatpush1.msra.mxu0 %v3215
        %3797 = vmatprep.subr.mxu0 %v3221
        %3798 = vmatpush1.msra.mxu0 %v3219
        %3799 = vmatprep.subr.mxu0 %v3225
        %3800 = vmatpush1.msra.mxu0 %v3223
        %3801 = vmatprep.subr.mxu0 %v3229
        %3802 = vmatpush1.msra.mxu0 %v3227
        %3803 = vmatprep.mubr.f32.mxu0 %v495
        %3804 = vmatmul.mubr.f32.gmra.mrb[0].mxu0 %v493
        %v3805 = vpop.f32.mrb[0].mxu0
        %v3806 = vadd.f32 0.0, %v3805
        %v3807 = vpop.f32.mrb[0].mxu0
        %v3808 = vadd.f32 0.0, %v3807
        %3809 = vdwg.mxu0
        %v3810 = vrcp.pop %v3266
        %v3811 = vrcp.pop %v3303
        %v3812 = vrcp.pop %v3340
        %v3813 = vrcp.pop %v3377
        %v3814 = vrcp.pop %v3414
        %v3815 = vrcp.pop %v3451
        %v3816 = vrcp.pop %v3488
        %v3817 = vrcp.pop %v3525
        %v3818 = vmul.f32 %v3593, %v3810
        %v3819 = vmul.f32 %v3595, %v3811
        %v3820 = vmul.f32 %v3664, %v3812
        %v3821 = vmul.f32 %v3666, %v3813
        %v3822 = vmul.f32 %v3735, %v3814
        %v3823 = vmul.f32 %v3737, %v3815
        %v3824 = vmul.f32 %v3806, %v3816
        %v3825 = vmul.f32 %v3808, %v3817
        %3827 = vset.pattern.permute.xlu0 0
        %3828 = vperm.xlu0 %3827, %v251
        %v3829 = vpop.permute.xlu0 %3828
        %3832 = vset.pattern.permute.xlu0 0
        %3833 = vperm.xlu0 %3832, %v252
        %v3834 = vpop.permute.xlu0 %3833
        %3837 = vset.pattern.permute.xlu0 0
        %3838 = vperm.xlu0 %3837, %v253
        %v3839 = vpop.permute.xlu0 %3838
        %3842 = vset.pattern.permute.xlu0 0
        %3843 = vperm.xlu0 %3842, %v254
        %v3844 = vpop.permute.xlu0 %3843
        %v3847 = vsel %vm323, %v247, 0
        %v3850 = vsel %vm323, %v248, 0
        %v3853 = vsel %vm323, %v249, 0
        %v3856 = vsel %vm323, %v250, 0
        %3858 = vmatprep.subr.mxu0 %v3819
        %3859 = vmatpush1.msra.mxu0 %v3818
        %3860 = vmatprep.subr.mxu0 %v3821
        %3861 = vmatpush1.msra.mxu0 %v3820
        %3862 = vmatprep.subr.mxu0 %v3823
        %3863 = vmatpush1.msra.mxu0 %v3822
        %3864 = vmatprep.subr.mxu0 %v3825
        %3865 = vmatpush1.msra.mxu0 %v3824
        %3866 = vmatprep.subr.mxu0 0.0
        %3867 = vmatpush1.msra.mxu0 0.0
        %3868 = vmatprep.subr.mxu0 0.0
        %3869 = vmatpush1.msra.mxu0 0.0
        %3870 = vmatprep.subr.mxu0 0.0
        %3871 = vmatpush1.msra.mxu0 0.0
        %3872 = vmatprep.subr.mxu0 0.0
        %3873 = vmatpush1.msra.mxu0 0.0
        %3874 = vmatprep.subr.mxu0 0.0
        %3875 = vmatpush1.msra.mxu0 0.0
        %3876 = vmatprep.subr.mxu0 0.0
        %3877 = vmatpush1.msra.mxu0 0.0
        %3878 = vmatprep.subr.mxu0 0.0
        %3879 = vmatpush1.msra.mxu0 0.0
        %3880 = vmatprep.subr.mxu0 0.0
        %3881 = vmatpush1.msra.mxu0 0.0
        %3882 = vmatprep.subr.mxu0 0.0
        %3883 = vmatpush1.msra.mxu0 0.0
        %3884 = vmatprep.subr.mxu0 0.0
        %3885 = vmatpush1.msra.mxu0 0.0
        %3886 = vmatprep.subr.mxu0 0.0
        %3887 = vmatpush1.msra.mxu0 0.0
        %3888 = vmatprep.subr.mxu0 0.0
        %3889 = vmatpush1.msra.mxu0 0.0
        %3890 = vmatprep.subr.mxu0 0.0
        %3891 = vmatpush1.msra.mxu0 0.0
        %3892 = vmatprep.subr.mxu0 0.0
        %3893 = vmatpush1.msra.mxu0 0.0
        %3894 = vmatprep.subr.mxu0 0.0
        %3895 = vmatpush1.msra.mxu0 0.0
        %3896 = vmatprep.subr.mxu0 0.0
        %3897 = vmatpush1.msra.mxu0 0.0
        %3898 = vmatprep.subr.mxu0 0.0
        %3899 = vmatpush1.msra.mxu0 0.0
        %3900 = vmatprep.subr.mxu0 0.0
        %3901 = vmatpush1.msra.mxu0 0.0
        %3902 = vmatprep.subr.mxu0 0.0
        %3903 = vmatpush1.msra.mxu0 0.0
        %3904 = vmatprep.subr.mxu0 0.0
        %3905 = vmatpush1.msra.mxu0 0.0
        %3906 = vmatprep.subr.mxu0 0.0
        %3907 = vmatpush1.msra.mxu0 0.0
        %3908 = vmatprep.subr.mxu0 0.0
        %3909 = vmatpush1.msra.mxu0 0.0
        %3910 = vmatprep.subr.mxu0 0.0
        %3911 = vmatpush1.msra.mxu0 0.0
        %3912 = vmatprep.subr.mxu0 0.0
        %3913 = vmatpush1.msra.mxu0 0.0
        %3914 = vmatprep.subr.mxu0 0.0
        %3915 = vmatpush1.msra.mxu0 0.0
        %3916 = vmatprep.subr.mxu0 0.0
        %3917 = vmatpush1.msra.mxu0 0.0
        %3918 = vmatprep.subr.mxu0 0.0
        %3919 = vmatpush1.msra.mxu0 0.0
        %3920 = vmatprep.subr.mxu0 0.0
        %3921 = vmatpush1.msra.mxu0 0.0
        %3922 = vmatprep.mubr.f32.mxu0 0.0
        %3923 = vmatmul.mubr.f32.gmra.mrb[0].mxu0 %v3847
        %v3924 = vpop.f32.mrb[0].mxu0
        %v3925 = vadd.f32 %v3829, %v3924
        %v3926 = vpop.f32.mrb[0].mxu0
        %v3927 = vadd.f32 %v3829, %v3926
        %3928 = vmatprep.mubr.f32.mxu0 0.0
        %3929 = vmatmul.mubr.f32.gmra.mrb[0].mxu0 %v3850
        %v3930 = vpop.f32.mrb[0].mxu0
        %v3931 = vadd.f32 %v3834, %v3930
        %v3932 = vpop.f32.mrb[0].mxu0
        %v3933 = vadd.f32 %v3834, %v3932
        %3934 = vmatprep.mubr.f32.mxu0 0.0
        %3935 = vmatmul.mubr.f32.gmra.mrb[0].mxu0 %v3853
        %v3936 = vpop.f32.mrb[0].mxu0
        %v3937 = vadd.f32 %v3839, %v3936
        %v3938 = vpop.f32.mrb[0].mxu0
        %v3939 = vadd.f32 %v3839, %v3938
        %3940 = vmatprep.mubr.f32.mxu0 0.0
        %3941 = vmatmul.mubr.f32.gmra.mrb[0].mxu0 %v3856
        %v3942 = vpop.f32.mrb[0].mxu0
        %v3943 = vadd.f32 %v3844, %v3942
        %v3944 = vpop.f32.mrb[0].mxu0
        %v3945 = vadd.f32 %v3844, %v3944
        %3946 = vdwg.mxu0
        %v3947 = vadd.f32 %v255, %v3925
        %v3948 = vadd.f32 %v256, %v3927
        %v3949 = vadd.f32 %v257, %v3931
        %v3950 = vadd.f32 %v258, %v3933
        %v3951 = vadd.f32 %v259, %v3937
        %v3952 = vadd.f32 %v260, %v3939
        %v3953 = vadd.f32 %v261, %v3943
        %v3954 = vadd.f32 %v262, %v3945
        %3955 = vst [vmem:[%s217] sm:$0xff] %v3947
        %3956 = vst [vmem:[%s217 + $0x8] sm:$0xff] %v3948
        %3957 = vst [vmem:[%s217 + $0x10] sm:$0xff] %v3949
        %3958 = vst [vmem:[%s217 + $0x18] sm:$0xff] %v3950
        %3959 = vst [vmem:[%s217 + $0x20] sm:$0xff] %v3951
        %3960 = vst [vmem:[%s217 + $0x28] sm:$0xff] %v3952
        %3961 = vst [vmem:[%s217 + $0x30] sm:$0xff] %v3953
        %3962 = vst [vmem:[%s217 + $0x38] sm:$0xff] %v3954
        %s3963 = sand.u32 %s137, 1
        %s3964 = scalar_lea.sflag [#allocation3], %s3963
        %s3965 = sand.u32 %s137, 1
        %s3966 = smul.addr %s3965, 64
        %s3967 = scalar_lea.vmem [#allocation2], %s3966
        // Predicated region
        $region41: #{tpu_custom_call.1} parent=39 // pred_check
          %p3968 = pneg %p147
        $region42: #{tpu_custom_call.1} parent=39 // pred_check_branch
          %3970 = sbr.rel (%p3968) target = $region44
        $region43: #{tpu_custom_call.1} parent=39 // pred_region
          %s3972 = ssub.s32 1024, 1024
          %3973 = vsyncadd %s3964, %s3972
          %s3974 = smul.addr %s19, 8
          %s3975 = smul.addr %s3974, 128
          %s3976 = scalar_lea.hbm %s5, %s3975
          %s3977 = sshll.u32 %s3967, 4
          %s3978 = int_to_ptr.vmem [resolvable:$true] %s3977
          %3983 = dma.vmem_to_hbm [thread:$0]  %s3978, 1024, %s3976, %s3964, 256, 256, 16
        $region44: #{tpu_custom_call.1} parent=39 // pred_fallthru
          _
      $region40: #{tpu_custom_call.1} parent=5 // pred_fallthru
        _
      %p3984 = scmp.le.s32.totalorder 2, %s14
      // Predicated region
      $region45: #{tpu_custom_call.1} parent=5 // pred_check
        %p3985 = pneg %p3984
      $region46: #{tpu_custom_call.1} parent=5 // pred_check_branch
        %3987 = sbr.rel (%p3985) target = $region48
      $region47: #{tpu_custom_call.1} parent=5 // pred_region
        %s3988 = ssub.s32 %s14, 2
        // Predicated region
        $region49: #{tpu_custom_call.1} parent=47 // pred_check
          %p3989 = pneg %p153
        $region50: #{tpu_custom_call.1} parent=47 // pred_check_branch
          %3991 = sbr.rel (%p3989) target = $region52
        $region51: #{tpu_custom_call.1} parent=47 // pred_region
          %s3992 = sand.u32 %s138, 1
          %s3993 = scalar_lea.sflag [#allocation3], %s3992
          %s3994 = sand.u32 %s138, 1
          %s3995 = smul.addr %s3994, 64
          %s3996 = scalar_lea.vmem [#allocation2], %s3995
          %3997 = dma.done %s3993, 1024
        $region52: #{tpu_custom_call.1} parent=47 // pred_fallthru
          _
      $region48: #{tpu_custom_call.1} parent=5 // pred_fallthru
        _
    $region6: #{tpu_custom_call.1} parent=1 // loop_footer
      %s18 = sadd.s32 1, %s14
    $region7: #{tpu_custom_call.1} parent=1 // loop_footer_branch
      %13 = sbr.rel target = $region3
    $region8: #{tpu_custom_call.1} parent=1 // loop_exit
      _
    %3998 = vsyncpa [#allocation3], 1
    %s3999 = scalar_lea.sflag [#allocation3], 1
    %4000 = vsyncpa %s3999, 1

</llo_original>
